<compile_context>
chip_gen: v5e
topology: v5e:2x2
jax: 0.10.0
libtpu: 0.0.40
codegen_flags: <defaults>
</compile_context>

<pallas_src>
import jax
import jax.numpy as jnp
from jax.experimental import pallas as pl
from jax.experimental.pallas import tpu as pltpu


# ----------------------------------------------------------------------------
# Tiling helper
# ----------------------------------------------------------------------------
def _pick_row_tile(n_rows, row_bytes, budget=6 << 20):
    """Largest multiple-of-8 divisor of n_rows whose tile fits the VMEM budget."""
    if n_rows % 8 != 0:
        return n_rows                      # tiny / odd spatial size: single tile
    target = max(8, min(n_rows, budget // max(row_bytes, 1)))
    best = 8
    for t in range(8, n_rows + 1, 8):
        if n_rows % t == 0 and t <= target:
            best = t
    return best


# ----------------------------------------------------------------------------
# Kernel 1 (fused "up" path):
#   depthwise ConvTranspose2d(k=2, s=2, groups=C) + BN + ReLU
#   -> 1x1 conv + BN + ReLU
# Since kernel==stride, output 2x2 blocks are disjoint:
#   up[b, 2h+i, 2w+j, o] = relu( relu(x[b,h,w,:]*Wt[i2+j,:]+bt) @ Wp + bp )[o]
# The kernel writes an HBM layout (B, H, 2, W, 2*Cout) so the final
# (B, 2H, 2W, Cout) view is a *contiguous* (free) reshape.
# ----------------------------------------------------------------------------
def _make_up_fused_kernel(th, W, Cin, Cout):
    def kernel(x_ref, wt_ref, bt_ref, wp_ref, bp_ref, o_ref):
        x = x_ref[0].astype(jnp.float32)                 # (th, W, Cin)
        bt = bt_ref[0]                                   # (Cin,)
        wp = wp_ref[...].astype(jnp.float32)             # (Cin, Cout)
        bp = bp_ref[0]                                   # (Cout,)
        for i in range(2):                               # output row parity
            cols = []
            for j in range(2):                           # output col parity
                tap = jnp.maximum(x * wt_ref[2 * i + j, :] + bt, 0.0)
                y = jnp.dot(tap.reshape(th * W, Cin), wp,
                            preferred_element_type=jnp.float32)
                y = jnp.maximum(y + bp, 0.0).reshape(th, W, Cout)
                cols.append(y)
            # last-dim interleave of the two column-parities; one store per i
            o_ref[0, :, i, :, :] = jnp.concatenate(cols, axis=-1).astype(o_ref.dtype)
    return kernel


def pallas_up_fused(x_nhwc, w_t, b_t, w_p, b_p):
    B, H, W, Cin = x_nhwc.shape
    Cout = w_p.shape[1]
    th = _pick_row_tile(H, row_bytes=6 * W * (Cin + 2 * Cout) * 4)
    grid = (B, H // th)

    out = pl.pallas_call(
        _make_up_fused_kernel(th, W, Cin, Cout),
        out_shape=jax.ShapeDtypeStruct((B, H, 2, W, 2 * Cout), x_nhwc.dtype),
        grid=grid,
        in_specs=[
            pl.BlockSpec((1, th, W, Cin), lambda b, t: (b, t, 0, 0)),
            pl.BlockSpec((4, Cin), lambda b, t: (0, 0)),
            pl.BlockSpec((1, Cin), lambda b, t: (0, 0)),
            pl.BlockSpec((Cin, Cout), lambda b, t: (0, 0)),
            pl.BlockSpec((1, Cout), lambda b, t: (0, 0)),
        ],
        out_specs=pl.BlockSpec((1, th, 2, W, 2 * Cout),
                               lambda b, t: (b, t, 0, 0, 0)),
        compiler_params=pltpu.CompilerParams(
            dimension_semantics=("parallel", "parallel")),
    )(x_nhwc, w_t, b_t, w_p, b_p)
    # free contiguous reshape: (B, H, 2, W, 2, Cout) -> (B, 2H, 2W, Cout)
    return out.reshape(B, 2 * H, 2 * W, Cout)


# ----------------------------------------------------------------------------
# Kernel 2 (fused "conv" path on the concatenation):
#   concat([up, crop], C) -> depthwise 3x3 (pad 1) + BN + ReLU
#   -> 1x1 conv + BN + ReLU
# `up` and `crop` stay separate inputs; the depthwise and pointwise weights
# are split by channel group so `cat` is never materialized in HBM.
# The 1-px halo is assembled into zero-padded VMEM scratches; the rows above /
# below the tile come from small clamped neighbour blocks (masked at edges).
# ----------------------------------------------------------------------------
def _make_cat_dw_pw_kernel(tr, hr, OW, C1, C2, Cout):
    def kernel(up_c, up_p, up_n, br_c, br_p, br_n,
               wdw_u_ref, bdw_u_ref, wpw_u_ref,
               wdw_b_ref, bdw_b_ref, wpw_b_ref,
               bpw_ref, o_ref, sc_u, sc_b):
        t = pl.program_id(1)
        pm = (t > 0).astype(jnp.float32)                      # top-halo valid
        nm = (t < pl.num_programs(1) - 1).astype(jnp.float32)  # bottom-halo valid

        def fill(sc, cen, prev, nxt):
            # scratch layout: rows [1..tr] = tile rows, cols [8..8+OW) = image
            # cols; everything else is zero padding for the 3x3 halo.
            sc[...] = jnp.zeros(sc.shape, sc.dtype)
            sc[1:tr + 1, 8:8 + OW, :] = cen[0].astype(jnp.float32)
            sc[0:1, 8:8 + OW, :] = prev[0, hr - 1:hr, :, :].astype(jnp.float32) * pm
            sc[tr + 1:tr + 2, 8:8 + OW, :] = nxt[0, 0:1, :, :].astype(jnp.float32) * nm

        fill(sc_u, up_c, up_p, up_n)
        fill(sc_b, br_c, br_p, br_n)

        def dw_conv(sc, w9_ref, b_ref, C):
            acc = jnp.zeros((tr, OW, C), jnp.float32)
            for dh in range(3):
                for dw_ in range(3):
                    acc = acc + (sc[dh:dh + tr, 7 + dw_:7 + dw_ + OW, :]
                                 * w9_ref[dh * 3 + dw_, :])
            return jnp.maximum(acc + b_ref[0], 0.0).reshape(tr * OW, C)

        h_u = dw_conv(sc_u, wdw_u_ref, bdw_u_ref, C1)
        h_b = dw_conv(sc_b, wdw_b_ref, bdw_b_ref, C2)
        y = (jnp.dot(h_u, wpw_u_ref[...].astype(jnp.float32),
                     preferred_element_type=jnp.float32)
             + jnp.dot(h_b, wpw_b_ref[...].astype(jnp.float32),
                       preferred_element_type=jnp.float32))
        y = jnp.maximum(y + bpw_ref[0], 0.0)
        o_ref[0] = y.reshape(tr, OW, Cout).astype(o_ref.dtype)
    return kernel


def pallas_cat_dw3x3_pw_fused(up, crop, wdw_u, bdw_u, wpw_u,
                              wdw_b, bdw_b, wpw_b, bpw):
    B, OH, OW, C1 = up.shape
    C2 = crop.shape[-1]
    Cout = wpw_u.shape[1]

    tr = _pick_row_tile(OH, row_bytes=6 * OW * (C1 + C2) * 4)
    hr = 8 if (OH % 8 == 0 and tr % 8 == 0) else tr      # halo block rows
    nb = tr // hr
    n_hblk = OH // hr
    grid = (B, OH // tr)

    def c_map(b, t):
        return (b, t, 0, 0)

    def p_map(b, t):                                     # block ending at row t*tr
        return (b, jnp.maximum(t * nb - 1, 0), 0, 0)

    def n_map(b, t):                                     # block starting at (t+1)*tr
        return (b, jnp.minimum((t + 1) * nb, n_hblk - 1), 0, 0)

    def w_map(b, t):
        return (0, 0)

    out = pl.pallas_call(
        _make_cat_dw_pw_kernel(tr, hr, OW, C1, C2, Cout),
        out_shape=jax.ShapeDtypeStruct((B, OH, OW, Cout), up.dtype),
        grid=grid,
        in_specs=[
            pl.BlockSpec((1, tr, OW, C1), c_map),
            pl.BlockSpec((1, hr, OW, C1), p_map),
            pl.BlockSpec((1, hr, OW, C1), n_map),
            pl.BlockSpec((1, tr, OW, C2), c_map),
            pl.BlockSpec((1, hr, OW, C2), p_map),
            pl.BlockSpec((1, hr, OW, C2), n_map),
            pl.BlockSpec((9, C1), w_map),
            pl.BlockSpec((1, C1), w_map),
            pl.BlockSpec((C1, Cout), w_map),
            pl.BlockSpec((9, C2), w_map),
            pl.BlockSpec((1, C2), w_map),
            pl.BlockSpec((C2, Cout), w_map),
            pl.BlockSpec((1, Cout), w_map),
        ],
        out_specs=pl.BlockSpec((1, tr, OW, Cout), c_map),
        scratch_shapes=[
            pltpu.VMEM((tr + 2, OW + 16, C1), jnp.float32),
            pltpu.VMEM((tr + 2, OW + 16, C2), jnp.float32),
        ],
        compiler_params=pltpu.CompilerParams(
            dimension_semantics=("parallel", "parallel")),
    )(up, up, up, crop, crop, crop,
      wdw_u, bdw_u, wpw_u, wdw_b, bdw_b, wpw_b, bpw)
    return out


# ----------------------------------------------------------------------------
# Glue: BN fold, bilinear (align_corners=True) upsample, parameter init.
# ----------------------------------------------------------------------------
def bn_fold(bn, eps=1e-5):
    scale = bn["gamma"] / jnp.sqrt(bn["var"] + eps)
    bias = bn["beta"] - bn["mean"] * scale
    return scale, bias


# TODO(synk): bilinear align_corners=True bridge resize stays in plain JAX
# (gather-based); it is only hit when bridge spatial size mismatches and is
# not exercised by the test shapes below.
def bilinear_align_corners(x_nchw, out_hw):
    B, C, H, W = x_nchw.shape
    oh, ow = out_hw

    def coords(n_in, n_out):
        if n_out == 1 or n_in == 1:
            return jnp.zeros((n_out,), jnp.float32)
        return jnp.arange(n_out, dtype=jnp.float32) * (n_in - 1) / (n_out - 1)

    ys, xs = coords(H, oh), coords(W, ow)
    y0 = jnp.floor(ys).astype(jnp.int32)
    x0 = jnp.floor(xs).astype(jnp.int32)
    y1 = jnp.minimum(y0 + 1, H - 1)
    x1 = jnp.minimum(x0 + 1, W - 1)
    wy = (ys - y0)[None, None, :, None]
    wx = (xs - x0)[None, None, None, :]
    g = x_nchw
    top = g[:, :, y0, :][:, :, :, x0] * (1 - wx) + g[:, :, y0, :][:, :, :, x1] * wx
    bot = g[:, :, y1, :][:, :, :, x0] * (1 - wx) + g[:, :, y1, :][:, :, :, x1] * wx
    return top * (1 - wy) + bot * wy


def init_bn(key, c):
    k1, k2, k3, k4 = jax.random.split(key, 4)
    return {
        "gamma": 0.5 + jax.random.uniform(k1, (c,), jnp.float32),
        "beta": 0.1 * jax.random.normal(k2, (c,), jnp.float32),
        "mean": 0.1 * jax.random.normal(k3, (c,), jnp.float32),
        "var": 0.5 + jax.random.uniform(k4, (c,), jnp.float32),
    }


def init_params(key, in_size, out_size):
    ks = jax.random.split(key, 8)
    return {
        # ConvTranspose2d(in, in, 2, 2, groups=in): weight (in, 1, 2, 2) -> (in,2,2)
        "up_tconv_w": 0.2 * jax.random.normal(ks[0], (in_size, 2, 2), jnp.float32),
        "up_bn1": init_bn(ks[1], in_size),
        # Conv2d(in, out, 1): stored (in, out) for x @ W
        "up_pw_w": 0.2 * jax.random.normal(ks[2], (in_size, out_size), jnp.float32),
        "up_bn2": init_bn(ks[3], out_size),
        # Conv2d(in, in, 3, groups=in): weight (in, 1, 3, 3) -> (in, 3, 3)
        "cv_dw_w": 0.2 * jax.random.normal(ks[4], (in_size, 3, 3), jnp.float32),
        "cv_bn1": init_bn(ks[5], in_size),
        "cv_pw_w": 0.2 * jax.random.normal(ks[6], (in_size, out_size), jnp.float32),
        "cv_bn2": init_bn(ks[7], out_size),
    }


# ----------------------------------------------------------------------------
# Full forward pass (Pallas) and a pure-JAX reference.
# ----------------------------------------------------------------------------
def upblock_mobile_forward(params, x_nchw, bridge_nchw):
    B, Cin, H, W = x_nchw.shape
    x = jnp.transpose(x_nchw, (0, 2, 3, 1))                      # NCHW -> NHWC

    s1, t1 = bn_fold(params["up_bn1"])
    s2, t2 = bn_fold(params["up_bn2"])
    s3, t3 = bn_fold(params["cv_bn1"])
    s4, t4 = bn_fold(params["cv_bn2"])

    Cout = params["up_pw_w"].shape[1]
    # fused up path weights (BN folded)
    w_t = (params["up_tconv_w"] * s1[:, None, None]).transpose(1, 2, 0).reshape(4, Cin)
    b_t = t1.reshape(1, Cin)
    w_p1 = params["up_pw_w"] * s2[None, :]
    b_p1 = t2.reshape(1, Cout)

    up = pallas_up_fused(x, w_t, b_t, w_p1, b_p1)                # (B, 2H, 2W, Cout)

    OH, OW = 2 * H, 2 * W
    if bridge_nchw.shape[2:] != (OH, OW):
        crop_nchw = bilinear_align_corners(bridge_nchw, (OH, OW))
    else:
        crop_nchw = bridge_nchw
    crop = jnp.transpose(crop_nchw, (0, 2, 3, 1))                # (B, OH, OW, Cb)

    C1 = Cout
    C2 = crop.shape[-1]
    Ccat = C1 + C2

    # conv path weights (BN folded), split by channel group (up | bridge)
    wdw = (params["cv_dw_w"] * s3[:, None, None]).transpose(1, 2, 0).reshape(9, Ccat)
    wdw_u, wdw_b = wdw[:, :C1], wdw[:, C1:]
    bdw_u, bdw_b = t3[:C1].reshape(1, C1), t3[C1:].reshape(1, C2)
    Cout2 = params["cv_pw_w"].shape[1]
    wpw = params["cv_pw_w"] * s4[None, :]
    wpw_u, wpw_b = wpw[:C1, :], wpw[C1:, :]
    bpw = t4.reshape(1, Cout2)

    y = pallas_cat_dw3x3_pw_fused(up, crop, wdw_u, bdw_u, wpw_u,
                                  wdw_b, bdw_b, wpw_b, bpw)      # (B, OH, OW, Cout2)
    return jnp.transpose(y, (0, 3, 1, 2))                        # back to NCHW


def reference_forward(params, x_nchw, bridge_nchw):
    """Pure-JAX (XLA) reference of the PyTorch module, NCHW."""
    B, Cin, H, W = x_nchw.shape
    s1, t1 = bn_fold(params["up_bn1"])
    s2, t2 = bn_fold(params["up_bn2"])
    s3, t3 = bn_fold(params["cv_bn1"])
    s4, t4 = bn_fold(params["cv_bn2"])

    wt = params["up_tconv_w"]                                    # (Cin, 2, 2)
    y = jnp.zeros((B, Cin, 2 * H, 2 * W), jnp.float32)
    for i in range(2):
        for j in range(2):
            y = y.at[:, :, i::2, j::2].set(x_nchw * wt[None, :, i, j, None, None])
    y = jnp.maximum(y * s1[None, :, None, None] + t1[None, :, None, None], 0.0)
    y = jnp.einsum("bchw,co->bohw", y, params["up_pw_w"],
                   precision=jax.lax.Precision.HIGHEST)
    y = jnp.maximum(y * s2[None, :, None, None] + t2[None, :, None, None], 0.0)

    if bridge_nchw.shape[2:] != y.shape[2:]:
        crop = bilinear_align_corners(bridge_nchw, y.shape[2:])
    else:
        crop = bridge_nchw
    cat = jnp.concatenate([y, crop], axis=1)

    wdw = params["cv_dw_w"]                                      # (Ccat, 3, 3)
    xp = jnp.pad(cat, ((0, 0), (0, 0), (1, 1), (1, 1)))
    z = jnp.zeros_like(cat)
    for dh in range(3):
        for dw in range(3):
            z = z + xp[:, :, dh:dh + 2 * H, dw:dw + 2 * W] * wdw[None, :, dh, dw, None, None]
    z = jnp.maximum(z * s3[None, :, None, None] + t3[None, :, None, None], 0.0)
    z = jnp.einsum("bchw,co->bohw", z, params["cv_pw_w"],
                   precision=jax.lax.Precision.HIGHEST)
    z = jnp.maximum(z * s4[None, :, None, None] + t4[None, :, None, None], 0.0)
    return z


if __name__ == "__main__":
    in_size, out_size = 8, 4
    B, H, W = 2, 8, 8

    k_x, k_b = jax.random.split(jax.random.PRNGKey(0))
    x = jax.random.normal(k_x, (B, in_size, H, W), jnp.float32)
    # bridge channels = in_size - out_size so concat has in_size channels
    bridge = jax.random.normal(k_b, (B, in_size - out_size, 2 * H, 2 * W), jnp.float32)

    params = init_params(jax.random.PRNGKey(42), in_size, out_size)

    out = jax.jit(upblock_mobile_forward)(params, x, bridge)
    out = jax.block_until_ready(out)

    assert out.shape == (B, out_size, 2 * H, 2 * W), out.shape
    assert bool(jnp.all(jnp.isfinite(out)))
    assert bool(jnp.all(out >= 0.0))  # final ReLU

    ref = jax.jit(reference_forward)(params, x, bridge)
    ref = jax.block_until_ready(ref)
    assert bool(jnp.allclose(out, ref, atol=5e-2, rtol=5e-2)), (
        float(jnp.max(jnp.abs(out - ref))))

    print("KERNEL_OK")
</pallas_src>

<mosaic_0001>
module attributes {stable_mosaic.version = 11 : i64} {
  func.func @kernel(%arg0: i32, %arg1: i32, %arg2: memref<1x16x16x4xf32, #tpu.memory_space<vmem>>, %arg3: memref<1x8x16x4xf32, #tpu.memory_space<vmem>>, %arg4: memref<1x8x16x4xf32, #tpu.memory_space<vmem>>, %arg5: memref<1x16x16x4xf32, #tpu.memory_space<vmem>>, %arg6: memref<1x8x16x4xf32, #tpu.memory_space<vmem>>, %arg7: memref<1x8x16x4xf32, #tpu.memory_space<vmem>>, %arg8: memref<9x4xf32, #tpu.memory_space<vmem>>, %arg9: memref<1x4xf32, #tpu.memory_space<vmem>>, %arg10: memref<4x4xf32, #tpu.memory_space<vmem>>, %arg11: memref<9x4xf32, #tpu.memory_space<vmem>>, %arg12: memref<1x4xf32, #tpu.memory_space<vmem>>, %arg13: memref<4x4xf32, #tpu.memory_space<vmem>>, %arg14: memref<1x4xf32, #tpu.memory_space<vmem>>, %arg15: memref<1x16x16x4xf32, #tpu.memory_space<vmem>>, %arg16: memref<18x32x4xf32, #tpu.memory_space<vmem>>, %arg17: memref<18x32x4xf32, #tpu.memory_space<vmem>>) attributes {dimension_semantics = [#tpu.dimension_semantics<parallel>, #tpu.dimension_semantics<parallel>], iteration_bounds = array<i64: 2, 1>, scalar_prefetch = 0 : i64, scratch_operands = 2 : i64, tpu.core_type = #tpu.core_type<tc>, window_params = [{transform_indices = @transform_0, window_bounds = array<i64: 1, 16, 16, 4>}, {transform_indices = @transform_1, window_bounds = array<i64: 1, 8, 16, 4>}, {transform_indices = @transform_2, window_bounds = array<i64: 1, 8, 16, 4>}, {transform_indices = @transform_3, window_bounds = array<i64: 1, 16, 16, 4>}, {transform_indices = @transform_4, window_bounds = array<i64: 1, 8, 16, 4>}, {transform_indices = @transform_5, window_bounds = array<i64: 1, 8, 16, 4>}, {pipeline_mode = #tpu.pipeline_mode<synchronous>, transform_indices = @transform_6, window_bounds = array<i64: 9, 4>}, {pipeline_mode = #tpu.pipeline_mode<synchronous>, transform_indices = @transform_7, window_bounds = array<i64: 1, 4>}, {pipeline_mode = #tpu.pipeline_mode<synchronous>, transform_indices = @transform_8, window_bounds = array<i64: 4, 4>}, {pipeline_mode = #tpu.pipeline_mode<synchronous>, transform_indices = @transform_9, window_bounds = array<i64: 9, 4>}, {pipeline_mode = #tpu.pipeline_mode<synchronous>, transform_indices = @transform_10, window_bounds = array<i64: 1, 4>}, {pipeline_mode = #tpu.pipeline_mode<synchronous>, transform_indices = @transform_11, window_bounds = array<i64: 4, 4>}, {pipeline_mode = #tpu.pipeline_mode<synchronous>, transform_indices = @transform_12, window_bounds = array<i64: 1, 4>}, {transform_indices = @transform_13, window_bounds = array<i64: 1, 16, 16, 4>}]} {
    %c0_i32 = arith.constant 0 : i32
    %0 = arith.cmpi sgt, %arg1, %c0_i32 : i32
    %1 = arith.extui %0 : i1 to i32
    %2 = arith.sitofp %1 : i32 to f32
    %c0_i32_0 = arith.constant 0 : i32
    %3 = arith.cmpi slt, %arg1, %c0_i32_0 : i32
    %4 = arith.extui %3 : i1 to i32
    %5 = arith.sitofp %4 : i32 to f32
    %cst = arith.constant 0.000000e+00 : f32
    %6 = vector.broadcast %cst : f32 to vector<18x32x4xf32>
    %c0 = arith.constant 0 : index
    %c0_1 = arith.constant 0 : index
    %c0_2 = arith.constant 0 : index
    %7 = vector.load %arg16[%c0, %c0_1, %c0_2] : memref<18x32x4xf32, #tpu.memory_space<vmem>>, vector<18x32x4xf32>
    tpu.vector_store %arg16[%c0, %c0_1, %c0_2], %6 {strides = array<i32>} : memref<18x32x4xf32, #tpu.memory_space<vmem>>, vector<18x32x4xf32>,
    %c0_3 = arith.constant 0 : index
    %c0_4 = arith.constant 0 : index
    %c0_5 = arith.constant 0 : index
    %c0_6 = arith.constant 0 : index
    %8 = vector.load %arg2[%c0_3, %c0_4, %c0_5, %c0_6] : memref<1x16x16x4xf32, #tpu.memory_space<vmem>>, vector<1x16x16x4xf32>
    %9 = vector.shape_cast %8 : vector<1x16x16x4xf32> to vector<16x16x4xf32>
    %c1 = arith.constant 1 : index
    %c8 = arith.constant 8 : index
    %c0_7 = arith.constant 0 : index
    %10 = vector.load %arg16[%c1, %c8, %c0_7] : memref<18x32x4xf32, #tpu.memory_space<vmem>>, vector<16x16x4xf32>
    tpu.vector_store %arg16[%c1, %c8, %c0_7], %9 {strides = array<i32>} : memref<18x32x4xf32, #tpu.memory_space<vmem>>, vector<16x16x4xf32>,
    %c0_8 = arith.constant 0 : index
    %c7 = arith.constant 7 : index
    %c0_9 = arith.constant 0 : index
    %c0_10 = arith.constant 0 : index
    %11 = vector.load %arg3[%c0_8, %c7, %c0_9, %c0_10] : memref<1x8x16x4xf32, #tpu.memory_space<vmem>>, vector<1x1x16x4xf32>
    %12 = vector.shape_cast %11 : vector<1x1x16x4xf32> to vector<1x16x4xf32>
    %13 = vector.broadcast %2 : f32 to vector<1x16x4xf32>
    %14 = arith.mulf %12, %13 : vector<1x16x4xf32>
    %c0_11 = arith.constant 0 : index
    %c8_12 = arith.constant 8 : index
    %c0_13 = arith.constant 0 : index
    %15 = vector.load %arg16[%c0_11, %c8_12, %c0_13] : memref<18x32x4xf32, #tpu.memory_space<vmem>>, vector<1x16x4xf32>
    tpu.vector_store %arg16[%c0_11, %c8_12, %c0_13], %14 {strides = array<i32>} : memref<18x32x4xf32, #tpu.memory_space<vmem>>, vector<1x16x4xf32>,
    %c0_14 = arith.constant 0 : index
    %c0_15 = arith.constant 0 : index
    %c0_16 = arith.constant 0 : index
    %c0_17 = arith.constant 0 : index
    %16 = vector.load %arg4[%c0_14, %c0_15, %c0_16, %c0_17] : memref<1x8x16x4xf32, #tpu.memory_space<vmem>>, vector<1x1x16x4xf32>
    %17 = vector.shape_cast %16 : vector<1x1x16x4xf32> to vector<1x16x4xf32>
    %18 = vector.broadcast %5 : f32 to vector<1x16x4xf32>
    %19 = arith.mulf %17, %18 : vector<1x16x4xf32>
    %c17 = arith.constant 17 : index
    %c8_18 = arith.constant 8 : index
    %c0_19 = arith.constant 0 : index
    %20 = vector.load %arg16[%c17, %c8_18, %c0_19] : memref<18x32x4xf32, #tpu.memory_space<vmem>>, vector<1x16x4xf32>
    tpu.vector_store %arg16[%c17, %c8_18, %c0_19], %19 {strides = array<i32>} : memref<18x32x4xf32, #tpu.memory_space<vmem>>, vector<1x16x4xf32>,
    %cst_20 = arith.constant 0.000000e+00 : f32
    %21 = vector.broadcast %cst_20 : f32 to vector<18x32x4xf32>
    %c0_21 = arith.constant 0 : index
    %c0_22 = arith.constant 0 : index
    %c0_23 = arith.constant 0 : index
    %22 = vector.load %arg17[%c0_21, %c0_22, %c0_23] : memref<18x32x4xf32, #tpu.memory_space<vmem>>, vector<18x32x4xf32>
    tpu.vector_store %arg17[%c0_21, %c0_22, %c0_23], %21 {strides = array<i32>} : memref<18x32x4xf32, #tpu.memory_space<vmem>>, vector<18x32x4xf32>,
    %c0_24 = arith.constant 0 : index
    %c0_25 = arith.constant 0 : index
    %c0_26 = arith.constant 0 : index
    %c0_27 = arith.constant 0 : index
    %23 = vector.load %arg5[%c0_24, %c0_25, %c0_26, %c0_27] : memref<1x16x16x4xf32, #tpu.memory_space<vmem>>, vector<1x16x16x4xf32>
    %24 = vector.shape_cast %23 : vector<1x16x16x4xf32> to vector<16x16x4xf32>
    %c1_28 = arith.constant 1 : index
    %c8_29 = arith.constant 8 : index
    %c0_30 = arith.constant 0 : index
    %25 = vector.load %arg17[%c1_28, %c8_29, %c0_30] : memref<18x32x4xf32, #tpu.memory_space<vmem>>, vector<16x16x4xf32>
    tpu.vector_store %arg17[%c1_28, %c8_29, %c0_30], %24 {strides = array<i32>} : memref<18x32x4xf32, #tpu.memory_space<vmem>>, vector<16x16x4xf32>,
    %c0_31 = arith.constant 0 : index
    %c7_32 = arith.constant 7 : index
    %c0_33 = arith.constant 0 : index
    %c0_34 = arith.constant 0 : index
    %26 = vector.load %arg6[%c0_31, %c7_32, %c0_33, %c0_34] : memref<1x8x16x4xf32, #tpu.memory_space<vmem>>, vector<1x1x16x4xf32>
    %27 = vector.shape_cast %26 : vector<1x1x16x4xf32> to vector<1x16x4xf32>
    %28 = vector.broadcast %2 : f32 to vector<1x16x4xf32>
    %29 = arith.mulf %27, %28 : vector<1x16x4xf32>
    %c0_35 = arith.constant 0 : index
    %c8_36 = arith.constant 8 : index
    %c0_37 = arith.constant 0 : index
    %30 = vector.load %arg17[%c0_35, %c8_36, %c0_37] : memref<18x32x4xf32, #tpu.memory_space<vmem>>, vector<1x16x4xf32>
    tpu.vector_store %arg17[%c0_35, %c8_36, %c0_37], %29 {strides = array<i32>} : memref<18x32x4xf32, #tpu.memory_space<vmem>>, vector<1x16x4xf32>,
    %c0_38 = arith.constant 0 : index
    %c0_39 = arith.constant 0 : index
    %c0_40 = arith.constant 0 : index
    %c0_41 = arith.constant 0 : index
    %31 = vector.load %arg7[%c0_38, %c0_39, %c0_40, %c0_41] : memref<1x8x16x4xf32, #tpu.memory_space<vmem>>, vector<1x1x16x4xf32>
    %32 = vector.shape_cast %31 : vector<1x1x16x4xf32> to vector<1x16x4xf32>
    %33 = vector.broadcast %5 : f32 to vector<1x16x4xf32>
    %34 = arith.mulf %32, %33 : vector<1x16x4xf32>
    %c17_42 = arith.constant 17 : index
    %c8_43 = arith.constant 8 : index
    %c0_44 = arith.constant 0 : index
    %35 = vector.load %arg17[%c17_42, %c8_43, %c0_44] : memref<18x32x4xf32, #tpu.memory_space<vmem>>, vector<1x16x4xf32>
    tpu.vector_store %arg17[%c17_42, %c8_43, %c0_44], %34 {strides = array<i32>} : memref<18x32x4xf32, #tpu.memory_space<vmem>>, vector<1x16x4xf32>,
    %cst_45 = arith.constant 0.000000e+00 : f32
    %36 = vector.broadcast %cst_45 : f32 to vector<16x16x4xf32>
    %c0_46 = arith.constant 0 : index
    %c7_47 = arith.constant 7 : index
    %c0_48 = arith.constant 0 : index
    %37 = vector.load %arg16[%c0_46, %c7_47, %c0_48] : memref<18x32x4xf32, #tpu.memory_space<vmem>>, vector<16x16x4xf32>
    %c0_49 = arith.constant 0 : index
    %c0_50 = arith.constant 0 : index
    %38 = vector.load %arg8[%c0_49, %c0_50] : memref<9x4xf32, #tpu.memory_space<vmem>>, vector<1x4xf32>
    %39 = vector.shape_cast %38 : vector<1x4xf32> to vector<4xf32>
    %40 = vector.shape_cast %39 : vector<4xf32> to vector<1x1x4xf32>
    %41 = vector.broadcast %40 : vector<1x1x4xf32> to vector<16x16x4xf32>
    %42 = arith.mulf %37, %41 : vector<16x16x4xf32>
    %43 = arith.addf %36, %42 : vector<16x16x4xf32>
    %c0_51 = arith.constant 0 : index
    %c8_52 = arith.constant 8 : index
    %c0_53 = arith.constant 0 : index
    %44 = vector.load %arg16[%c0_51, %c8_52, %c0_53] : memref<18x32x4xf32, #tpu.memory_space<vmem>>, vector<16x16x4xf32>
    %c1_54 = arith.constant 1 : index
    %c0_55 = arith.constant 0 : index
    %45 = vector.load %arg8[%c1_54, %c0_55] : memref<9x4xf32, #tpu.memory_space<vmem>>, vector<1x4xf32>
    %46 = vector.shape_cast %45 : vector<1x4xf32> to vector<4xf32>
    %47 = vector.shape_cast %46 : vector<4xf32> to vector<1x1x4xf32>
    %48 = vector.broadcast %47 : vector<1x1x4xf32> to vector<16x16x4xf32>
    %49 = arith.mulf %44, %48 : vector<16x16x4xf32>
    %50 = arith.addf %43, %49 : vector<16x16x4xf32>
    %c0_56 = arith.constant 0 : index
    %c9 = arith.constant 9 : index
    %c0_57 = arith.constant 0 : index
    %51 = vector.load %arg16[%c0_56, %c9, %c0_57] : memref<18x32x4xf32, #tpu.memory_space<vmem>>, vector<16x16x4xf32>
    %c2 = arith.constant 2 : index
    %c0_58 = arith.constant 0 : index
    %52 = vector.load %arg8[%c2, %c0_58] : memref<9x4xf32, #tpu.memory_space<vmem>>, vector<1x4xf32>
    %53 = vector.shape_cast %52 : vector<1x4xf32> to vector<4xf32>
    %54 = vector.shape_cast %53 : vector<4xf32> to vector<1x1x4xf32>
    %55 = vector.broadcast %54 : vector<1x1x4xf32> to vector<16x16x4xf32>
    %56 = arith.mulf %51, %55 : vector<16x16x4xf32>
    %57 = arith.addf %50, %56 : vector<16x16x4xf32>
    %c1_59 = arith.constant 1 : index
    %c7_60 = arith.constant 7 : index
    %c0_61 = arith.constant 0 : index
    %58 = vector.load %arg16[%c1_59, %c7_60, %c0_61] : memref<18x32x4xf32, #tpu.memory_space<vmem>>, vector<16x16x4xf32>
    %c3 = arith.constant 3 : index
    %c0_62 = arith.constant 0 : index
    %59 = vector.load %arg8[%c3, %c0_62] : memref<9x4xf32, #tpu.memory_space<vmem>>, vector<1x4xf32>
    %60 = vector.shape_cast %59 : vector<1x4xf32> to vector<4xf32>
    %61 = vector.shape_cast %60 : vector<4xf32> to vector<1x1x4xf32>
    %62 = vector.broadcast %61 : vector<1x1x4xf32> to vector<16x16x4xf32>
    %63 = arith.mulf %58, %62 : vector<16x16x4xf32>
    %64 = arith.addf %57, %63 : vector<16x16x4xf32>
    %c1_63 = arith.constant 1 : index
    %c8_64 = arith.constant 8 : index
    %c0_65 = arith.constant 0 : index
    %65 = vector.load %arg16[%c1_63, %c8_64, %c0_65] : memref<18x32x4xf32, #tpu.memory_space<vmem>>, vector<16x16x4xf32>
    %c4 = arith.constant 4 : index
    %c0_66 = arith.constant 0 : index
    %66 = vector.load %arg8[%c4, %c0_66] : memref<9x4xf32, #tpu.memory_space<vmem>>, vector<1x4xf32>
    %67 = vector.shape_cast %66 : vector<1x4xf32> to vector<4xf32>
    %68 = vector.shape_cast %67 : vector<4xf32> to vector<1x1x4xf32>
    %69 = vector.broadcast %68 : vector<1x1x4xf32> to vector<16x16x4xf32>
    %70 = arith.mulf %65, %69 : vector<16x16x4xf32>
    %71 = arith.addf %64, %70 : vector<16x16x4xf32>
    %c1_67 = arith.constant 1 : index
    %c9_68 = arith.constant 9 : index
    %c0_69 = arith.constant 0 : index
    %72 = vector.load %arg16[%c1_67, %c9_68, %c0_69] : memref<18x32x4xf32, #tpu.memory_space<vmem>>, vector<16x16x4xf32>
    %c5 = arith.constant 5 : index
    %c0_70 = arith.constant 0 : index
    %73 = vector.load %arg8[%c5, %c0_70] : memref<9x4xf32, #tpu.memory_space<vmem>>, vector<1x4xf32>
    %74 = vector.shape_cast %73 : vector<1x4xf32> to vector<4xf32>
    %75 = vector.shape_cast %74 : vector<4xf32> to vector<1x1x4xf32>
    %76 = vector.broadcast %75 : vector<1x1x4xf32> to vector<16x16x4xf32>
    %77 = arith.mulf %72, %76 : vector<16x16x4xf32>
    %78 = arith.addf %71, %77 : vector<16x16x4xf32>
    %c2_71 = arith.constant 2 : index
    %c7_72 = arith.constant 7 : index
    %c0_73 = arith.constant 0 : index
    %79 = vector.load %arg16[%c2_71, %c7_72, %c0_73] : memref<18x32x4xf32, #tpu.memory_space<vmem>>, vector<16x16x4xf32>
    %c6 = arith.constant 6 : index
    %c0_74 = arith.constant 0 : index
    %80 = vector.load %arg8[%c6, %c0_74] : memref<9x4xf32, #tpu.memory_space<vmem>>, vector<1x4xf32>
    %81 = vector.shape_cast %80 : vector<1x4xf32> to vector<4xf32>
    %82 = vector.shape_cast %81 : vector<4xf32> to vector<1x1x4xf32>
    %83 = vector.broadcast %82 : vector<1x1x4xf32> to vector<16x16x4xf32>
    %84 = arith.mulf %79, %83 : vector<16x16x4xf32>
    %85 = arith.addf %78, %84 : vector<16x16x4xf32>
    %c2_75 = arith.constant 2 : index
    %c8_76 = arith.constant 8 : index
    %c0_77 = arith.constant 0 : index
    %86 = vector.load %arg16[%c2_75, %c8_76, %c0_77] : memref<18x32x4xf32, #tpu.memory_space<vmem>>, vector<16x16x4xf32>
    %c7_78 = arith.constant 7 : index
    %c0_79 = arith.constant 0 : index
    %87 = vector.load %arg8[%c7_78, %c0_79] : memref<9x4xf32, #tpu.memory_space<vmem>>, vector<1x4xf32>
    %88 = vector.shape_cast %87 : vector<1x4xf32> to vector<4xf32>
    %89 = vector.shape_cast %88 : vector<4xf32> to vector<1x1x4xf32>
    %90 = vector.broadcast %89 : vector<1x1x4xf32> to vector<16x16x4xf32>
    %91 = arith.mulf %86, %90 : vector<16x16x4xf32>
    %92 = arith.addf %85, %91 : vector<16x16x4xf32>
    %c2_80 = arith.constant 2 : index
    %c9_81 = arith.constant 9 : index
    %c0_82 = arith.constant 0 : index
    %93 = vector.load %arg16[%c2_80, %c9_81, %c0_82] : memref<18x32x4xf32, #tpu.memory_space<vmem>>, vector<16x16x4xf32>
    %c8_83 = arith.constant 8 : index
    %c0_84 = arith.constant 0 : index
    %94 = vector.load %arg8[%c8_83, %c0_84] : memref<9x4xf32, #tpu.memory_space<vmem>>, vector<1x4xf32>
    %95 = vector.shape_cast %94 : vector<1x4xf32> to vector<4xf32>
    %96 = vector.shape_cast %95 : vector<4xf32> to vector<1x1x4xf32>
    %97 = vector.broadcast %96 : vector<1x1x4xf32> to vector<16x16x4xf32>
    %98 = arith.mulf %93, %97 : vector<16x16x4xf32>
    %99 = arith.addf %92, %98 : vector<16x16x4xf32>
    %c0_85 = arith.constant 0 : index
    %c0_86 = arith.constant 0 : index
    %100 = vector.load %arg9[%c0_85, %c0_86] : memref<1x4xf32, #tpu.memory_space<vmem>>, vector<1x4xf32>
    %101 = vector.shape_cast %100 : vector<1x4xf32> to vector<4xf32>
    %102 = vector.shape_cast %101 : vector<4xf32> to vector<1x1x4xf32>
    %103 = vector.broadcast %102 : vector<1x1x4xf32> to vector<16x16x4xf32>
    %104 = arith.addf %99, %103 : vector<16x16x4xf32>
    %cst_87 = arith.constant 0.000000e+00 : f32
    %105 = vector.broadcast %cst_87 : f32 to vector<16x16x4xf32>
    %106 = arith.maximumf %104, %105 : vector<16x16x4xf32>
    %107 = vector.shape_cast %106 : vector<16x16x4xf32> to vector<256x4xf32>
    %cst_88 = arith.constant 0.000000e+00 : f32
    %108 = vector.broadcast %cst_88 : f32 to vector<16x16x4xf32>
    %c0_89 = arith.constant 0 : index
    %c7_90 = arith.constant 7 : index
    %c0_91 = arith.constant 0 : index
    %109 = vector.load %arg17[%c0_89, %c7_90, %c0_91] : memref<18x32x4xf32, #tpu.memory_space<vmem>>, vector<16x16x4xf32>
    %c0_92 = arith.constant 0 : index
    %c0_93 = arith.constant 0 : index
    %110 = vector.load %arg11[%c0_92, %c0_93] : memref<9x4xf32, #tpu.memory_space<vmem>>, vector<1x4xf32>
    %111 = vector.shape_cast %110 : vector<1x4xf32> to vector<4xf32>
    %112 = vector.shape_cast %111 : vector<4xf32> to vector<1x1x4xf32>
    %113 = vector.broadcast %112 : vector<1x1x4xf32> to vector<16x16x4xf32>
    %114 = arith.mulf %109, %113 : vector<16x16x4xf32>
    %115 = arith.addf %108, %114 : vector<16x16x4xf32>
    %c0_94 = arith.constant 0 : index
    %c8_95 = arith.constant 8 : index
    %c0_96 = arith.constant 0 : index
    %116 = vector.load %arg17[%c0_94, %c8_95, %c0_96] : memref<18x32x4xf32, #tpu.memory_space<vmem>>, vector<16x16x4xf32>
    %c1_97 = arith.constant 1 : index
    %c0_98 = arith.constant 0 : index
    %117 = vector.load %arg11[%c1_97, %c0_98] : memref<9x4xf32, #tpu.memory_space<vmem>>, vector<1x4xf32>
    %118 = vector.shape_cast %117 : vector<1x4xf32> to vector<4xf32>
    %119 = vector.shape_cast %118 : vector<4xf32> to vector<1x1x4xf32>
    %120 = vector.broadcast %119 : vector<1x1x4xf32> to vector<16x16x4xf32>
    %121 = arith.mulf %116, %120 : vector<16x16x4xf32>
    %122 = arith.addf %115, %121 : vector<16x16x4xf32>
    %c0_99 = arith.constant 0 : index
    %c9_100 = arith.constant 9 : index
    %c0_101 = arith.constant 0 : index
    %123 = vector.load %arg17[%c0_99, %c9_100, %c0_101] : memref<18x32x4xf32, #tpu.memory_space<vmem>>, vector<16x16x4xf32>
    %c2_102 = arith.constant 2 : index
    %c0_103 = arith.constant 0 : index
    %124 = vector.load %arg11[%c2_102, %c0_103] : memref<9x4xf32, #tpu.memory_space<vmem>>, vector<1x4xf32>
    %125 = vector.shape_cast %124 : vector<1x4xf32> to vector<4xf32>
    %126 = vector.shape_cast %125 : vector<4xf32> to vector<1x1x4xf32>
    %127 = vector.broadcast %126 : vector<1x1x4xf32> to vector<16x16x4xf32>
    %128 = arith.mulf %123, %127 : vector<16x16x4xf32>
    %129 = arith.addf %122, %128 : vector<16x16x4xf32>
    %c1_104 = arith.constant 1 : index
    %c7_105 = arith.constant 7 : index
    %c0_106 = arith.constant 0 : index
    %130 = vector.load %arg17[%c1_104, %c7_105, %c0_106] : memref<18x32x4xf32, #tpu.memory_space<vmem>>, vector<16x16x4xf32>
    %c3_107 = arith.constant 3 : index
    %c0_108 = arith.constant 0 : index
    %131 = vector.load %arg11[%c3_107, %c0_108] : memref<9x4xf32, #tpu.memory_space<vmem>>, vector<1x4xf32>
    %132 = vector.shape_cast %131 : vector<1x4xf32> to vector<4xf32>
    %133 = vector.shape_cast %132 : vector<4xf32> to vector<1x1x4xf32>
    %134 = vector.broadcast %133 : vector<1x1x4xf32> to vector<16x16x4xf32>
    %135 = arith.mulf %130, %134 : vector<16x16x4xf32>
    %136 = arith.addf %129, %135 : vector<16x16x4xf32>
    %c1_109 = arith.constant 1 : index
    %c8_110 = arith.constant 8 : index
    %c0_111 = arith.constant 0 : index
    %137 = vector.load %arg17[%c1_109, %c8_110, %c0_111] : memref<18x32x4xf32, #tpu.memory_space<vmem>>, vector<16x16x4xf32>
    %c4_112 = arith.constant 4 : index
    %c0_113 = arith.constant 0 : index
    %138 = vector.load %arg11[%c4_112, %c0_113] : memref<9x4xf32, #tpu.memory_space<vmem>>, vector<1x4xf32>
    %139 = vector.shape_cast %138 : vector<1x4xf32> to vector<4xf32>
    %140 = vector.shape_cast %139 : vector<4xf32> to vector<1x1x4xf32>
    %141 = vector.broadcast %140 : vector<1x1x4xf32> to vector<16x16x4xf32>
    %142 = arith.mulf %137, %141 : vector<16x16x4xf32>
    %143 = arith.addf %136, %142 : vector<16x16x4xf32>
    %c1_114 = arith.constant 1 : index
    %c9_115 = arith.constant 9 : index
    %c0_116 = arith.constant 0 : index
    %144 = vector.load %arg17[%c1_114, %c9_115, %c0_116] : memref<18x32x4xf32, #tpu.memory_space<vmem>>, vector<16x16x4xf32>
    %c5_117 = arith.constant 5 : index
    %c0_118 = arith.constant 0 : index
    %145 = vector.load %arg11[%c5_117, %c0_118] : memref<9x4xf32, #tpu.memory_space<vmem>>, vector<1x4xf32>
    %146 = vector.shape_cast %145 : vector<1x4xf32> to vector<4xf32>
    %147 = vector.shape_cast %146 : vector<4xf32> to vector<1x1x4xf32>
    %148 = vector.broadcast %147 : vector<1x1x4xf32> to vector<16x16x4xf32>
    %149 = arith.mulf %144, %148 : vector<16x16x4xf32>
    %150 = arith.addf %143, %149 : vector<16x16x4xf32>
    %c2_119 = arith.constant 2 : index
    %c7_120 = arith.constant 7 : index
    %c0_121 = arith.constant 0 : index
    %151 = vector.load %arg17[%c2_119, %c7_120, %c0_121] : memref<18x32x4xf32, #tpu.memory_space<vmem>>, vector<16x16x4xf32>
    %c6_122 = arith.constant 6 : index
    %c0_123 = arith.constant 0 : index
    %152 = vector.load %arg11[%c6_122, %c0_123] : memref<9x4xf32, #tpu.memory_space<vmem>>, vector<1x4xf32>
    %153 = vector.shape_cast %152 : vector<1x4xf32> to vector<4xf32>
    %154 = vector.shape_cast %153 : vector<4xf32> to vector<1x1x4xf32>
    %155 = vector.broadcast %154 : vector<1x1x4xf32> to vector<16x16x4xf32>
    %156 = arith.mulf %151, %155 : vector<16x16x4xf32>
    %157 = arith.addf %150, %156 : vector<16x16x4xf32>
    %c2_124 = arith.constant 2 : index
    %c8_125 = arith.constant 8 : index
    %c0_126 = arith.constant 0 : index
    %158 = vector.load %arg17[%c2_124, %c8_125, %c0_126] : memref<18x32x4xf32, #tpu.memory_space<vmem>>, vector<16x16x4xf32>
    %c7_127 = arith.constant 7 : index
    %c0_128 = arith.constant 0 : index
    %159 = vector.load %arg11[%c7_127, %c0_128] : memref<9x4xf32, #tpu.memory_space<vmem>>, vector<1x4xf32>
    %160 = vector.shape_cast %159 : vector<1x4xf32> to vector<4xf32>
    %161 = vector.shape_cast %160 : vector<4xf32> to vector<1x1x4xf32>
    %162 = vector.broadcast %161 : vector<1x1x4xf32> to vector<16x16x4xf32>
    %163 = arith.mulf %158, %162 : vector<16x16x4xf32>
    %164 = arith.addf %157, %163 : vector<16x16x4xf32>
    %c2_129 = arith.constant 2 : index
    %c9_130 = arith.constant 9 : index
    %c0_131 = arith.constant 0 : index
    %165 = vector.load %arg17[%c2_129, %c9_130, %c0_131] : memref<18x32x4xf32, #tpu.memory_space<vmem>>, vector<16x16x4xf32>
    %c8_132 = arith.constant 8 : index
    %c0_133 = arith.constant 0 : index
    %166 = vector.load %arg11[%c8_132, %c0_133] : memref<9x4xf32, #tpu.memory_space<vmem>>, vector<1x4xf32>
    %167 = vector.shape_cast %166 : vector<1x4xf32> to vector<4xf32>
    %168 = vector.shape_cast %167 : vector<4xf32> to vector<1x1x4xf32>
    %169 = vector.broadcast %168 : vector<1x1x4xf32> to vector<16x16x4xf32>
    %170 = arith.mulf %165, %169 : vector<16x16x4xf32>
    %171 = arith.addf %164, %170 : vector<16x16x4xf32>
    %c0_134 = arith.constant 0 : index
    %c0_135 = arith.constant 0 : index
    %172 = vector.load %arg12[%c0_134, %c0_135] : memref<1x4xf32, #tpu.memory_space<vmem>>, vector<1x4xf32>
    %173 = vector.shape_cast %172 : vector<1x4xf32> to vector<4xf32>
    %174 = vector.shape_cast %173 : vector<4xf32> to vector<1x1x4xf32>
    %175 = vector.broadcast %174 : vector<1x1x4xf32> to vector<16x16x4xf32>
    %176 = arith.addf %171, %175 : vector<16x16x4xf32>
    %cst_136 = arith.constant 0.000000e+00 : f32
    %177 = vector.broadcast %cst_136 : f32 to vector<16x16x4xf32>
    %178 = arith.maximumf %176, %177 : vector<16x16x4xf32>
    %179 = vector.shape_cast %178 : vector<16x16x4xf32> to vector<256x4xf32>
    %c0_137 = arith.constant 0 : index
    %c0_138 = arith.constant 0 : index
    %180 = vector.load %arg10[%c0_137, %c0_138] : memref<4x4xf32, #tpu.memory_space<vmem>>, vector<4x4xf32>
    %cst_139 = arith.constant dense<0.000000e+00> : vector<256x4xf32>
    %181 = tpu.matmul %107, %180, %cst_139 {dimension_numbers = #tpu.dot_dimension_numbers<[1], [0], [0], [1], [0, 0, 1, 1], [], []>} : vector<256x4xf32>, vector<4x4xf32>, vector<256x4xf32> -> vector<256x4xf32>
    %c0_140 = arith.constant 0 : index
    %c0_141 = arith.constant 0 : index
    %182 = vector.load %arg13[%c0_140, %c0_141] : memref<4x4xf32, #tpu.memory_space<vmem>>, vector<4x4xf32>
    %cst_142 = arith.constant dense<0.000000e+00> : vector<256x4xf32>
    %183 = tpu.matmul %179, %182, %cst_142 {dimension_numbers = #tpu.dot_dimension_numbers<[1], [0], [0], [1], [0, 0, 1, 1], [], []>} : vector<256x4xf32>, vector<4x4xf32>, vector<256x4xf32> -> vector<256x4xf32>
    %184 = arith.addf %181, %183 : vector<256x4xf32>
    %c0_143 = arith.constant 0 : index
    %c0_144 = arith.constant 0 : index
    %185 = vector.load %arg14[%c0_143, %c0_144] : memref<1x4xf32, #tpu.memory_space<vmem>>, vector<1x4xf32>
    %186 = vector.shape_cast %185 : vector<1x4xf32> to vector<4xf32>
    %187 = vector.shape_cast %186 : vector<4xf32> to vector<1x4xf32>
    %188 = vector.broadcast %187 : vector<1x4xf32> to vector<256x4xf32>
    %189 = arith.addf %184, %188 : vector<256x4xf32>
    %cst_145 = arith.constant 0.000000e+00 : f32
    %190 = vector.broadcast %cst_145 : f32 to vector<256x4xf32>
    %191 = arith.maximumf %189, %190 : vector<256x4xf32>
    %192 = vector.shape_cast %191 : vector<256x4xf32> to vector<16x16x4xf32>
    %c0_146 = arith.constant 0 : index
    %c0_147 = arith.constant 0 : index
    %c0_148 = arith.constant 0 : index
    %c0_149 = arith.constant 0 : index
    %193 = vector.load %arg15[%c0_146, %c0_147, %c0_148, %c0_149] : memref<1x16x16x4xf32, #tpu.memory_space<vmem>>, vector<1x16x16x4xf32>
    %194 = vector.shape_cast %193 : vector<1x16x16x4xf32> to vector<16x16x4xf32>
    %195 = vector.shape_cast %192 : vector<16x16x4xf32> to vector<1x16x16x4xf32>
    tpu.vector_store %arg15[%c0_146, %c0_147, %c0_148, %c0_149], %195 {strides = array<i32>} : memref<1x16x16x4xf32, #tpu.memory_space<vmem>>, vector<1x16x16x4xf32>,
    return
  }
  func.func @transform_0(%arg0: i32, %arg1: i32) -> (i32, i32, i32, i32) {
    %c0_i32 = arith.constant 0 : i32
    %c0_i32_0 = arith.constant 0 : i32
    %c0_i32_1 = arith.constant 0 : i32
    return %arg0, %arg1, %c0_i32, %c0_i32_0 : i32, i32, i32, i32
  }
  func.func @transform_1(%arg0: i32, %arg1: i32) -> (i32, i32, i32, i32) {
    %c2_i32 = arith.constant 2 : i32
    %0 = arith.muli %arg1, %c2_i32 : i32
    %c1_i32 = arith.constant 1 : i32
    %1 = arith.subi %0, %c1_i32 : i32
    %c0_i32 = arith.constant 0 : i32
    %2 = arith.maxsi %1, %c0_i32 : i32
    %c0_i32_0 = arith.constant 0 : i32
    %c0_i32_1 = arith.constant 0 : i32
    %c0_i32_2 = arith.constant 0 : i32
    return %arg0, %2, %c0_i32_0, %c0_i32_1 : i32, i32, i32, i32
  }
  func.func @transform_2(%arg0: i32, %arg1: i32) -> (i32, i32, i32, i32) {
    %c1_i32 = arith.constant 1 : i32
    %0 = arith.addi %arg1, %c1_i32 : i32
    %c2_i32 = arith.constant 2 : i32
    %1 = arith.muli %0, %c2_i32 : i32
    %c1_i32_0 = arith.constant 1 : i32
    %2 = arith.minsi %1, %c1_i32_0 : i32
    %c0_i32 = arith.constant 0 : i32
    %c0_i32_1 = arith.constant 0 : i32
    %c0_i32_2 = arith.constant 0 : i32
    return %arg0, %2, %c0_i32, %c0_i32_1 : i32, i32, i32, i32
  }
  func.func @transform_3(%arg0: i32, %arg1: i32) -> (i32, i32, i32, i32) {
    %c0_i32 = arith.constant 0 : i32
    %c0_i32_0 = arith.constant 0 : i32
    %c0_i32_1 = arith.constant 0 : i32
    return %arg0, %arg1, %c0_i32, %c0_i32_0 : i32, i32, i32, i32
  }
  func.func @transform_4(%arg0: i32, %arg1: i32) -> (i32, i32, i32, i32) {
    %c2_i32 = arith.constant 2 : i32
    %0 = arith.muli %arg1, %c2_i32 : i32
    %c1_i32 = arith.constant 1 : i32
    %1 = arith.subi %0, %c1_i32 : i32
    %c0_i32 = arith.constant 0 : i32
    %2 = arith.maxsi %1, %c0_i32 : i32
    %c0_i32_0 = arith.constant 0 : i32
    %c0_i32_1 = arith.constant 0 : i32
    %c0_i32_2 = arith.constant 0 : i32
    return %arg0, %2, %c0_i32_0, %c0_i32_1 : i32, i32, i32, i32
  }
  func.func @transform_5(%arg0: i32, %arg1: i32) -> (i32, i32, i32, i32) {
    %c1_i32 = arith.constant 1 : i32
    %0 = arith.addi %arg1, %c1_i32 : i32
    %c2_i32 = arith.constant 2 : i32
    %1 = arith.muli %0, %c2_i32 : i32
    %c1_i32_0 = arith.constant 1 : i32
    %2 = arith.minsi %1, %c1_i32_0 : i32
    %c0_i32 = arith.constant 0 : i32
    %c0_i32_1 = arith.constant 0 : i32
    %c0_i32_2 = arith.constant 0 : i32
    return %arg0, %2, %c0_i32, %c0_i32_1 : i32, i32, i32, i32
  }
  func.func @transform_6(%arg0: i32, %arg1: i32) -> (i32, i32) {
    %c0_i32 = arith.constant 0 : i32
    %c0_i32_0 = arith.constant 0 : i32
    %c0_i32_1 = arith.constant 0 : i32
    return %c0_i32, %c0_i32_0 : i32, i32
  }
  func.func @transform_7(%arg0: i32, %arg1: i32) -> (i32, i32) {
    %c0_i32 = arith.constant 0 : i32
    %c0_i32_0 = arith.constant 0 : i32
    %c0_i32_1 = arith.constant 0 : i32
    return %c0_i32, %c0_i32_0 : i32, i32
  }
  func.func @transform_8(%arg0: i32, %arg1: i32) -> (i32, i32) {
    %c0_i32 = arith.constant 0 : i32
    %c0_i32_0 = arith.constant 0 : i32
    %c0_i32_1 = arith.constant 0 : i32
    return %c0_i32, %c0_i32_0 : i32, i32
  }
  func.func @transform_9(%arg0: i32, %arg1: i32) -> (i32, i32) {
    %c0_i32 = arith.constant 0 : i32
    %c0_i32_0 = arith.constant 0 : i32
    %c0_i32_1 = arith.constant 0 : i32
    return %c0_i32, %c0_i32_0 : i32, i32
  }
  func.func @transform_10(%arg0: i32, %arg1: i32) -> (i32, i32) {
    %c0_i32 = arith.constant 0 : i32
    %c0_i32_0 = arith.constant 0 : i32
    %c0_i32_1 = arith.constant 0 : i32
    return %c0_i32, %c0_i32_0 : i32, i32
  }
  func.func @transform_11(%arg0: i32, %arg1: i32) -> (i32, i32) {
    %c0_i32 = arith.constant 0 : i32
    %c0_i32_0 = arith.constant 0 : i32
    %c0_i32_1 = arith.constant 0 : i32
    return %c0_i32, %c0_i32_0 : i32, i32
  }
  func.func @transform_12(%arg0: i32, %arg1: i32) -> (i32, i32) {
    %c0_i32 = arith.constant 0 : i32
    %c0_i32_0 = arith.constant 0 : i32
    %c0_i32_1 = arith.constant 0 : i32
    return %c0_i32, %c0_i32_0 : i32, i32
  }
  func.func @transform_13(%arg0: i32, %arg1: i32) -> (i32, i32, i32, i32) {
    %c0_i32 = arith.constant 0 : i32
    %c0_i32_0 = arith.constant 0 : i32
    %c0_i32_1 = arith.constant 0 : i32
    return %arg0, %arg1, %c0_i32, %c0_i32_0 : i32, i32, i32, i32
  }
}

module attributes {stable_mosaic.version = 11 : i64} {
  func.func @kernel(%arg0: i32, %arg1: i32, %arg2: memref<1x8x8x8xf32, #tpu.memory_space<vmem>>, %arg3: memref<4x8xf32, #tpu.memory_space<vmem>>, %arg4: memref<1x8xf32, #tpu.memory_space<vmem>>, %arg5: memref<8x4xf32, #tpu.memory_space<vmem>>, %arg6: memref<1x4xf32, #tpu.memory_space<vmem>>, %arg7: memref<1x8x2x8x8xf32, #tpu.memory_space<vmem>>) attributes {dimension_semantics = [#tpu.dimension_semantics<parallel>, #tpu.dimension_semantics<parallel>], iteration_bounds = array<i64: 2, 1>, scalar_prefetch = 0 : i64, scratch_operands = 0 : i64, tpu.core_type = #tpu.core_type<tc>, window_params = [{transform_indices = @transform_0, window_bounds = array<i64: 1, 8, 8, 8>}, {pipeline_mode = #tpu.pipeline_mode<synchronous>, transform_indices = @transform_1, window_bounds = array<i64: 4, 8>}, {pipeline_mode = #tpu.pipeline_mode<synchronous>, transform_indices = @transform_2, window_bounds = array<i64: 1, 8>}, {pipeline_mode = #tpu.pipeline_mode<synchronous>, transform_indices = @transform_3, window_bounds = array<i64: 8, 4>}, {pipeline_mode = #tpu.pipeline_mode<synchronous>, transform_indices = @transform_4, window_bounds = array<i64: 1, 4>}, {transform_indices = @transform_5, window_bounds = array<i64: 1, 8, 2, 8, 8>}]} {
    %c0 = arith.constant 0 : index
    %c0_0 = arith.constant 0 : index
    %c0_1 = arith.constant 0 : index
    %c0_2 = arith.constant 0 : index
    %0 = vector.load %arg2[%c0, %c0_0, %c0_1, %c0_2] : memref<1x8x8x8xf32, #tpu.memory_space<vmem>>, vector<1x8x8x8xf32>
    %1 = vector.shape_cast %0 : vector<1x8x8x8xf32> to vector<8x8x8xf32>
    %c0_3 = arith.constant 0 : index
    %c0_4 = arith.constant 0 : index
    %2 = vector.load %arg4[%c0_3, %c0_4] : memref<1x8xf32, #tpu.memory_space<vmem>>, vector<1x8xf32>
    %3 = vector.shape_cast %2 : vector<1x8xf32> to vector<8xf32>
    %c0_5 = arith.constant 0 : index
    %c0_6 = arith.constant 0 : index
    %4 = vector.load %arg5[%c0_5, %c0_6] : memref<8x4xf32, #tpu.memory_space<vmem>>, vector<8x4xf32>
    %c0_7 = arith.constant 0 : index
    %c0_8 = arith.constant 0 : index
    %5 = vector.load %arg6[%c0_7, %c0_8] : memref<1x4xf32, #tpu.memory_space<vmem>>, vector<1x4xf32>
    %6 = vector.shape_cast %5 : vector<1x4xf32> to vector<4xf32>
    %c0_9 = arith.constant 0 : index
    %c0_10 = arith.constant 0 : index
    %7 = vector.load %arg3[%c0_9, %c0_10] : memref<4x8xf32, #tpu.memory_space<vmem>>, vector<1x8xf32>
    %8 = vector.shape_cast %7 : vector<1x8xf32> to vector<8xf32>
    %9 = vector.shape_cast %8 : vector<8xf32> to vector<1x1x8xf32>
    %10 = vector.broadcast %9 : vector<1x1x8xf32> to vector<8x8x8xf32>
    %11 = arith.mulf %1, %10 : vector<8x8x8xf32>
    %12 = vector.shape_cast %3 : vector<8xf32> to vector<1x1x8xf32>
    %13 = vector.broadcast %12 : vector<1x1x8xf32> to vector<8x8x8xf32>
    %14 = arith.addf %11, %13 : vector<8x8x8xf32>
    %cst = arith.constant 0.000000e+00 : f32
    %15 = vector.broadcast %cst : f32 to vector<8x8x8xf32>
    %16 = arith.maximumf %14, %15 : vector<8x8x8xf32>
    %17 = vector.shape_cast %16 : vector<8x8x8xf32> to vector<64x8xf32>
    %cst_11 = arith.constant dense<0.000000e+00> : vector<64x4xf32>
    %18 = tpu.matmul %17, %4, %cst_11 {dimension_numbers = #tpu.dot_dimension_numbers<[1], [0], [0], [1], [0, 0, 1, 1], [], []>} : vector<64x8xf32>, vector<8x4xf32>, vector<64x4xf32> -> vector<64x4xf32>
    %19 = vector.shape_cast %6 : vector<4xf32> to vector<1x4xf32>
    %20 = vector.broadcast %19 : vector<1x4xf32> to vector<64x4xf32>
    %21 = arith.addf %18, %20 : vector<64x4xf32>
    %cst_12 = arith.constant 0.000000e+00 : f32
    %22 = vector.broadcast %cst_12 : f32 to vector<64x4xf32>
    %23 = arith.maximumf %21, %22 : vector<64x4xf32>
    %24 = vector.shape_cast %23 : vector<64x4xf32> to vector<8x8x4xf32>
    %c1 = arith.constant 1 : index
    %c0_13 = arith.constant 0 : index
    %25 = vector.load %arg3[%c1, %c0_13] : memref<4x8xf32, #tpu.memory_space<vmem>>, vector<1x8xf32>
    %26 = vector.shape_cast %25 : vector<1x8xf32> to vector<8xf32>
    %27 = vector.shape_cast %26 : vector<8xf32> to vector<1x1x8xf32>
    %28 = vector.broadcast %27 : vector<1x1x8xf32> to vector<8x8x8xf32>
    %29 = arith.mulf %1, %28 : vector<8x8x8xf32>
    %30 = vector.shape_cast %3 : vector<8xf32> to vector<1x1x8xf32>
    %31 = vector.broadcast %30 : vector<1x1x8xf32> to vector<8x8x8xf32>
    %32 = arith.addf %29, %31 : vector<8x8x8xf32>
    %cst_14 = arith.constant 0.000000e+00 : f32
    %33 = vector.broadcast %cst_14 : f32 to vector<8x8x8xf32>
    %34 = arith.maximumf %32, %33 : vector<8x8x8xf32>
    %35 = vector.shape_cast %34 : vector<8x8x8xf32> to vector<64x8xf32>
    %cst_15 = arith.constant dense<0.000000e+00> : vector<64x4xf32>
    %36 = tpu.matmul %35, %4, %cst_15 {dimension_numbers = #tpu.dot_dimension_numbers<[1], [0], [0], [1], [0, 0, 1, 1], [], []>} : vector<64x8xf32>, vector<8x4xf32>, vector<64x4xf32> -> vector<64x4xf32>
    %37 = vector.shape_cast %6 : vector<4xf32> to vector<1x4xf32>
    %38 = vector.broadcast %37 : vector<1x4xf32> to vector<64x4xf32>
    %39 = arith.addf %36, %38 : vector<64x4xf32>
    %cst_16 = arith.constant 0.000000e+00 : f32
    %40 = vector.broadcast %cst_16 : f32 to vector<64x4xf32>
    %41 = arith.maximumf %39, %40 : vector<64x4xf32>
    %42 = vector.shape_cast %41 : vector<64x4xf32> to vector<8x8x4xf32>
    %43 = tpu.concatenate %24, %42 in 2 : vector<8x8x4xf32>, vector<8x8x4xf32> -> vector<8x8x8xf32>
    %c0_17 = arith.constant 0 : index
    %c0_18 = arith.constant 0 : index
    %c0_19 = arith.constant 0 : index
    %c0_20 = arith.constant 0 : index
    %c0_21 = arith.constant 0 : index
    %44 = vector.load %arg7[%c0_17, %c0_18, %c0_19, %c0_20, %c0_21] : memref<1x8x2x8x8xf32, #tpu.memory_space<vmem>>, vector<1x8x1x8x8xf32>
    %45 = vector.shape_cast %44 : vector<1x8x1x8x8xf32> to vector<8x8x8xf32>
    %46 = vector.shape_cast %43 : vector<8x8x8xf32> to vector<1x8x1x8x8xf32>
    tpu.vector_store %arg7[%c0_17, %c0_18, %c0_19, %c0_20, %c0_21], %46 {strides = array<i32>} : memref<1x8x2x8x8xf32, #tpu.memory_space<vmem>>, vector<1x8x1x8x8xf32>,
    %c2 = arith.constant 2 : index
    %c0_22 = arith.constant 0 : index
    %47 = vector.load %arg3[%c2, %c0_22] : memref<4x8xf32, #tpu.memory_space<vmem>>, vector<1x8xf32>
    %48 = vector.shape_cast %47 : vector<1x8xf32> to vector<8xf32>
    %49 = vector.shape_cast %48 : vector<8xf32> to vector<1x1x8xf32>
    %50 = vector.broadcast %49 : vector<1x1x8xf32> to vector<8x8x8xf32>
    %51 = arith.mulf %1, %50 : vector<8x8x8xf32>
    %52 = vector.shape_cast %3 : vector<8xf32> to vector<1x1x8xf32>
    %53 = vector.broadcast %52 : vector<1x1x8xf32> to vector<8x8x8xf32>
    %54 = arith.addf %51, %53 : vector<8x8x8xf32>
    %cst_23 = arith.constant 0.000000e+00 : f32
    %55 = vector.broadcast %cst_23 : f32 to vector<8x8x8xf32>
    %56 = arith.maximumf %54, %55 : vector<8x8x8xf32>
    %57 = vector.shape_cast %56 : vector<8x8x8xf32> to vector<64x8xf32>
    %cst_24 = arith.constant dense<0.000000e+00> : vector<64x4xf32>
    %58 = tpu.matmul %57, %4, %cst_24 {dimension_numbers = #tpu.dot_dimension_numbers<[1], [0], [0], [1], [0, 0, 1, 1], [], []>} : vector<64x8xf32>, vector<8x4xf32>, vector<64x4xf32> -> vector<64x4xf32>
    %59 = vector.shape_cast %6 : vector<4xf32> to vector<1x4xf32>
    %60 = vector.broadcast %59 : vector<1x4xf32> to vector<64x4xf32>
    %61 = arith.addf %58, %60 : vector<64x4xf32>
    %cst_25 = arith.constant 0.000000e+00 : f32
    %62 = vector.broadcast %cst_25 : f32 to vector<64x4xf32>
    %63 = arith.maximumf %61, %62 : vector<64x4xf32>
    %64 = vector.shape_cast %63 : vector<64x4xf32> to vector<8x8x4xf32>
    %c3 = arith.constant 3 : index
    %c0_26 = arith.constant 0 : index
    %65 = vector.load %arg3[%c3, %c0_26] : memref<4x8xf32, #tpu.memory_space<vmem>>, vector<1x8xf32>
    %66 = vector.shape_cast %65 : vector<1x8xf32> to vector<8xf32>
    %67 = vector.shape_cast %66 : vector<8xf32> to vector<1x1x8xf32>
    %68 = vector.broadcast %67 : vector<1x1x8xf32> to vector<8x8x8xf32>
    %69 = arith.mulf %1, %68 : vector<8x8x8xf32>
    %70 = vector.shape_cast %3 : vector<8xf32> to vector<1x1x8xf32>
    %71 = vector.broadcast %70 : vector<1x1x8xf32> to vector<8x8x8xf32>
    %72 = arith.addf %69, %71 : vector<8x8x8xf32>
    %cst_27 = arith.constant 0.000000e+00 : f32
    %73 = vector.broadcast %cst_27 : f32 to vector<8x8x8xf32>
    %74 = arith.maximumf %72, %73 : vector<8x8x8xf32>
    %75 = vector.shape_cast %74 : vector<8x8x8xf32> to vector<64x8xf32>
    %cst_28 = arith.constant dense<0.000000e+00> : vector<64x4xf32>
    %76 = tpu.matmul %75, %4, %cst_28 {dimension_numbers = #tpu.dot_dimension_numbers<[1], [0], [0], [1], [0, 0, 1, 1], [], []>} : vector<64x8xf32>, vector<8x4xf32>, vector<64x4xf32> -> vector<64x4xf32>
    %77 = vector.shape_cast %6 : vector<4xf32> to vector<1x4xf32>
    %78 = vector.broadcast %77 : vector<1x4xf32> to vector<64x4xf32>
    %79 = arith.addf %76, %78 : vector<64x4xf32>
    %cst_29 = arith.constant 0.000000e+00 : f32
    %80 = vector.broadcast %cst_29 : f32 to vector<64x4xf32>
    %81 = arith.maximumf %79, %80 : vector<64x4xf32>
    %82 = vector.shape_cast %81 : vector<64x4xf32> to vector<8x8x4xf32>
    %83 = tpu.concatenate %64, %82 in 2 : vector<8x8x4xf32>, vector<8x8x4xf32> -> vector<8x8x8xf32>
    %c0_30 = arith.constant 0 : index
    %c0_31 = arith.constant 0 : index
    %c1_32 = arith.constant 1 : index
    %c0_33 = arith.constant 0 : index
    %c0_34 = arith.constant 0 : index
    %84 = vector.load %arg7[%c0_30, %c0_31, %c1_32, %c0_33, %c0_34] : memref<1x8x2x8x8xf32, #tpu.memory_space<vmem>>, vector<1x8x1x8x8xf32>
    %85 = vector.shape_cast %84 : vector<1x8x1x8x8xf32> to vector<8x8x8xf32>
    %86 = vector.shape_cast %83 : vector<8x8x8xf32> to vector<1x8x1x8x8xf32>
    tpu.vector_store %arg7[%c0_30, %c0_31, %c1_32, %c0_33, %c0_34], %86 {strides = array<i32>} : memref<1x8x2x8x8xf32, #tpu.memory_space<vmem>>, vector<1x8x1x8x8xf32>,
    return
  }
  func.func @transform_0(%arg0: i32, %arg1: i32) -> (i32, i32, i32, i32) {
    %c0_i32 = arith.constant 0 : i32
    %c0_i32_0 = arith.constant 0 : i32
    %c0_i32_1 = arith.constant 0 : i32
    return %arg0, %arg1, %c0_i32, %c0_i32_0 : i32, i32, i32, i32
  }
  func.func @transform_1(%arg0: i32, %arg1: i32) -> (i32, i32) {
    %c0_i32 = arith.constant 0 : i32
    %c0_i32_0 = arith.constant 0 : i32
    %c0_i32_1 = arith.constant 0 : i32
    return %c0_i32, %c0_i32_0 : i32, i32
  }
  func.func @transform_2(%arg0: i32, %arg1: i32) -> (i32, i32) {
    %c0_i32 = arith.constant 0 : i32
    %c0_i32_0 = arith.constant 0 : i32
    %c0_i32_1 = arith.constant 0 : i32
    return %c0_i32, %c0_i32_0 : i32, i32
  }
  func.func @transform_3(%arg0: i32, %arg1: i32) -> (i32, i32) {
    %c0_i32 = arith.constant 0 : i32
    %c0_i32_0 = arith.constant 0 : i32
    %c0_i32_1 = arith.constant 0 : i32
    return %c0_i32, %c0_i32_0 : i32, i32
  }
  func.func @transform_4(%arg0: i32, %arg1: i32) -> (i32, i32) {
    %c0_i32 = arith.constant 0 : i32
    %c0_i32_0 = arith.constant 0 : i32
    %c0_i32_1 = arith.constant 0 : i32
    return %c0_i32, %c0_i32_0 : i32, i32
  }
  func.func @transform_5(%arg0: i32, %arg1: i32) -> (i32, i32, i32, i32, i32) {
    %c0_i32 = arith.constant 0 : i32
    %c0_i32_0 = arith.constant 0 : i32
    %c0_i32_1 = arith.constant 0 : i32
    %c0_i32_2 = arith.constant 0 : i32
    return %arg0, %arg1, %c0_i32, %c0_i32_0, %c0_i32_1 : i32, i32, i32, i32, i32
  }
}

</mosaic_0001>

<llo_original>
// kernel: upblock_mobile_forward.2
$region0: #{upblock_mobile_forward.2}
  #allocation0 [shape = 'u32[]', space=smem, size = 0x4, offset = 0x4, fixed_abs, tag = 'smem constant byte address 0x4 - core index']
  #allocation1 [shape = 'u32[72,128]{1,0:T(1,128)}', space=vmem, size = 0x9000, scoped, tag = 'internal scratch']
  %s0 = inlined_call_operand.vmem [shape: f32[2,8,8,8], index: 0, kind: input, shape index: {}]
  %s1 = inlined_call_operand.vmem [shape: f32[4,8], index: 1, kind: input, shape index: {}]
  %s2 = inlined_call_operand.vmem [shape: f32[1,8], index: 2, kind: input, shape index: {}]
  %s3 = inlined_call_operand.vmem [shape: f32[8,4], index: 3, kind: input, shape index: {}]
  %s4 = inlined_call_operand.vmem [shape: f32[1,4], index: 4, kind: input, shape index: {}]
  %s5 = inlined_call_operand.vmem [shape: f32[2,8,2,8,8], index: 5, kind: output, shape index: {}]
  %s6 = sld [smem:[#allocation0]]
  $region53: #{upblock_mobile_forward.2} parent=0
    _
  %s8 = ssub.s32 1, %s6
  %s9 = scalar_select 0, %s8, %s6
  loop: start=0, step=1, limit=4
  $region2: #{upblock_mobile_forward.2} parent=0 // loop_pre_header
    _
  $region3: #{upblock_mobile_forward.2} parent=0 // loop_header
    %s11 = sphi 0, %s15
    %p12 = scmp.ge.s32.totalorder %s11, 4
    %s18 = sphi 0, %s30
    %s19 = sphi 0, %s26
    %s20 = sphi 0, %s18
    %s21 = sphi 0, %s19
    %s22 = sphi 0, %s20
    %s23 = sphi 0, %s21
    %s35 = sphi 0, %s37
    %s38 = sphi 0, %s35
    %s39 = sphi 0, %s38
    %s55 = sphi 0, %s39
    %s59 = sphi 0, %s59
    %s61 = sphi 0, %s59
    %s62 = sphi 0, %s61
    %s76 = sphi 0, %s62
    %s80 = sphi 0, %s80
    %s82 = sphi 0, %s80
    %s83 = sphi 0, %s82
    %s97 = sphi 0, %s83
    %s101 = sphi 0, %s101
    %s103 = sphi 0, %s101
    %s104 = sphi 0, %s103
    %s118 = sphi 0, %s104
    %s122 = sphi 0, %s122
    %s124 = sphi 0, %s122
    %s125 = sphi 0, %s124
    %s139 = sphi 0, %s125
    %s147 = sphi 0, %s149
    %s150 = sphi 0, %s147
    %s151 = sphi 0, %s150
    %s167 = sphi 0, %s151
  $region4: #{upblock_mobile_forward.2} parent=0 // loop_header_branch
    %14 = sbr.rel (%p12) target = $region8
  $region5: #{upblock_mobile_forward.2} parent=0 // loop_body
    %s16 = ssub.s32 %s11, 1
    %s17 = ssub.s32 %s11, 2
    %s24 = sadd.s32 1, %s19
    %p25 = scmp.ge.s32.totalorder %s24, 1
    %s26 = scalar_select %p25, 0, %s24
    %s27 = sadd.s32 1, %s18
    %s28 = scalar_select %p25, %s27, %s18
    %p29 = scmp.ge.s32.totalorder %s28, 2
    %s30 = scalar_select %p29, 0, %s28
    %s31 = ssub.s32 %s18, %s30
    %s32 = ssub.s32 %s19, %s26
    %s33 = sor.u32 %s31, %s32
    %p34 = scmp.eq.s32.totalorder %s33, 0
    %s36 = sadd.s32 %s35, 1
    %s37 = scalar_select %p34, %s35, %s36
    %p40 = pneg %p34
    %p41 = scmp.eq.s32.totalorder %s11, 1
    %p42 = por %p40, %p41
    %p43 = scmp.ne.s32.totalorder %s35, %s38
    %p44 = scmp.eq.s32.totalorder %s11, 0
    %p45 = por %p43, %p44
    %p46 = scmp.ne.s32.totalorder %s35, %s38
    %p47 = scmp.eq.s32.totalorder %s16, 1
    %p48 = por %p46, %p47
    %p49 = scmp.ne.s32.totalorder %s38, %s39
    %p50 = scmp.eq.s32.totalorder %s16, 0
    %p51 = por %p49, %p50
    %p52 = scmp.ne.s32.totalorder %s38, %s39
    %p53 = scmp.eq.s32.totalorder %s17, 1
    %p54 = por %p52, %p53
    %p56 = scmp.ne.s32.totalorder %s39, %s55
    %p57 = scmp.eq.s32.totalorder %s17, 0
    %p58 = por %p56, %p57
    %s60 = sadd.s32 %s59, 1
    %p63 = scmp.eq.s32.totalorder %s11, 1
    %p64 = scmp.ne.s32.totalorder %s59, %s61
    %p65 = scmp.eq.s32.totalorder %s11, 0
    %p66 = por %p64, %p65
    %p67 = scmp.ne.s32.totalorder %s59, %s61
    %p68 = scmp.eq.s32.totalorder %s16, 1
    %p69 = por %p67, %p68
    %p70 = scmp.ne.s32.totalorder %s61, %s62
    %p71 = scmp.eq.s32.totalorder %s16, 0
    %p72 = por %p70, %p71
    %p73 = scmp.ne.s32.totalorder %s61, %s62
    %p74 = scmp.eq.s32.totalorder %s17, 1
    %p75 = por %p73, %p74
    %p77 = scmp.ne.s32.totalorder %s62, %s76
    %p78 = scmp.eq.s32.totalorder %s17, 0
    %p79 = por %p77, %p78
    %s81 = sadd.s32 %s80, 1
    %p84 = scmp.eq.s32.totalorder %s11, 1
    %p85 = scmp.ne.s32.totalorder %s80, %s82
    %p86 = scmp.eq.s32.totalorder %s11, 0
    %p87 = por %p85, %p86
    %p88 = scmp.ne.s32.totalorder %s80, %s82
    %p89 = scmp.eq.s32.totalorder %s16, 1
    %p90 = por %p88, %p89
    %p91 = scmp.ne.s32.totalorder %s82, %s83
    %p92 = scmp.eq.s32.totalorder %s16, 0
    %p93 = por %p91, %p92
    %p94 = scmp.ne.s32.totalorder %s82, %s83
    %p95 = scmp.eq.s32.totalorder %s17, 1
    %p96 = por %p94, %p95
    %p98 = scmp.ne.s32.totalorder %s83, %s97
    %p99 = scmp.eq.s32.totalorder %s17, 0
    %p100 = por %p98, %p99
    %s102 = sadd.s32 %s101, 1
    %p105 = scmp.eq.s32.totalorder %s11, 1
    %p106 = scmp.ne.s32.totalorder %s101, %s103
    %p107 = scmp.eq.s32.totalorder %s11, 0
    %p108 = por %p106, %p107
    %p109 = scmp.ne.s32.totalorder %s101, %s103
    %p110 = scmp.eq.s32.totalorder %s16, 1
    %p111 = por %p109, %p110
    %p112 = scmp.ne.s32.totalorder %s103, %s104
    %p113 = scmp.eq.s32.totalorder %s16, 0
    %p114 = por %p112, %p113
    %p115 = scmp.ne.s32.totalorder %s103, %s104
    %p116 = scmp.eq.s32.totalorder %s17, 1
    %p117 = por %p115, %p116
    %p119 = scmp.ne.s32.totalorder %s104, %s118
    %p120 = scmp.eq.s32.totalorder %s17, 0
    %p121 = por %p119, %p120
    %s123 = sadd.s32 %s122, 1
    %p126 = scmp.eq.s32.totalorder %s11, 1
    %p127 = scmp.ne.s32.totalorder %s122, %s124
    %p128 = scmp.eq.s32.totalorder %s11, 0
    %p129 = por %p127, %p128
    %p130 = scmp.ne.s32.totalorder %s122, %s124
    %p131 = scmp.eq.s32.totalorder %s16, 1
    %p132 = por %p130, %p131
    %p133 = scmp.ne.s32.totalorder %s124, %s125
    %p134 = scmp.eq.s32.totalorder %s16, 0
    %p135 = por %p133, %p134
    %p136 = scmp.ne.s32.totalorder %s124, %s125
    %p137 = scmp.eq.s32.totalorder %s17, 1
    %p138 = por %p136, %p137
    %p140 = scmp.ne.s32.totalorder %s125, %s139
    %p141 = scmp.eq.s32.totalorder %s17, 0
    %p142 = por %p140, %p141
    %s143 = ssub.s32 %s18, %s30
    %s144 = ssub.s32 %s19, %s26
    %s145 = sor.u32 %s143, %s144
    %p146 = scmp.eq.s32.totalorder %s145, 0
    %s148 = sadd.s32 %s147, 1
    %s149 = scalar_select %p146, %s147, %s148
    %p152 = pneg %p146
    %p153 = scmp.eq.s32.totalorder %s11, 1
    %p154 = por %p152, %p153
    %p155 = scmp.ne.s32.totalorder %s147, %s150
    %p156 = scmp.eq.s32.totalorder %s11, 0
    %p157 = por %p155, %p156
    %p158 = scmp.ne.s32.totalorder %s147, %s150
    %p159 = scmp.eq.s32.totalorder %s16, 1
    %p160 = por %p158, %p159
    %p161 = scmp.ne.s32.totalorder %s150, %s151
    %p162 = scmp.eq.s32.totalorder %s16, 0
    %p163 = por %p161, %p162
    %p164 = scmp.ne.s32.totalorder %s150, %s151
    %p165 = scmp.eq.s32.totalorder %s17, 1
    %p166 = por %p164, %p165
    %p168 = scmp.ne.s32.totalorder %s151, %s167
    %p169 = scmp.eq.s32.totalorder %s17, 0
    %p170 = por %p168, %p169
    %p171 = scmp.le.s32.totalorder 1, %s11
    %p172 = scmp.lt.s32.totalorder %s11, 3
    %p173 = pnand %p171, %p172
    %p174 = pneg %p173
    // Predicated region
    $region9: #{upblock_mobile_forward.2} parent=5 // pred_check
      _
    $region10: #{upblock_mobile_forward.2} parent=5 // pred_check_branch
      %176 = sbr.rel (%p173) target = $region12
    $region11: #{upblock_mobile_forward.2} parent=5 // pred_region
      %s177 = ssub.s32 %s11, 1
      // Predicated region
      $region13: #{upblock_mobile_forward.2} parent=11 // pred_check
        %p178 = pneg %p72
      $region14: #{upblock_mobile_forward.2} parent=11 // pred_check_branch
        %180 = sbr.rel (%p178) target = $region16
      $region15: #{upblock_mobile_forward.2} parent=11 // pred_region
        _
      $region16: #{upblock_mobile_forward.2} parent=11 // pred_fallthru
        _
      // Predicated region
      $region17: #{upblock_mobile_forward.2} parent=11 // pred_check
        %p181 = pneg %p93
      $region18: #{upblock_mobile_forward.2} parent=11 // pred_check_branch
        %183 = sbr.rel (%p181) target = $region20
      $region19: #{upblock_mobile_forward.2} parent=11 // pred_region
        _
      $region20: #{upblock_mobile_forward.2} parent=11 // pred_fallthru
        _
      // Predicated region
      $region21: #{upblock_mobile_forward.2} parent=11 // pred_check
        %p184 = pneg %p114
      $region22: #{upblock_mobile_forward.2} parent=11 // pred_check_branch
        %186 = sbr.rel (%p184) target = $region24
      $region23: #{upblock_mobile_forward.2} parent=11 // pred_region
        _
      $region24: #{upblock_mobile_forward.2} parent=11 // pred_fallthru
        _
      // Predicated region
      $region25: #{upblock_mobile_forward.2} parent=11 // pred_check
        %p187 = pneg %p135
      $region26: #{upblock_mobile_forward.2} parent=11 // pred_check_branch
        %189 = sbr.rel (%p187) target = $region28
      $region27: #{upblock_mobile_forward.2} parent=11 // pred_region
        _
      $region28: #{upblock_mobile_forward.2} parent=11 // pred_fallthru
        _
    $region12: #{upblock_mobile_forward.2} parent=5 // pred_fallthru
      _
    %p190 = scmp.lt.s32.totalorder %s11, 2
    // Predicated region
    $region29: #{upblock_mobile_forward.2} parent=5 // pred_check
      %p191 = pneg %p190
    $region30: #{upblock_mobile_forward.2} parent=5 // pred_check_branch
      %193 = sbr.rel (%p191) target = $region32
    $region31: #{upblock_mobile_forward.2} parent=5 // pred_region
      // Predicated region
      $region33: #{upblock_mobile_forward.2} parent=31 // pred_check
        %p194 = pneg %p45
      $region34: #{upblock_mobile_forward.2} parent=31 // pred_check_branch
        %196 = sbr.rel (%p194) target = $region36
      $region35: #{upblock_mobile_forward.2} parent=31 // pred_region
        %s197 = smul.u32 8, %s19
        %p198 = scmp.lt.s32.totalorder %s18, 1
        %s199 = scalar_select %p198, %s18, 1
        %p200 = scmp.lt.s32.totalorder %s197, 7
        %s201 = scalar_select %p200, %s197, 7
        %s202 = smul.addr %s199, 8
        %s203 = sadd.s32 %s201, %s202
        %s204 = smul.addr %s203, 8
        %s205 = scalar_lea.vmem %s0, %s204
        %s206 = smul.u32 8, %s19
      $region36: #{upblock_mobile_forward.2} parent=31 // pred_fallthru
        _
    $region32: #{upblock_mobile_forward.2} parent=5 // pred_fallthru
      _
    %p207 = scmp.le.s32.totalorder 1, %s11
    %p208 = scmp.lt.s32.totalorder %s11, 3
    %p209 = pnand %p207, %p208
    %p210 = pneg %p209
    // Predicated region
    $region37: #{upblock_mobile_forward.2} parent=5 // pred_check
      _
    $region38: #{upblock_mobile_forward.2} parent=5 // pred_check_branch
      %212 = sbr.rel (%p209) target = $region40
    $region39: #{upblock_mobile_forward.2} parent=5 // pred_region
      %s213 = ssub.s32 %s11, 1
      %s214 = smul.u32 8, %s21
      %p215 = scmp.lt.s32.totalorder %s20, 1
      %s216 = scalar_select %p215, %s20, 1
      %p217 = scmp.lt.s32.totalorder %s214, 7
      %s218 = scalar_select %p217, %s214, 7
      %s219 = smul.addr %s216, 8
      %s220 = sadd.s32 %s218, %s219
      %s221 = smul.addr %s220, 8
      %s222 = scalar_lea.vmem %s0, %s221
      %p223 = pneg %p51
      %p224 = pneg %p48
      %p225 = pneg %p72
      %p226 = pneg %p69
      %p227 = pneg %p93
      %p228 = pneg %p90
      %p229 = pneg %p114
      %p230 = pneg %p111
      %p231 = pneg %p135
      %p232 = pneg %p132
      %p233 = pneg %p163
      %p234 = pneg %p160
      %s235 = smul.u32 8, %s21
      %p236 = scmp.lt.s32.totalorder %s20, 1
      %s237 = scalar_select %p236, %s20, 1
      %p238 = scmp.lt.s32.totalorder %s235, 7
      %s239 = scalar_select %p238, %s235, 7
      %s240 = smul.addr %s239, 2
      %s241 = smul.addr %s237, 16
      %s242 = sadd.s32 %s240, %s241
      %s243 = smul.addr %s242, 8
      %s244 = scalar_lea.vmem %s5, %s243
      %s245 = smul.u32 8, %s21
      %p246 = scmp.lt.s32.totalorder %s20, 1
      %s247 = scalar_select %p246, %s20, 1
      %p248 = scmp.lt.s32.totalorder %s245, 7
      %s249 = scalar_select %p248, %s245, 7
      %s250 = smul.addr %s247, 8
      %s251 = sadd.s32 %s249, %s250
      %s252 = smul.addr %s251, 8
      %s253 = scalar_lea.vmem %s0, %s252
      %s254 = smul.u32 8, %s21
      %s255 = smul.u32 8, %s21
      %p256 = scmp.lt.s32.totalorder %s20, 1
      %s257 = scalar_select %p256, %s20, 1
      %p258 = scmp.lt.s32.totalorder %s255, 7
      %s259 = scalar_select %p258, %s255, 7
      %s260 = smul.addr %s259, 2
      %s261 = smul.addr %s257, 16
      %s262 = sadd.s32 %s260, %s261
      %s263 = smul.addr %s262, 8
      %s264 = scalar_lea.vmem %s5, %s263
      %s265 = smul.u32 8, %s21
      %v266 = vld [vmem:[%s253] sm:$0xff]
      %v267 = vld [vmem:[%s253 + $0x8] sm:$0xff]
      %v268 = vld [vmem:[%s253 + $0x10] sm:$0xff]
      %v269 = vld [vmem:[%s253 + $0x18] sm:$0xff]
      %v270 = vld [vmem:[%s253 + $0x20] sm:$0xff]
      %v271 = vld [vmem:[%s253 + $0x28] sm:$0xff]
      %v272 = vld [vmem:[%s253 + $0x30] sm:$0xff]
      %v273 = vld [vmem:[%s253 + $0x38] sm:$0xff]
      %v274 = vld [vmem:[%s2] sm:$0x1]
      %v275 = vld [vmem:[%s3] sm:$0xff]
      %v276 = vld [vmem:[%s4] sm:$0x1]
      %v277 = vld [vmem:[%s1] sm:$0x1]
      %v278 = vperm.slane %v277, 0
      %v279 = vmul.f32 %v266, %v278
      %v280 = vmul.f32 %v267, %v278
      %v281 = vmul.f32 %v268, %v278
      %v282 = vmul.f32 %v269, %v278
      %v283 = vmul.f32 %v270, %v278
      %v284 = vmul.f32 %v271, %v278
      %v285 = vmul.f32 %v272, %v278
      %v286 = vmul.f32 %v273, %v278
      %v288 = vperm.slane %v274, 0
      %v290 = vadd.f32 %v279, %v288
      %v291 = vadd.f32 %v280, %v288
      %v292 = vadd.f32 %v281, %v288
      %v293 = vadd.f32 %v282, %v288
      %v294 = vadd.f32 %v283, %v288
      %v295 = vadd.f32 %v284, %v288
      %v296 = vadd.f32 %v285, %v288
      %v297 = vadd.f32 %v286, %v288
      %v298 = vmax.f32 %v290, 0.0
      %v299 = vmax.f32 %v291, 0.0
      %v300 = vmax.f32 %v292, 0.0
      %v301 = vmax.f32 %v293, 0.0
      %v302 = vmax.f32 %v294, 0.0
      %v303 = vmax.f32 %v295, 0.0
      %v304 = vmax.f32 %v296, 0.0
      %v305 = vmax.f32 %v297, 0.0
      %v307 = vperm.slane %v276, 0
      %vm309 = vcmask 64512
      %v311 = vsel %vm309, %v298, 0
      %v314 = vsel %vm309, %v299, 0
      %v317 = vsel %vm309, %v300, 0
      %v320 = vsel %vm309, %v301, 0
      %v323 = vsel %vm309, %v302, 0
      %v326 = vsel %vm309, %v303, 0
      %v329 = vsel %vm309, %v304, 0
      %v332 = vsel %vm309, %v305, 0
      %334 = vmatpush.msra.mxu0 0.0
      %335 = vmatpush.msra.mxu0 0.0
      %336 = vmatpush.msra.mxu0 0.0
      %337 = vmatpush.msra.mxu0 0.0
      %338 = vmatpush.msra.mxu0 0.0
      %339 = vmatpush.msra.mxu0 0.0
      %340 = vmatpush.msra.mxu0 0.0
      %341 = vmatpush.msra.mxu0 0.0
      %342 = vmatpush.msra.mxu0 0.0
      %343 = vmatpush.msra.mxu0 0.0
      %344 = vmatpush.msra.mxu0 0.0
      %345 = vmatpush.msra.mxu0 0.0
      %346 = vmatpush.msra.mxu0 0.0
      %347 = vmatpush.msra.mxu0 0.0
      %348 = vmatpush.msra.mxu0 0.0
      %349 = vmatpush.msra.mxu0 %v275
      %350 = vmatmul.f32.gmra.mxu0 %v311
      %v351 = vpop.f32.mrf.mxu0
      %v352 = vadd.f32 %v307, %v351
      %353 = vmatmul.f32.gmra.mxu0 %v314
      %v354 = vpop.f32.mrf.mxu0
      %v355 = vadd.f32 %v307, %v354
      %356 = vmatmul.f32.gmra.mxu0 %v317
      %v357 = vpop.f32.mrf.mxu0
      %v358 = vadd.f32 %v307, %v357
      %359 = vmatmul.f32.gmra.mxu0 %v320
      %v360 = vpop.f32.mrf.mxu0
      %v361 = vadd.f32 %v307, %v360
      %362 = vmatmul.f32.gmra.mxu0 %v323
      %v363 = vpop.f32.mrf.mxu0
      %v364 = vadd.f32 %v307, %v363
      %365 = vmatmul.f32.gmra.mxu0 %v326
      %v366 = vpop.f32.mrf.mxu0
      %v367 = vadd.f32 %v307, %v366
      %368 = vmatmul.f32.gmra.mxu0 %v329
      %v369 = vpop.f32.mrf.mxu0
      %v370 = vadd.f32 %v307, %v369
      %371 = vmatmul.f32.gmra.mxu0 %v332
      %v372 = vpop.f32.mrf.mxu0
      %v373 = vadd.f32 %v307, %v372
      %374 = vdwg.mxu0
      %v375 = vmax.f32 %v352, 0.0
      %v376 = vmax.f32 %v355, 0.0
      %v377 = vmax.f32 %v358, 0.0
      %v378 = vmax.f32 %v361, 0.0
      %v379 = vmax.f32 %v364, 0.0
      %v380 = vmax.f32 %v367, 0.0
      %v381 = vmax.f32 %v370, 0.0
      %v382 = vmax.f32 %v373, 0.0
      %v383 = vld [vmem:[%s1 + $0x1] sm:$0x1]
      %v384 = vperm.slane %v383, 0
      %v385 = vmul.f32 %v266, %v384
      %v386 = vmul.f32 %v267, %v384
      %v387 = vmul.f32 %v268, %v384
      %v388 = vmul.f32 %v269, %v384
      %v389 = vmul.f32 %v270, %v384
      %v390 = vmul.f32 %v271, %v384
      %v391 = vmul.f32 %v272, %v384
      %v392 = vmul.f32 %v273, %v384
      %v393 = vadd.f32 %v385, %v288
      %v394 = vadd.f32 %v386, %v288
      %v395 = vadd.f32 %v387, %v288
      %v396 = vadd.f32 %v388, %v288
      %v397 = vadd.f32 %v389, %v288
      %v398 = vadd.f32 %v390, %v288
      %v399 = vadd.f32 %v391, %v288
      %v400 = vadd.f32 %v392, %v288
      %v401 = vmax.f32 %v393, 0.0
      %v402 = vmax.f32 %v394, 0.0
      %v403 = vmax.f32 %v395, 0.0
      %v404 = vmax.f32 %v396, 0.0
      %v405 = vmax.f32 %v397, 0.0
      %v406 = vmax.f32 %v398, 0.0
      %v407 = vmax.f32 %v399, 0.0
      %v408 = vmax.f32 %v400, 0.0
      %v410 = vsel %vm309, %v401, 0
      %v413 = vsel %vm309, %v402, 0
      %v416 = vsel %vm309, %v403, 0
      %v419 = vsel %vm309, %v404, 0
      %v422 = vsel %vm309, %v405, 0
      %v425 = vsel %vm309, %v406, 0
      %v428 = vsel %vm309, %v407, 0
      %v431 = vsel %vm309, %v408, 0
      %433 = vmatpush.msra.mxu0 0.0
      %434 = vmatpush.msra.mxu0 0.0
      %435 = vmatpush.msra.mxu0 0.0
      %436 = vmatpush.msra.mxu0 0.0
      %437 = vmatpush.msra.mxu0 0.0
      %438 = vmatpush.msra.mxu0 0.0
      %439 = vmatpush.msra.mxu0 0.0
      %440 = vmatpush.msra.mxu0 0.0
      %441 = vmatpush.msra.mxu0 0.0
      %442 = vmatpush.msra.mxu0 0.0
      %443 = vmatpush.msra.mxu0 0.0
      %444 = vmatpush.msra.mxu0 0.0
      %445 = vmatpush.msra.mxu0 0.0
      %446 = vmatpush.msra.mxu0 0.0
      %447 = vmatpush.msra.mxu0 0.0
      %448 = vmatpush.msra.mxu0 %v275
      %449 = vmatmul.f32.gmra.mxu0 %v410
      %v450 = vpop.f32.mrf.mxu0
      %v451 = vadd.f32 %v307, %v450
      %452 = vmatmul.f32.gmra.mxu0 %v413
      %v453 = vpop.f32.mrf.mxu0
      %v454 = vadd.f32 %v307, %v453
      %455 = vmatmul.f32.gmra.mxu0 %v416
      %v456 = vpop.f32.mrf.mxu0
      %v457 = vadd.f32 %v307, %v456
      %458 = vmatmul.f32.gmra.mxu0 %v419
      %v459 = vpop.f32.mrf.mxu0
      %v460 = vadd.f32 %v307, %v459
      %461 = vmatmul.f32.gmra.mxu0 %v422
      %v462 = vpop.f32.mrf.mxu0
      %v463 = vadd.f32 %v307, %v462
      %464 = vmatmul.f32.gmra.mxu0 %v425
      %v465 = vpop.f32.mrf.mxu0
      %v466 = vadd.f32 %v307, %v465
      %467 = vmatmul.f32.gmra.mxu0 %v428
      %v468 = vpop.f32.mrf.mxu0
      %v469 = vadd.f32 %v307, %v468
      %470 = vmatmul.f32.gmra.mxu0 %v431
      %v471 = vpop.f32.mrf.mxu0
      %v472 = vadd.f32 %v307, %v471
      %473 = vdwg.mxu0
      %v474 = vmax.f32 %v451, 0.0
      %v475 = vmax.f32 %v454, 0.0
      %v476 = vmax.f32 %v457, 0.0
      %v477 = vmax.f32 %v460, 0.0
      %v478 = vmax.f32 %v463, 0.0
      %v479 = vmax.f32 %v466, 0.0
      %v480 = vmax.f32 %v469, 0.0
      %v481 = vmax.f32 %v472, 0.0
      %490 = vrot.lane.b32.xlu0 %v474, 4
      %v491 = vpop.permute.xlu0 %490
      %492 = vrot.lane.b32.xlu0 %v475, 4
      %v493 = vpop.permute.xlu0 %492
      %494 = vrot.lane.b32.xlu0 %v476, 4
      %v495 = vpop.permute.xlu0 %494
      %496 = vrot.lane.b32.xlu0 %v477, 4
      %v497 = vpop.permute.xlu0 %496
      %498 = vrot.lane.b32.xlu0 %v478, 4
      %v499 = vpop.permute.xlu0 %498
      %500 = vrot.lane.b32.xlu0 %v479, 4
      %v501 = vpop.permute.xlu0 %500
      %502 = vrot.lane.b32.xlu0 %v480, 4
      %v503 = vpop.permute.xlu0 %502
      %504 = vrot.lane.b32.xlu0 %v481, 4
      %v505 = vpop.permute.xlu0 %504
      %vm514 = vcmask 31744
      %v515 = vsel %vm514, %v375, %v491
      %v516 = vsel %vm514, %v376, %v493
      %v517 = vsel %vm514, %v377, %v495
      %v518 = vsel %vm514, %v378, %v497
      %v519 = vsel %vm514, %v379, %v499
      %v520 = vsel %vm514, %v380, %v501
      %v521 = vsel %vm514, %v381, %v503
      %v522 = vsel %vm514, %v382, %v505
      %523 = vst.msk [vmem:[%s264] sm:$0xff] %vm309, %v515
      %524 = vst.msk [vmem:[%s264 + $0x10] sm:$0xff] %vm309, %v516
      %525 = vst.msk [vmem:[%s264 + $0x20] sm:$0xff] %vm309, %v517
      %526 = vst.msk [vmem:[%s264 + $0x30] sm:$0xff] %vm309, %v518
      %527 = vst.msk [vmem:[%s264 + $0x40] sm:$0xff] %vm309, %v519
      %528 = vst.msk [vmem:[%s264 + $0x50] sm:$0xff] %vm309, %v520
      %529 = vst.msk [vmem:[%s264 + $0x60] sm:$0xff] %vm309, %v521
      %530 = vst.msk [vmem:[%s264 + $0x70] sm:$0xff] %vm309, %v522
      %v531 = vld [vmem:[%s1 + $0x2] sm:$0x1]
      %v532 = vperm.slane %v531, 0
      %v533 = vmul.f32 %v266, %v532
      %v534 = vmul.f32 %v267, %v532
      %v535 = vmul.f32 %v268, %v532
      %v536 = vmul.f32 %v269, %v532
      %v537 = vmul.f32 %v270, %v532
      %v538 = vmul.f32 %v271, %v532
      %v539 = vmul.f32 %v272, %v532
      %v540 = vmul.f32 %v273, %v532
      %v541 = vadd.f32 %v533, %v288
      %v542 = vadd.f32 %v534, %v288
      %v543 = vadd.f32 %v535, %v288
      %v544 = vadd.f32 %v536, %v288
      %v545 = vadd.f32 %v537, %v288
      %v546 = vadd.f32 %v538, %v288
      %v547 = vadd.f32 %v539, %v288
      %v548 = vadd.f32 %v540, %v288
      %v549 = vmax.f32 %v541, 0.0
      %v550 = vmax.f32 %v542, 0.0
      %v551 = vmax.f32 %v543, 0.0
      %v552 = vmax.f32 %v544, 0.0
      %v553 = vmax.f32 %v545, 0.0
      %v554 = vmax.f32 %v546, 0.0
      %v555 = vmax.f32 %v547, 0.0
      %v556 = vmax.f32 %v548, 0.0
      %v558 = vsel %vm309, %v549, 0
      %v561 = vsel %vm309, %v550, 0
      %v564 = vsel %vm309, %v551, 0
      %v567 = vsel %vm309, %v552, 0
      %v570 = vsel %vm309, %v553, 0
      %v573 = vsel %vm309, %v554, 0
      %v576 = vsel %vm309, %v555, 0
      %v579 = vsel %vm309, %v556, 0
      %581 = vmatpush.msra.mxu0 0.0
      %582 = vmatpush.msra.mxu0 0.0
      %583 = vmatpush.msra.mxu0 0.0
      %584 = vmatpush.msra.mxu0 0.0
      %585 = vmatpush.msra.mxu0 0.0
      %586 = vmatpush.msra.mxu0 0.0
      %587 = vmatpush.msra.mxu0 0.0
      %588 = vmatpush.msra.mxu0 0.0
      %589 = vmatpush.msra.mxu0 0.0
      %590 = vmatpush.msra.mxu0 0.0
      %591 = vmatpush.msra.mxu0 0.0
      %592 = vmatpush.msra.mxu0 0.0
      %593 = vmatpush.msra.mxu0 0.0
      %594 = vmatpush.msra.mxu0 0.0
      %595 = vmatpush.msra.mxu0 0.0
      %596 = vmatpush.msra.mxu0 %v275
      %597 = vmatmul.f32.gmra.mxu0 %v558
      %v598 = vpop.f32.mrf.mxu0
      %v599 = vadd.f32 %v307, %v598
      %600 = vmatmul.f32.gmra.mxu0 %v561
      %v601 = vpop.f32.mrf.mxu0
      %v602 = vadd.f32 %v307, %v601
      %603 = vmatmul.f32.gmra.mxu0 %v564
      %v604 = vpop.f32.mrf.mxu0
      %v605 = vadd.f32 %v307, %v604
      %606 = vmatmul.f32.gmra.mxu0 %v567
      %v607 = vpop.f32.mrf.mxu0
      %v608 = vadd.f32 %v307, %v607
      %609 = vmatmul.f32.gmra.mxu0 %v570
      %v610 = vpop.f32.mrf.mxu0
      %v611 = vadd.f32 %v307, %v610
      %612 = vmatmul.f32.gmra.mxu0 %v573
      %v613 = vpop.f32.mrf.mxu0
      %v614 = vadd.f32 %v307, %v613
      %615 = vmatmul.f32.gmra.mxu0 %v576
      %v616 = vpop.f32.mrf.mxu0
      %v617 = vadd.f32 %v307, %v616
      %618 = vmatmul.f32.gmra.mxu0 %v579
      %v619 = vpop.f32.mrf.mxu0
      %v620 = vadd.f32 %v307, %v619
      %621 = vdwg.mxu0
      %v622 = vmax.f32 %v599, 0.0
      %v623 = vmax.f32 %v602, 0.0
      %v624 = vmax.f32 %v605, 0.0
      %v625 = vmax.f32 %v608, 0.0
      %v626 = vmax.f32 %v611, 0.0
      %v627 = vmax.f32 %v614, 0.0
      %v628 = vmax.f32 %v617, 0.0
      %v629 = vmax.f32 %v620, 0.0
      %v630 = vld [vmem:[%s1 + $0x3] sm:$0x1]
      %v631 = vperm.slane %v630, 0
      %v632 = vmul.f32 %v266, %v631
      %v633 = vmul.f32 %v267, %v631
      %v634 = vmul.f32 %v268, %v631
      %v635 = vmul.f32 %v269, %v631
      %v636 = vmul.f32 %v270, %v631
      %v637 = vmul.f32 %v271, %v631
      %v638 = vmul.f32 %v272, %v631
      %v639 = vmul.f32 %v273, %v631
      %v640 = vadd.f32 %v632, %v288
      %v641 = vadd.f32 %v633, %v288
      %v642 = vadd.f32 %v634, %v288
      %v643 = vadd.f32 %v635, %v288
      %v644 = vadd.f32 %v636, %v288
      %v645 = vadd.f32 %v637, %v288
      %v646 = vadd.f32 %v638, %v288
      %v647 = vadd.f32 %v639, %v288
      %v648 = vmax.f32 %v640, 0.0
      %v649 = vmax.f32 %v641, 0.0
      %v650 = vmax.f32 %v642, 0.0
      %v651 = vmax.f32 %v643, 0.0
      %v652 = vmax.f32 %v644, 0.0
      %v653 = vmax.f32 %v645, 0.0
      %v654 = vmax.f32 %v646, 0.0
      %v655 = vmax.f32 %v647, 0.0
      %v657 = vsel %vm309, %v648, 0
      %v660 = vsel %vm309, %v649, 0
      %v663 = vsel %vm309, %v650, 0
      %v666 = vsel %vm309, %v651, 0
      %v669 = vsel %vm309, %v652, 0
      %v672 = vsel %vm309, %v653, 0
      %v675 = vsel %vm309, %v654, 0
      %v678 = vsel %vm309, %v655, 0
      %680 = vmatpush.msra.mxu0 0.0
      %681 = vmatpush.msra.mxu0 0.0
      %682 = vmatpush.msra.mxu0 0.0
      %683 = vmatpush.msra.mxu0 0.0
      %684 = vmatpush.msra.mxu0 0.0
      %685 = vmatpush.msra.mxu0 0.0
      %686 = vmatpush.msra.mxu0 0.0
      %687 = vmatpush.msra.mxu0 0.0
      %688 = vmatpush.msra.mxu0 0.0
      %689 = vmatpush.msra.mxu0 0.0
      %690 = vmatpush.msra.mxu0 0.0
      %691 = vmatpush.msra.mxu0 0.0
      %692 = vmatpush.msra.mxu0 0.0
      %693 = vmatpush.msra.mxu0 0.0
      %694 = vmatpush.msra.mxu0 0.0
      %695 = vmatpush.msra.mxu0 %v275
      %696 = vmatmul.f32.gmra.mxu0 %v657
      %v697 = vpop.f32.mrf.mxu0
      %v698 = vadd.f32 %v307, %v697
      %699 = vmatmul.f32.gmra.mxu0 %v660
      %v700 = vpop.f32.mrf.mxu0
      %v701 = vadd.f32 %v307, %v700
      %702 = vmatmul.f32.gmra.mxu0 %v663
      %v703 = vpop.f32.mrf.mxu0
      %v704 = vadd.f32 %v307, %v703
      %705 = vmatmul.f32.gmra.mxu0 %v666
      %v706 = vpop.f32.mrf.mxu0
      %v707 = vadd.f32 %v307, %v706
      %708 = vmatmul.f32.gmra.mxu0 %v669
      %v709 = vpop.f32.mrf.mxu0
      %v710 = vadd.f32 %v307, %v709
      %711 = vmatmul.f32.gmra.mxu0 %v672
      %v712 = vpop.f32.mrf.mxu0
      %v713 = vadd.f32 %v307, %v712
      %714 = vmatmul.f32.gmra.mxu0 %v675
      %v715 = vpop.f32.mrf.mxu0
      %v716 = vadd.f32 %v307, %v715
      %717 = vmatmul.f32.gmra.mxu0 %v678
      %v718 = vpop.f32.mrf.mxu0
      %v719 = vadd.f32 %v307, %v718
      %720 = vdwg.mxu0
      %v721 = vmax.f32 %v698, 0.0
      %v722 = vmax.f32 %v701, 0.0
      %v723 = vmax.f32 %v704, 0.0
      %v724 = vmax.f32 %v707, 0.0
      %v725 = vmax.f32 %v710, 0.0
      %v726 = vmax.f32 %v713, 0.0
      %v727 = vmax.f32 %v716, 0.0
      %v728 = vmax.f32 %v719, 0.0
      %737 = vrot.lane.b32.xlu0 %v721, 4
      %v738 = vpop.permute.xlu0 %737
      %739 = vrot.lane.b32.xlu0 %v722, 4
      %v740 = vpop.permute.xlu0 %739
      %741 = vrot.lane.b32.xlu0 %v723, 4
      %v742 = vpop.permute.xlu0 %741
      %743 = vrot.lane.b32.xlu0 %v724, 4
      %v744 = vpop.permute.xlu0 %743
      %745 = vrot.lane.b32.xlu0 %v725, 4
      %v746 = vpop.permute.xlu0 %745
      %747 = vrot.lane.b32.xlu0 %v726, 4
      %v748 = vpop.permute.xlu0 %747
      %749 = vrot.lane.b32.xlu0 %v727, 4
      %v750 = vpop.permute.xlu0 %749
      %751 = vrot.lane.b32.xlu0 %v728, 4
      %v752 = vpop.permute.xlu0 %751
      %v761 = vsel %vm514, %v622, %v738
      %v762 = vsel %vm514, %v623, %v740
      %v763 = vsel %vm514, %v624, %v742
      %v764 = vsel %vm514, %v625, %v744
      %v765 = vsel %vm514, %v626, %v746
      %v766 = vsel %vm514, %v627, %v748
      %v767 = vsel %vm514, %v628, %v750
      %v768 = vsel %vm514, %v629, %v752
      %s769 = scalar_lea.vmem %s264, 8
      %770 = vst.msk [vmem:[%s769] sm:$0xff] %vm309, %v761
      %771 = vst.msk [vmem:[%s769 + $0x10] sm:$0xff] %vm309, %v762
      %772 = vst.msk [vmem:[%s769 + $0x20] sm:$0xff] %vm309, %v763
      %773 = vst.msk [vmem:[%s769 + $0x30] sm:$0xff] %vm309, %v764
      %774 = vst.msk [vmem:[%s769 + $0x40] sm:$0xff] %vm309, %v765
      %775 = vst.msk [vmem:[%s769 + $0x50] sm:$0xff] %vm309, %v766
      %776 = vst.msk [vmem:[%s769 + $0x60] sm:$0xff] %vm309, %v767
      %777 = vst.msk [vmem:[%s769 + $0x70] sm:$0xff] %vm309, %v768
      %s778 = smul.u32 8, %s21
      %p779 = scmp.lt.s32.totalorder %s20, 1
      %s780 = scalar_select %p779, %s20, 1
      %p781 = scmp.lt.s32.totalorder %s778, 7
      %s782 = scalar_select %p781, %s778, 7
      %s783 = smul.addr %s782, 2
      %s784 = smul.addr %s780, 16
      %s785 = sadd.s32 %s783, %s784
      %s786 = smul.addr %s785, 8
      %s787 = scalar_lea.vmem %s5, %s786
      // Predicated region
      $region41: #{upblock_mobile_forward.2} parent=39 // pred_check
        %p788 = pneg %p160
      $region42: #{upblock_mobile_forward.2} parent=39 // pred_check_branch
        %790 = sbr.rel (%p788) target = $region44
      $region43: #{upblock_mobile_forward.2} parent=39 // pred_region
        %s791 = smul.u32 8, %s21
      $region44: #{upblock_mobile_forward.2} parent=39 // pred_fallthru
        _
    $region40: #{upblock_mobile_forward.2} parent=5 // pred_fallthru
      _
    %p792 = scmp.le.s32.totalorder 2, %s11
    // Predicated region
    $region45: #{upblock_mobile_forward.2} parent=5 // pred_check
      %p793 = pneg %p792
    $region46: #{upblock_mobile_forward.2} parent=5 // pred_check_branch
      %795 = sbr.rel (%p793) target = $region48
    $region47: #{upblock_mobile_forward.2} parent=5 // pred_region
      %s796 = ssub.s32 %s11, 2
      // Predicated region
      $region49: #{upblock_mobile_forward.2} parent=47 // pred_check
        %p797 = pneg %p166
      $region50: #{upblock_mobile_forward.2} parent=47 // pred_check_branch
        %799 = sbr.rel (%p797) target = $region52
      $region51: #{upblock_mobile_forward.2} parent=47 // pred_region
        %s800 = smul.u32 8, %s23
        %p801 = scmp.lt.s32.totalorder %s22, 1
        %s802 = scalar_select %p801, %s22, 1
        %p803 = scmp.lt.s32.totalorder %s800, 7
        %s804 = scalar_select %p803, %s800, 7
        %s805 = smul.addr %s804, 2
        %s806 = smul.addr %s802, 16
        %s807 = sadd.s32 %s805, %s806
        %s808 = smul.addr %s807, 8
        %s809 = scalar_lea.vmem %s5, %s808
      $region52: #{upblock_mobile_forward.2} parent=47 // pred_fallthru
        _
    $region48: #{upblock_mobile_forward.2} parent=5 // pred_fallthru
      _
  $region6: #{upblock_mobile_forward.2} parent=0 // loop_footer
    %s15 = sadd.s32 1, %s11
  $region7: #{upblock_mobile_forward.2} parent=0 // loop_footer_branch
    %10 = sbr.rel target = $region3
  $region8: #{upblock_mobile_forward.2} parent=0 // loop_exit
    _

// kernel: upblock_mobile_forward.3
$region0: #{upblock_mobile_forward.3}
  #allocation0 [shape = 'u32[]', space=smem, size = 0x4, offset = 0x4, fixed_abs, tag = 'smem constant byte address 0x4 - core index']
  #allocation1 [shape = 'u32[72,128]{1,0:T(1,128)}', space=vmem, size = 0x9000, scoped, tag = 'internal scratch']
  #allocation2 [shape = 'f32[18,32,4]{2,1,0:T(8,128)}', space=vmem, size = 0x48000, scoped, tag = 'scratch operand']
  #allocation3 [shape = 'f32[18,32,4]{2,1,0:T(8,128)}', space=vmem, size = 0x48000, scoped, tag = 'scratch operand']
  %s0 = inlined_call_operand.vmem [shape: f32[2,16,16,4], index: 0, kind: input, shape index: {}, may-alias: {0,1,2}]
  %s1 = inlined_call_operand.vmem [shape: f32[2,16,16,4], index: 1, kind: input, shape index: {}, may-alias: {0,1,2}]
  %s2 = inlined_call_operand.vmem [shape: f32[2,16,16,4], index: 2, kind: input, shape index: {}, may-alias: {0,1,2}]
  %s3 = inlined_call_operand.vmem [shape: f32[2,16,16,4], index: 3, kind: input, shape index: {}, may-alias: {3,4,5}]
  %s4 = inlined_call_operand.vmem [shape: f32[2,16,16,4], index: 4, kind: input, shape index: {}, may-alias: {3,4,5}]
  %s5 = inlined_call_operand.vmem [shape: f32[2,16,16,4], index: 5, kind: input, shape index: {}, may-alias: {3,4,5}]
  %s6 = inlined_call_operand.vmem [shape: f32[9,4], index: 6, kind: input, shape index: {}]
  %s7 = inlined_call_operand.vmem [shape: f32[1,4], index: 7, kind: input, shape index: {}]
  %s8 = inlined_call_operand.vmem [shape: f32[4,4], index: 8, kind: input, shape index: {}]
  %s9 = inlined_call_operand.vmem [shape: f32[9,4], index: 9, kind: input, shape index: {}]
  %s10 = inlined_call_operand.vmem [shape: f32[1,4], index: 10, kind: input, shape index: {}]
  %s11 = inlined_call_operand.vmem [shape: f32[4,4], index: 11, kind: input, shape index: {}]
  %s12 = inlined_call_operand.vmem [shape: f32[1,4], index: 12, kind: input, shape index: {}]
  %s13 = inlined_call_operand.vmem [shape: f32[2,16,16,4], index: 13, kind: output, shape index: {}]
  %s14 = sld [smem:[#allocation0]]
  $region85: #{upblock_mobile_forward.3} parent=0
    _
  %s16 = ssub.s32 1, %s14
  %s17 = scalar_select 0, %s16, %s14
  loop: start=0, step=1, limit=4
  $region2: #{upblock_mobile_forward.3} parent=0 // loop_pre_header
    _
  $region3: #{upblock_mobile_forward.3} parent=0 // loop_header
    %s19 = sphi 0, %s23
    %p20 = scmp.ge.s32.totalorder %s19, 4
    %s26 = sphi 0, %s38
    %s27 = sphi 0, %s34
    %s28 = sphi 0, %s26
    %s29 = sphi 0, %s27
    %s30 = sphi 0, %s28
    %s31 = sphi 0, %s29
    %s43 = sphi 0, %s45
    %s46 = sphi 0, %s43
    %s47 = sphi 0, %s46
    %s63 = sphi 0, %s47
    %s79 = sphi 0, %s81
    %s82 = sphi 0, %s79
    %s83 = sphi 0, %s82
    %s99 = sphi 0, %s83
    %s115 = sphi 0, %s117
    %s118 = sphi 0, %s115
    %s119 = sphi 0, %s118
    %s135 = sphi 0, %s119
    %s143 = sphi 0, %s145
    %s146 = sphi 0, %s143
    %s147 = sphi 0, %s146
    %s163 = sphi 0, %s147
    %s179 = sphi 0, %s181
    %s182 = sphi 0, %s179
    %s183 = sphi 0, %s182
    %s199 = sphi 0, %s183
    %s215 = sphi 0, %s217
    %s218 = sphi 0, %s215
    %s219 = sphi 0, %s218
    %s235 = sphi 0, %s219
    %s239 = sphi 0, %s239
    %s241 = sphi 0, %s239
    %s242 = sphi 0, %s241
    %s256 = sphi 0, %s242
    %s260 = sphi 0, %s260
    %s262 = sphi 0, %s260
    %s263 = sphi 0, %s262
    %s277 = sphi 0, %s263
    %s281 = sphi 0, %s281
    %s283 = sphi 0, %s281
    %s284 = sphi 0, %s283
    %s298 = sphi 0, %s284
    %s302 = sphi 0, %s302
    %s304 = sphi 0, %s302
    %s305 = sphi 0, %s304
    %s319 = sphi 0, %s305
    %s323 = sphi 0, %s323
    %s325 = sphi 0, %s323
    %s326 = sphi 0, %s325
    %s340 = sphi 0, %s326
    %s344 = sphi 0, %s344
    %s346 = sphi 0, %s344
    %s347 = sphi 0, %s346
    %s361 = sphi 0, %s347
    %s365 = sphi 0, %s365
    %s367 = sphi 0, %s365
    %s368 = sphi 0, %s367
    %s382 = sphi 0, %s368
    %s390 = sphi 0, %s392
    %s393 = sphi 0, %s390
    %s394 = sphi 0, %s393
    %s410 = sphi 0, %s394
  $region4: #{upblock_mobile_forward.3} parent=0 // loop_header_branch
    %22 = sbr.rel (%p20) target = $region8
  $region5: #{upblock_mobile_forward.3} parent=0 // loop_body
    %s24 = ssub.s32 %s19, 1
    %s25 = ssub.s32 %s19, 2
    %s32 = sadd.s32 1, %s27
    %p33 = scmp.ge.s32.totalorder %s32, 1
    %s34 = scalar_select %p33, 0, %s32
    %s35 = sadd.s32 1, %s26
    %s36 = scalar_select %p33, %s35, %s26
    %p37 = scmp.ge.s32.totalorder %s36, 2
    %s38 = scalar_select %p37, 0, %s36
    %s39 = ssub.s32 %s26, %s38
    %s40 = ssub.s32 %s27, %s34
    %s41 = sor.u32 %s39, %s40
    %p42 = scmp.eq.s32.totalorder %s41, 0
    %s44 = sadd.s32 %s43, 1
    %s45 = scalar_select %p42, %s43, %s44
    %p48 = pneg %p42
    %p49 = scmp.eq.s32.totalorder %s19, 1
    %p50 = por %p48, %p49
    %p51 = scmp.ne.s32.totalorder %s43, %s46
    %p52 = scmp.eq.s32.totalorder %s19, 0
    %p53 = por %p51, %p52
    %p54 = scmp.ne.s32.totalorder %s43, %s46
    %p55 = scmp.eq.s32.totalorder %s24, 1
    %p56 = por %p54, %p55
    %p57 = scmp.ne.s32.totalorder %s46, %s47
    %p58 = scmp.eq.s32.totalorder %s24, 0
    %p59 = por %p57, %p58
    %p60 = scmp.ne.s32.totalorder %s46, %s47
    %p61 = scmp.eq.s32.totalorder %s25, 1
    %p62 = por %p60, %p61
    %p64 = scmp.ne.s32.totalorder %s47, %s63
    %p65 = scmp.eq.s32.totalorder %s25, 0
    %p66 = por %p64, %p65
    %s67 = smul.u32 %s27, 2
    %s68 = ssub.s32 %s67, 1
    %p69 = scmp.gt.s32.totalorder %s68, 0
    %s70 = scalar_select %p69, %s68, 0
    %s71 = smul.u32 %s34, 2
    %s72 = ssub.s32 %s71, 1
    %p73 = scmp.gt.s32.totalorder %s72, 0
    %s74 = scalar_select %p73, %s72, 0
    %s75 = ssub.s32 %s26, %s38
    %s76 = ssub.s32 %s70, %s74
    %s77 = sor.u32 %s75, %s76
    %p78 = scmp.eq.s32.totalorder %s77, 0
    %s80 = sadd.s32 %s79, 1
    %s81 = scalar_select %p78, %s79, %s80
    %p84 = pneg %p78
    %p85 = scmp.eq.s32.totalorder %s19, 1
    %p86 = por %p84, %p85
    %p87 = scmp.ne.s32.totalorder %s79, %s82
    %p88 = scmp.eq.s32.totalorder %s19, 0
    %p89 = por %p87, %p88
    %p90 = scmp.ne.s32.totalorder %s79, %s82
    %p91 = scmp.eq.s32.totalorder %s24, 1
    %p92 = por %p90, %p91
    %p93 = scmp.ne.s32.totalorder %s82, %s83
    %p94 = scmp.eq.s32.totalorder %s24, 0
    %p95 = por %p93, %p94
    %p96 = scmp.ne.s32.totalorder %s82, %s83
    %p97 = scmp.eq.s32.totalorder %s25, 1
    %p98 = por %p96, %p97
    %p100 = scmp.ne.s32.totalorder %s83, %s99
    %p101 = scmp.eq.s32.totalorder %s25, 0
    %p102 = por %p100, %p101
    %s103 = sadd.s32 %s27, 1
    %s104 = smul.u32 %s103, 2
    %p105 = scmp.lt.s32.totalorder %s104, 1
    %s106 = scalar_select %p105, %s104, 1
    %s107 = sadd.s32 %s34, 1
    %s108 = smul.u32 %s107, 2
    %p109 = scmp.lt.s32.totalorder %s108, 1
    %s110 = scalar_select %p109, %s108, 1
    %s111 = ssub.s32 %s26, %s38
    %s112 = ssub.s32 %s106, %s110
    %s113 = sor.u32 %s111, %s112
    %p114 = scmp.eq.s32.totalorder %s113, 0
    %s116 = sadd.s32 %s115, 1
    %s117 = scalar_select %p114, %s115, %s116
    %p120 = pneg %p114
    %p121 = scmp.eq.s32.totalorder %s19, 1
    %p122 = por %p120, %p121
    %p123 = scmp.ne.s32.totalorder %s115, %s118
    %p124 = scmp.eq.s32.totalorder %s19, 0
    %p125 = por %p123, %p124
    %p126 = scmp.ne.s32.totalorder %s115, %s118
    %p127 = scmp.eq.s32.totalorder %s24, 1
    %p128 = por %p126, %p127
    %p129 = scmp.ne.s32.totalorder %s118, %s119
    %p130 = scmp.eq.s32.totalorder %s24, 0
    %p131 = por %p129, %p130
    %p132 = scmp.ne.s32.totalorder %s118, %s119
    %p133 = scmp.eq.s32.totalorder %s25, 1
    %p134 = por %p132, %p133
    %p136 = scmp.ne.s32.totalorder %s119, %s135
    %p137 = scmp.eq.s32.totalorder %s25, 0
    %p138 = por %p136, %p137
    %s139 = ssub.s32 %s26, %s38
    %s140 = ssub.s32 %s27, %s34
    %s141 = sor.u32 %s139, %s140
    %p142 = scmp.eq.s32.totalorder %s141, 0
    %s144 = sadd.s32 %s143, 1
    %s145 = scalar_select %p142, %s143, %s144
    %p148 = pneg %p142
    %p149 = scmp.eq.s32.totalorder %s19, 1
    %p150 = por %p148, %p149
    %p151 = scmp.ne.s32.totalorder %s143, %s146
    %p152 = scmp.eq.s32.totalorder %s19, 0
    %p153 = por %p151, %p152
    %p154 = scmp.ne.s32.totalorder %s143, %s146
    %p155 = scmp.eq.s32.totalorder %s24, 1
    %p156 = por %p154, %p155
    %p157 = scmp.ne.s32.totalorder %s146, %s147
    %p158 = scmp.eq.s32.totalorder %s24, 0
    %p159 = por %p157, %p158
    %p160 = scmp.ne.s32.totalorder %s146, %s147
    %p161 = scmp.eq.s32.totalorder %s25, 1
    %p162 = por %p160, %p161
    %p164 = scmp.ne.s32.totalorder %s147, %s163
    %p165 = scmp.eq.s32.totalorder %s25, 0
    %p166 = por %p164, %p165
    %s167 = smul.u32 %s27, 2
    %s168 = ssub.s32 %s167, 1
    %p169 = scmp.gt.s32.totalorder %s168, 0
    %s170 = scalar_select %p169, %s168, 0
    %s171 = smul.u32 %s34, 2
    %s172 = ssub.s32 %s171, 1
    %p173 = scmp.gt.s32.totalorder %s172, 0
    %s174 = scalar_select %p173, %s172, 0
    %s175 = ssub.s32 %s26, %s38
    %s176 = ssub.s32 %s170, %s174
    %s177 = sor.u32 %s175, %s176
    %p178 = scmp.eq.s32.totalorder %s177, 0
    %s180 = sadd.s32 %s179, 1
    %s181 = scalar_select %p178, %s179, %s180
    %p184 = pneg %p178
    %p185 = scmp.eq.s32.totalorder %s19, 1
    %p186 = por %p184, %p185
    %p187 = scmp.ne.s32.totalorder %s179, %s182
    %p188 = scmp.eq.s32.totalorder %s19, 0
    %p189 = por %p187, %p188
    %p190 = scmp.ne.s32.totalorder %s179, %s182
    %p191 = scmp.eq.s32.totalorder %s24, 1
    %p192 = por %p190, %p191
    %p193 = scmp.ne.s32.totalorder %s182, %s183
    %p194 = scmp.eq.s32.totalorder %s24, 0
    %p195 = por %p193, %p194
    %p196 = scmp.ne.s32.totalorder %s182, %s183
    %p197 = scmp.eq.s32.totalorder %s25, 1
    %p198 = por %p196, %p197
    %p200 = scmp.ne.s32.totalorder %s183, %s199
    %p201 = scmp.eq.s32.totalorder %s25, 0
    %p202 = por %p200, %p201
    %s203 = sadd.s32 %s27, 1
    %s204 = smul.u32 %s203, 2
    %p205 = scmp.lt.s32.totalorder %s204, 1
    %s206 = scalar_select %p205, %s204, 1
    %s207 = sadd.s32 %s34, 1
    %s208 = smul.u32 %s207, 2
    %p209 = scmp.lt.s32.totalorder %s208, 1
    %s210 = scalar_select %p209, %s208, 1
    %s211 = ssub.s32 %s26, %s38
    %s212 = ssub.s32 %s206, %s210
    %s213 = sor.u32 %s211, %s212
    %p214 = scmp.eq.s32.totalorder %s213, 0
    %s216 = sadd.s32 %s215, 1
    %s217 = scalar_select %p214, %s215, %s216
    %p220 = pneg %p214
    %p221 = scmp.eq.s32.totalorder %s19, 1
    %p222 = por %p220, %p221
    %p223 = scmp.ne.s32.totalorder %s215, %s218
    %p224 = scmp.eq.s32.totalorder %s19, 0
    %p225 = por %p223, %p224
    %p226 = scmp.ne.s32.totalorder %s215, %s218
    %p227 = scmp.eq.s32.totalorder %s24, 1
    %p228 = por %p226, %p227
    %p229 = scmp.ne.s32.totalorder %s218, %s219
    %p230 = scmp.eq.s32.totalorder %s24, 0
    %p231 = por %p229, %p230
    %p232 = scmp.ne.s32.totalorder %s218, %s219
    %p233 = scmp.eq.s32.totalorder %s25, 1
    %p234 = por %p232, %p233
    %p236 = scmp.ne.s32.totalorder %s219, %s235
    %p237 = scmp.eq.s32.totalorder %s25, 0
    %p238 = por %p236, %p237
    %s240 = sadd.s32 %s239, 1
    %p243 = scmp.eq.s32.totalorder %s19, 1
    %p244 = scmp.ne.s32.totalorder %s239, %s241
    %p245 = scmp.eq.s32.totalorder %s19, 0
    %p246 = por %p244, %p245
    %p247 = scmp.ne.s32.totalorder %s239, %s241
    %p248 = scmp.eq.s32.totalorder %s24, 1
    %p249 = por %p247, %p248
    %p250 = scmp.ne.s32.totalorder %s241, %s242
    %p251 = scmp.eq.s32.totalorder %s24, 0
    %p252 = por %p250, %p251
    %p253 = scmp.ne.s32.totalorder %s241, %s242
    %p254 = scmp.eq.s32.totalorder %s25, 1
    %p255 = por %p253, %p254
    %p257 = scmp.ne.s32.totalorder %s242, %s256
    %p258 = scmp.eq.s32.totalorder %s25, 0
    %p259 = por %p257, %p258
    %s261 = sadd.s32 %s260, 1
    %p264 = scmp.eq.s32.totalorder %s19, 1
    %p265 = scmp.ne.s32.totalorder %s260, %s262
    %p266 = scmp.eq.s32.totalorder %s19, 0
    %p267 = por %p265, %p266
    %p268 = scmp.ne.s32.totalorder %s260, %s262
    %p269 = scmp.eq.s32.totalorder %s24, 1
    %p270 = por %p268, %p269
    %p271 = scmp.ne.s32.totalorder %s262, %s263
    %p272 = scmp.eq.s32.totalorder %s24, 0
    %p273 = por %p271, %p272
    %p274 = scmp.ne.s32.totalorder %s262, %s263
    %p275 = scmp.eq.s32.totalorder %s25, 1
    %p276 = por %p274, %p275
    %p278 = scmp.ne.s32.totalorder %s263, %s277
    %p279 = scmp.eq.s32.totalorder %s25, 0
    %p280 = por %p278, %p279
    %s282 = sadd.s32 %s281, 1
    %p285 = scmp.eq.s32.totalorder %s19, 1
    %p286 = scmp.ne.s32.totalorder %s281, %s283
    %p287 = scmp.eq.s32.totalorder %s19, 0
    %p288 = por %p286, %p287
    %p289 = scmp.ne.s32.totalorder %s281, %s283
    %p290 = scmp.eq.s32.totalorder %s24, 1
    %p291 = por %p289, %p290
    %p292 = scmp.ne.s32.totalorder %s283, %s284
    %p293 = scmp.eq.s32.totalorder %s24, 0
    %p294 = por %p292, %p293
    %p295 = scmp.ne.s32.totalorder %s283, %s284
    %p296 = scmp.eq.s32.totalorder %s25, 1
    %p297 = por %p295, %p296
    %p299 = scmp.ne.s32.totalorder %s284, %s298
    %p300 = scmp.eq.s32.totalorder %s25, 0
    %p301 = por %p299, %p300
    %s303 = sadd.s32 %s302, 1
    %p306 = scmp.eq.s32.totalorder %s19, 1
    %p307 = scmp.ne.s32.totalorder %s302, %s304
    %p308 = scmp.eq.s32.totalorder %s19, 0
    %p309 = por %p307, %p308
    %p310 = scmp.ne.s32.totalorder %s302, %s304
    %p311 = scmp.eq.s32.totalorder %s24, 1
    %p312 = por %p310, %p311
    %p313 = scmp.ne.s32.totalorder %s304, %s305
    %p314 = scmp.eq.s32.totalorder %s24, 0
    %p315 = por %p313, %p314
    %p316 = scmp.ne.s32.totalorder %s304, %s305
    %p317 = scmp.eq.s32.totalorder %s25, 1
    %p318 = por %p316, %p317
    %p320 = scmp.ne.s32.totalorder %s305, %s319
    %p321 = scmp.eq.s32.totalorder %s25, 0
    %p322 = por %p320, %p321
    %s324 = sadd.s32 %s323, 1
    %p327 = scmp.eq.s32.totalorder %s19, 1
    %p328 = scmp.ne.s32.totalorder %s323, %s325
    %p329 = scmp.eq.s32.totalorder %s19, 0
    %p330 = por %p328, %p329
    %p331 = scmp.ne.s32.totalorder %s323, %s325
    %p332 = scmp.eq.s32.totalorder %s24, 1
    %p333 = por %p331, %p332
    %p334 = scmp.ne.s32.totalorder %s325, %s326
    %p335 = scmp.eq.s32.totalorder %s24, 0
    %p336 = por %p334, %p335
    %p337 = scmp.ne.s32.totalorder %s325, %s326
    %p338 = scmp.eq.s32.totalorder %s25, 1
    %p339 = por %p337, %p338
    %p341 = scmp.ne.s32.totalorder %s326, %s340
    %p342 = scmp.eq.s32.totalorder %s25, 0
    %p343 = por %p341, %p342
    %s345 = sadd.s32 %s344, 1
    %p348 = scmp.eq.s32.totalorder %s19, 1
    %p349 = scmp.ne.s32.totalorder %s344, %s346
    %p350 = scmp.eq.s32.totalorder %s19, 0
    %p351 = por %p349, %p350
    %p352 = scmp.ne.s32.totalorder %s344, %s346
    %p353 = scmp.eq.s32.totalorder %s24, 1
    %p354 = por %p352, %p353
    %p355 = scmp.ne.s32.totalorder %s346, %s347
    %p356 = scmp.eq.s32.totalorder %s24, 0
    %p357 = por %p355, %p356
    %p358 = scmp.ne.s32.totalorder %s346, %s347
    %p359 = scmp.eq.s32.totalorder %s25, 1
    %p360 = por %p358, %p359
    %p362 = scmp.ne.s32.totalorder %s347, %s361
    %p363 = scmp.eq.s32.totalorder %s25, 0
    %p364 = por %p362, %p363
    %s366 = sadd.s32 %s365, 1
    %p369 = scmp.eq.s32.totalorder %s19, 1
    %p370 = scmp.ne.s32.totalorder %s365, %s367
    %p371 = scmp.eq.s32.totalorder %s19, 0
    %p372 = por %p370, %p371
    %p373 = scmp.ne.s32.totalorder %s365, %s367
    %p374 = scmp.eq.s32.totalorder %s24, 1
    %p375 = por %p373, %p374
    %p376 = scmp.ne.s32.totalorder %s367, %s368
    %p377 = scmp.eq.s32.totalorder %s24, 0
    %p378 = por %p376, %p377
    %p379 = scmp.ne.s32.totalorder %s367, %s368
    %p380 = scmp.eq.s32.totalorder %s25, 1
    %p381 = por %p379, %p380
    %p383 = scmp.ne.s32.totalorder %s368, %s382
    %p384 = scmp.eq.s32.totalorder %s25, 0
    %p385 = por %p383, %p384
    %s386 = ssub.s32 %s26, %s38
    %s387 = ssub.s32 %s27, %s34
    %s388 = sor.u32 %s386, %s387
    %p389 = scmp.eq.s32.totalorder %s388, 0
    %s391 = sadd.s32 %s390, 1
    %s392 = scalar_select %p389, %s390, %s391
    %p395 = pneg %p389
    %p396 = scmp.eq.s32.totalorder %s19, 1
    %p397 = por %p395, %p396
    %p398 = scmp.ne.s32.totalorder %s390, %s393
    %p399 = scmp.eq.s32.totalorder %s19, 0
    %p400 = por %p398, %p399
    %p401 = scmp.ne.s32.totalorder %s390, %s393
    %p402 = scmp.eq.s32.totalorder %s24, 1
    %p403 = por %p401, %p402
    %p404 = scmp.ne.s32.totalorder %s393, %s394
    %p405 = scmp.eq.s32.totalorder %s24, 0
    %p406 = por %p404, %p405
    %p407 = scmp.ne.s32.totalorder %s393, %s394
    %p408 = scmp.eq.s32.totalorder %s25, 1
    %p409 = por %p407, %p408
    %p411 = scmp.ne.s32.totalorder %s394, %s410
    %p412 = scmp.eq.s32.totalorder %s25, 0
    %p413 = por %p411, %p412
    %p414 = scmp.le.s32.totalorder 1, %s19
    %p415 = scmp.lt.s32.totalorder %s19, 3
    %p416 = pnand %p414, %p415
    %p417 = pneg %p416
    // Predicated region
    $region9: #{upblock_mobile_forward.3} parent=5 // pred_check
      _
    $region10: #{upblock_mobile_forward.3} parent=5 // pred_check_branch
      %419 = sbr.rel (%p416) target = $region12
    $region11: #{upblock_mobile_forward.3} parent=5 // pred_region
      %s420 = ssub.s32 %s19, 1
      // Predicated region
      $region13: #{upblock_mobile_forward.3} parent=11 // pred_check
        %p421 = pneg %p252
      $region14: #{upblock_mobile_forward.3} parent=11 // pred_check_branch
        %423 = sbr.rel (%p421) target = $region16
      $region15: #{upblock_mobile_forward.3} parent=11 // pred_region
        _
      $region16: #{upblock_mobile_forward.3} parent=11 // pred_fallthru
        _
      // Predicated region
      $region17: #{upblock_mobile_forward.3} parent=11 // pred_check
        %p424 = pneg %p273
      $region18: #{upblock_mobile_forward.3} parent=11 // pred_check_branch
        %426 = sbr.rel (%p424) target = $region20
      $region19: #{upblock_mobile_forward.3} parent=11 // pred_region
        _
      $region20: #{upblock_mobile_forward.3} parent=11 // pred_fallthru
        _
      // Predicated region
      $region21: #{upblock_mobile_forward.3} parent=11 // pred_check
        %p427 = pneg %p294
      $region22: #{upblock_mobile_forward.3} parent=11 // pred_check_branch
        %429 = sbr.rel (%p427) target = $region24
      $region23: #{upblock_mobile_forward.3} parent=11 // pred_region
        _
      $region24: #{upblock_mobile_forward.3} parent=11 // pred_fallthru
        _
      // Predicated region
      $region25: #{upblock_mobile_forward.3} parent=11 // pred_check
        %p430 = pneg %p315
      $region26: #{upblock_mobile_forward.3} parent=11 // pred_check_branch
        %432 = sbr.rel (%p430) target = $region28
      $region27: #{upblock_mobile_forward.3} parent=11 // pred_region
        _
      $region28: #{upblock_mobile_forward.3} parent=11 // pred_fallthru
        _
      // Predicated region
      $region29: #{upblock_mobile_forward.3} parent=11 // pred_check
        %p433 = pneg %p336
      $region30: #{upblock_mobile_forward.3} parent=11 // pred_check_branch
        %435 = sbr.rel (%p433) target = $region32
      $region31: #{upblock_mobile_forward.3} parent=11 // pred_region
        _
      $region32: #{upblock_mobile_forward.3} parent=11 // pred_fallthru
        _
      // Predicated region
      $region33: #{upblock_mobile_forward.3} parent=11 // pred_check
        %p436 = pneg %p357
      $region34: #{upblock_mobile_forward.3} parent=11 // pred_check_branch
        %438 = sbr.rel (%p436) target = $region36
      $region35: #{upblock_mobile_forward.3} parent=11 // pred_region
        _
      $region36: #{upblock_mobile_forward.3} parent=11 // pred_fallthru
        _
      // Predicated region
      $region37: #{upblock_mobile_forward.3} parent=11 // pred_check
        %p439 = pneg %p378
      $region38: #{upblock_mobile_forward.3} parent=11 // pred_check_branch
        %441 = sbr.rel (%p439) target = $region40
      $region39: #{upblock_mobile_forward.3} parent=11 // pred_region
        _
      $region40: #{upblock_mobile_forward.3} parent=11 // pred_fallthru
        _
    $region12: #{upblock_mobile_forward.3} parent=5 // pred_fallthru
      _
    %p442 = scmp.lt.s32.totalorder %s19, 2
    // Predicated region
    $region41: #{upblock_mobile_forward.3} parent=5 // pred_check
      %p443 = pneg %p442
    $region42: #{upblock_mobile_forward.3} parent=5 // pred_check_branch
      %445 = sbr.rel (%p443) target = $region44
    $region43: #{upblock_mobile_forward.3} parent=5 // pred_region
      // Predicated region
      $region45: #{upblock_mobile_forward.3} parent=43 // pred_check
        %p446 = pneg %p53
      $region46: #{upblock_mobile_forward.3} parent=43 // pred_check_branch
        %448 = sbr.rel (%p446) target = $region48
      $region47: #{upblock_mobile_forward.3} parent=43 // pred_region
        %s449 = smul.u32 16, %s27
        %p450 = scmp.lt.s32.totalorder %s26, 1
        %s451 = scalar_select %p450, %s26, 1
        %p452 = scmp.lt.s32.totalorder %s449, 15
        %s453 = scalar_select %p452, %s449, 15
        %s454 = smul.addr %s453, 2
        %s455 = smul.addr %s451, 32
        %s456 = sadd.s32 %s454, %s455
        %s457 = smul.addr %s456, 8
        %s458 = scalar_lea.vmem %s0, %s457
        %s459 = smul.u32 16, %s27
      $region48: #{upblock_mobile_forward.3} parent=43 // pred_fallthru
        _
      // Predicated region
      $region49: #{upblock_mobile_forward.3} parent=43 // pred_check
        %p460 = pneg %p89
      $region50: #{upblock_mobile_forward.3} parent=43 // pred_check_branch
        %462 = sbr.rel (%p460) target = $region52
      $region51: #{upblock_mobile_forward.3} parent=43 // pred_region
        %s463 = smul.u32 %s27, 2
        %s464 = ssub.s32 %s463, 1
        %p465 = scmp.gt.s32.totalorder %s464, 0
        %s466 = scalar_select %p465, %s464, 0
        %s467 = smul.u32 8, %s466
        %p468 = scmp.lt.s32.totalorder %s26, 1
        %s469 = scalar_select %p468, %s26, 1
        %p470 = scmp.lt.s32.totalorder %s467, 15
        %s471 = scalar_select %p470, %s467, 15
        %s472 = smul.addr %s471, 2
        %s473 = smul.addr %s469, 32
        %s474 = sadd.s32 %s472, %s473
        %s475 = smul.addr %s474, 8
        %s476 = scalar_lea.vmem %s1, %s475
        %s477 = smul.u32 %s27, 2
        %s478 = ssub.s32 %s477, 1
        %p479 = scmp.gt.s32.totalorder %s478, 0
        %s480 = scalar_select %p479, %s478, 0
        %s481 = smul.u32 8, %s480
      $region52: #{upblock_mobile_forward.3} parent=43 // pred_fallthru
        _
      // Predicated region
      $region53: #{upblock_mobile_forward.3} parent=43 // pred_check
        %p482 = pneg %p125
      $region54: #{upblock_mobile_forward.3} parent=43 // pred_check_branch
        %484 = sbr.rel (%p482) target = $region56
      $region55: #{upblock_mobile_forward.3} parent=43 // pred_region
        %s485 = sadd.s32 %s27, 1
        %s486 = smul.u32 %s485, 2
        %p487 = scmp.lt.s32.totalorder %s486, 1
        %s488 = scalar_select %p487, %s486, 1
        %s489 = smul.u32 8, %s488
        %p490 = scmp.lt.s32.totalorder %s26, 1
        %s491 = scalar_select %p490, %s26, 1
        %p492 = scmp.lt.s32.totalorder %s489, 15
        %s493 = scalar_select %p492, %s489, 15
        %s494 = smul.addr %s493, 2
        %s495 = smul.addr %s491, 32
        %s496 = sadd.s32 %s494, %s495
        %s497 = smul.addr %s496, 8
        %s498 = scalar_lea.vmem %s2, %s497
        %s499 = sadd.s32 %s27, 1
        %s500 = smul.u32 %s499, 2
        %p501 = scmp.lt.s32.totalorder %s500, 1
        %s502 = scalar_select %p501, %s500, 1
        %s503 = smul.u32 8, %s502
      $region56: #{upblock_mobile_forward.3} parent=43 // pred_fallthru
        _
      // Predicated region
      $region57: #{upblock_mobile_forward.3} parent=43 // pred_check
        %p504 = pneg %p153
      $region58: #{upblock_mobile_forward.3} parent=43 // pred_check_branch
        %506 = sbr.rel (%p504) target = $region60
      $region59: #{upblock_mobile_forward.3} parent=43 // pred_region
        %s507 = smul.u32 16, %s27
        %p508 = scmp.lt.s32.totalorder %s26, 1
        %s509 = scalar_select %p508, %s26, 1
        %p510 = scmp.lt.s32.totalorder %s507, 15
        %s511 = scalar_select %p510, %s507, 15
        %s512 = smul.addr %s511, 2
        %s513 = smul.addr %s509, 32
        %s514 = sadd.s32 %s512, %s513
        %s515 = smul.addr %s514, 8
        %s516 = scalar_lea.vmem %s3, %s515
        %s517 = smul.u32 16, %s27
      $region60: #{upblock_mobile_forward.3} parent=43 // pred_fallthru
        _
      // Predicated region
      $region61: #{upblock_mobile_forward.3} parent=43 // pred_check
        %p518 = pneg %p189
      $region62: #{upblock_mobile_forward.3} parent=43 // pred_check_branch
        %520 = sbr.rel (%p518) target = $region64
      $region63: #{upblock_mobile_forward.3} parent=43 // pred_region
        %s521 = smul.u32 %s27, 2
        %s522 = ssub.s32 %s521, 1
        %p523 = scmp.gt.s32.totalorder %s522, 0
        %s524 = scalar_select %p523, %s522, 0
        %s525 = smul.u32 8, %s524
        %p526 = scmp.lt.s32.totalorder %s26, 1
        %s527 = scalar_select %p526, %s26, 1
        %p528 = scmp.lt.s32.totalorder %s525, 15
        %s529 = scalar_select %p528, %s525, 15
        %s530 = smul.addr %s529, 2
        %s531 = smul.addr %s527, 32
        %s532 = sadd.s32 %s530, %s531
        %s533 = smul.addr %s532, 8
        %s534 = scalar_lea.vmem %s4, %s533
        %s535 = smul.u32 %s27, 2
        %s536 = ssub.s32 %s535, 1
        %p537 = scmp.gt.s32.totalorder %s536, 0
        %s538 = scalar_select %p537, %s536, 0
        %s539 = smul.u32 8, %s538
      $region64: #{upblock_mobile_forward.3} parent=43 // pred_fallthru
        _
      // Predicated region
      $region65: #{upblock_mobile_forward.3} parent=43 // pred_check
        %p540 = pneg %p225
      $region66: #{upblock_mobile_forward.3} parent=43 // pred_check_branch
        %542 = sbr.rel (%p540) target = $region68
      $region67: #{upblock_mobile_forward.3} parent=43 // pred_region
        %s543 = sadd.s32 %s27, 1
        %s544 = smul.u32 %s543, 2
        %p545 = scmp.lt.s32.totalorder %s544, 1
        %s546 = scalar_select %p545, %s544, 1
        %s547 = smul.u32 8, %s546
        %p548 = scmp.lt.s32.totalorder %s26, 1
        %s549 = scalar_select %p548, %s26, 1
        %p550 = scmp.lt.s32.totalorder %s547, 15
        %s551 = scalar_select %p550, %s547, 15
        %s552 = smul.addr %s551, 2
        %s553 = smul.addr %s549, 32
        %s554 = sadd.s32 %s552, %s553
        %s555 = smul.addr %s554, 8
        %s556 = scalar_lea.vmem %s5, %s555
        %s557 = sadd.s32 %s27, 1
        %s558 = smul.u32 %s557, 2
        %p559 = scmp.lt.s32.totalorder %s558, 1
        %s560 = scalar_select %p559, %s558, 1
        %s561 = smul.u32 8, %s560
      $region68: #{upblock_mobile_forward.3} parent=43 // pred_fallthru
        _
    $region44: #{upblock_mobile_forward.3} parent=5 // pred_fallthru
      _
    %p562 = scmp.le.s32.totalorder 1, %s19
    %p563 = scmp.lt.s32.totalorder %s19, 3
    %p564 = pnand %p562, %p563
    %p565 = pneg %p564
    // Predicated region
    $region69: #{upblock_mobile_forward.3} parent=5 // pred_check
      _
    $region70: #{upblock_mobile_forward.3} parent=5 // pred_check_branch
      %567 = sbr.rel (%p564) target = $region72
    $region71: #{upblock_mobile_forward.3} parent=5 // pred_region
      %s568 = ssub.s32 %s19, 1
      %s569 = smul.u32 16, %s29
      %p570 = scmp.lt.s32.totalorder %s28, 1
      %s571 = scalar_select %p570, %s28, 1
      %p572 = scmp.lt.s32.totalorder %s569, 15
      %s573 = scalar_select %p572, %s569, 15
      %s574 = smul.addr %s573, 2
      %s575 = smul.addr %s571, 32
      %s576 = sadd.s32 %s574, %s575
      %s577 = smul.addr %s576, 8
      %s578 = scalar_lea.vmem %s0, %s577
      %p579 = pneg %p59
      %p580 = pneg %p56
      %s581 = smul.u32 %s29, 2
      %s582 = ssub.s32 %s581, 1
      %p583 = scmp.gt.s32.totalorder %s582, 0
      %s584 = scalar_select %p583, %s582, 0
      %s585 = smul.u32 8, %s584
      %p586 = scmp.lt.s32.totalorder %s28, 1
      %s587 = scalar_select %p586, %s28, 1
      %p588 = scmp.lt.s32.totalorder %s585, 15
      %s589 = scalar_select %p588, %s585, 15
      %s590 = smul.addr %s589, 2
      %s591 = smul.addr %s587, 32
      %s592 = sadd.s32 %s590, %s591
      %s593 = smul.addr %s592, 8
      %s594 = scalar_lea.vmem %s1, %s593
      %p595 = pneg %p95
      %p596 = pneg %p92
      %s597 = sadd.s32 %s29, 1
      %s598 = smul.u32 %s597, 2
      %p599 = scmp.lt.s32.totalorder %s598, 1
      %s600 = scalar_select %p599, %s598, 1
      %s601 = smul.u32 8, %s600
      %p602 = scmp.lt.s32.totalorder %s28, 1
      %s603 = scalar_select %p602, %s28, 1
      %p604 = scmp.lt.s32.totalorder %s601, 15
      %s605 = scalar_select %p604, %s601, 15
      %s606 = smul.addr %s605, 2
      %s607 = smul.addr %s603, 32
      %s608 = sadd.s32 %s606, %s607
      %s609 = smul.addr %s608, 8
      %s610 = scalar_lea.vmem %s2, %s609
      %p611 = pneg %p131
      %p612 = pneg %p128
      %s613 = smul.u32 16, %s29
      %p614 = scmp.lt.s32.totalorder %s28, 1
      %s615 = scalar_select %p614, %s28, 1
      %p616 = scmp.lt.s32.totalorder %s613, 15
      %s617 = scalar_select %p616, %s613, 15
      %s618 = smul.addr %s617, 2
      %s619 = smul.addr %s615, 32
      %s620 = sadd.s32 %s618, %s619
      %s621 = smul.addr %s620, 8
      %s622 = scalar_lea.vmem %s3, %s621
      %p623 = pneg %p159
      %p624 = pneg %p156
      %s625 = smul.u32 %s29, 2
      %s626 = ssub.s32 %s625, 1
      %p627 = scmp.gt.s32.totalorder %s626, 0
      %s628 = scalar_select %p627, %s626, 0
      %s629 = smul.u32 8, %s628
      %p630 = scmp.lt.s32.totalorder %s28, 1
      %s631 = scalar_select %p630, %s28, 1
      %p632 = scmp.lt.s32.totalorder %s629, 15
      %s633 = scalar_select %p632, %s629, 15
      %s634 = smul.addr %s633, 2
      %s635 = smul.addr %s631, 32
      %s636 = sadd.s32 %s634, %s635
      %s637 = smul.addr %s636, 8
      %s638 = scalar_lea.vmem %s4, %s637
      %p639 = pneg %p195
      %p640 = pneg %p192
      %s641 = sadd.s32 %s29, 1
      %s642 = smul.u32 %s641, 2
      %p643 = scmp.lt.s32.totalorder %s642, 1
      %s644 = scalar_select %p643, %s642, 1
      %s645 = smul.u32 8, %s644
      %p646 = scmp.lt.s32.totalorder %s28, 1
      %s647 = scalar_select %p646, %s28, 1
      %p648 = scmp.lt.s32.totalorder %s645, 15
      %s649 = scalar_select %p648, %s645, 15
      %s650 = smul.addr %s649, 2
      %s651 = smul.addr %s647, 32
      %s652 = sadd.s32 %s650, %s651
      %s653 = smul.addr %s652, 8
      %s654 = scalar_lea.vmem %s5, %s653
      %p655 = pneg %p231
      %p656 = pneg %p228
      %p657 = pneg %p252
      %p658 = pneg %p249
      %p659 = pneg %p273
      %p660 = pneg %p270
      %p661 = pneg %p294
      %p662 = pneg %p291
      %p663 = pneg %p315
      %p664 = pneg %p312
      %p665 = pneg %p336
      %p666 = pneg %p333
      %p667 = pneg %p357
      %p668 = pneg %p354
      %p669 = pneg %p378
      %p670 = pneg %p375
      %p671 = pneg %p406
      %p672 = pneg %p403
      %s673 = smul.u32 16, %s29
      %p674 = scmp.lt.s32.totalorder %s28, 1
      %s675 = scalar_select %p674, %s28, 1
      %p676 = scmp.lt.s32.totalorder %s673, 15
      %s677 = scalar_select %p676, %s673, 15
      %s678 = smul.addr %s677, 2
      %s679 = smul.addr %s675, 32
      %s680 = sadd.s32 %s678, %s679
      %s681 = smul.addr %s680, 8
      %s682 = scalar_lea.vmem %s13, %s681
      %s683 = smul.u32 16, %s29
      %p684 = scmp.lt.s32.totalorder %s28, 1
      %s685 = scalar_select %p684, %s28, 1
      %p686 = scmp.lt.s32.totalorder %s683, 15
      %s687 = scalar_select %p686, %s683, 15
      %s688 = smul.addr %s687, 2
      %s689 = smul.addr %s685, 32
      %s690 = sadd.s32 %s688, %s689
      %s691 = smul.addr %s690, 8
      %s692 = scalar_lea.vmem %s0, %s691
      %s693 = smul.u32 16, %s29
      %s694 = smul.u32 %s29, 2
      %s695 = ssub.s32 %s694, 1
      %p696 = scmp.gt.s32.totalorder %s695, 0
      %s697 = scalar_select %p696, %s695, 0
      %s698 = smul.u32 8, %s697
      %p699 = scmp.lt.s32.totalorder %s28, 1
      %s700 = scalar_select %p699, %s28, 1
      %p701 = scmp.lt.s32.totalorder %s698, 15
      %s702 = scalar_select %p701, %s698, 15
      %s703 = smul.addr %s702, 2
      %s704 = smul.addr %s700, 32
      %s705 = sadd.s32 %s703, %s704
      %s706 = smul.addr %s705, 8
      %s707 = scalar_lea.vmem %s1, %s706
      %s708 = smul.u32 %s29, 2
      %s709 = ssub.s32 %s708, 1
      %p710 = scmp.gt.s32.totalorder %s709, 0
      %s711 = scalar_select %p710, %s709, 0
      %s712 = smul.u32 8, %s711
      %s713 = sadd.s32 %s29, 1
      %s714 = smul.u32 %s713, 2
      %p715 = scmp.lt.s32.totalorder %s714, 1
      %s716 = scalar_select %p715, %s714, 1
      %s717 = smul.u32 8, %s716
      %p718 = scmp.lt.s32.totalorder %s28, 1
      %s719 = scalar_select %p718, %s28, 1
      %p720 = scmp.lt.s32.totalorder %s717, 15
      %s721 = scalar_select %p720, %s717, 15
      %s722 = smul.addr %s721, 2
      %s723 = smul.addr %s719, 32
      %s724 = sadd.s32 %s722, %s723
      %s725 = smul.addr %s724, 8
      %s726 = scalar_lea.vmem %s2, %s725
      %s727 = sadd.s32 %s29, 1
      %s728 = smul.u32 %s727, 2
      %p729 = scmp.lt.s32.totalorder %s728, 1
      %s730 = scalar_select %p729, %s728, 1
      %s731 = smul.u32 8, %s730
      %s732 = smul.u32 16, %s29
      %p733 = scmp.lt.s32.totalorder %s28, 1
      %s734 = scalar_select %p733, %s28, 1
      %p735 = scmp.lt.s32.totalorder %s732, 15
      %s736 = scalar_select %p735, %s732, 15
      %s737 = smul.addr %s736, 2
      %s738 = smul.addr %s734, 32
      %s739 = sadd.s32 %s737, %s738
      %s740 = smul.addr %s739, 8
      %s741 = scalar_lea.vmem %s3, %s740
      %s742 = smul.u32 16, %s29
      %s743 = smul.u32 %s29, 2
      %s744 = ssub.s32 %s743, 1
      %p745 = scmp.gt.s32.totalorder %s744, 0
      %s746 = scalar_select %p745, %s744, 0
      %s747 = smul.u32 8, %s746
      %p748 = scmp.lt.s32.totalorder %s28, 1
      %s749 = scalar_select %p748, %s28, 1
      %p750 = scmp.lt.s32.totalorder %s747, 15
      %s751 = scalar_select %p750, %s747, 15
      %s752 = smul.addr %s751, 2
      %s753 = smul.addr %s749, 32
      %s754 = sadd.s32 %s752, %s753
      %s755 = smul.addr %s754, 8
      %s756 = scalar_lea.vmem %s4, %s755
      %s757 = smul.u32 %s29, 2
      %s758 = ssub.s32 %s757, 1
      %p759 = scmp.gt.s32.totalorder %s758, 0
      %s760 = scalar_select %p759, %s758, 0
      %s761 = smul.u32 8, %s760
      %s762 = sadd.s32 %s29, 1
      %s763 = smul.u32 %s762, 2
      %p764 = scmp.lt.s32.totalorder %s763, 1
      %s765 = scalar_select %p764, %s763, 1
      %s766 = smul.u32 8, %s765
      %p767 = scmp.lt.s32.totalorder %s28, 1
      %s768 = scalar_select %p767, %s28, 1
      %p769 = scmp.lt.s32.totalorder %s766, 15
      %s770 = scalar_select %p769, %s766, 15
      %s771 = smul.addr %s770, 2
      %s772 = smul.addr %s768, 32
      %s773 = sadd.s32 %s771, %s772
      %s774 = smul.addr %s773, 8
      %s775 = scalar_lea.vmem %s5, %s774
      %s776 = sadd.s32 %s29, 1
      %s777 = smul.u32 %s776, 2
      %p778 = scmp.lt.s32.totalorder %s777, 1
      %s779 = scalar_select %p778, %s777, 1
      %s780 = smul.u32 8, %s779
      %s781 = smul.u32 16, %s29
      %p782 = scmp.lt.s32.totalorder %s28, 1
      %s783 = scalar_select %p782, %s28, 1
      %p784 = scmp.lt.s32.totalorder %s781, 15
      %s785 = scalar_select %p784, %s781, 15
      %s786 = smul.addr %s785, 2
      %s787 = smul.addr %s783, 32
      %s788 = sadd.s32 %s786, %s787
      %s789 = smul.addr %s788, 8
      %s790 = scalar_lea.vmem %s13, %s789
      %s791 = smul.u32 16, %s29
      %p792 = scmp.gt.s32.totalorder %s29, 0
      %s793 = scalar_select %p792, 1, 0
      %s794 = scvt.s32.f32 %s793
      %p795 = scmp.lt.s32.totalorder %s29, 0
      %s796 = scalar_select %p795, 1, 0
      %s797 = scvt.s32.f32 %s796
      %vm798 = vcmask 31744
      %799 = vst.msk [vmem:[#allocation2] sm:$0xff] %vm798, 0.0
      %800 = vst.msk [vmem:[#allocation2 + $0x8] sm:$0xff] %vm798, 0.0
      %801 = vst.msk [vmem:[#allocation2 + $0x10] sm:$0xff] %vm798, 0.0
      %802 = vst.msk [vmem:[#allocation2 + $0x18] sm:$0xff] %vm798, 0.0
      %803 = vst.msk [vmem:[#allocation2 + $0x20] sm:$0xff] %vm798, 0.0
      %804 = vst.msk [vmem:[#allocation2 + $0x28] sm:$0xff] %vm798, 0.0
      %805 = vst.msk [vmem:[#allocation2 + $0x30] sm:$0xff] %vm798, 0.0
      %806 = vst.msk [vmem:[#allocation2 + $0x38] sm:$0xff] %vm798, 0.0
      %807 = vst.msk [vmem:[#allocation2 + $0x40] sm:$0xff] %vm798, 0.0
      %808 = vst.msk [vmem:[#allocation2 + $0x48] sm:$0xff] %vm798, 0.0
      %809 = vst.msk [vmem:[#allocation2 + $0x50] sm:$0xff] %vm798, 0.0
      %810 = vst.msk [vmem:[#allocation2 + $0x58] sm:$0xff] %vm798, 0.0
      %811 = vst.msk [vmem:[#allocation2 + $0x60] sm:$0xff] %vm798, 0.0
      %812 = vst.msk [vmem:[#allocation2 + $0x68] sm:$0xff] %vm798, 0.0
      %813 = vst.msk [vmem:[#allocation2 + $0x70] sm:$0xff] %vm798, 0.0
      %814 = vst.msk [vmem:[#allocation2 + $0x78] sm:$0xff] %vm798, 0.0
      %815 = vst.msk [vmem:[#allocation2 + $0x80] sm:$0xff] %vm798, 0.0
      %816 = vst.msk [vmem:[#allocation2 + $0x88] sm:$0xff] %vm798, 0.0
      %817 = vst.msk [vmem:[#allocation2 + $0x90] sm:$0xff] %vm798, 0.0
      %818 = vst.msk [vmem:[#allocation2 + $0x98] sm:$0xff] %vm798, 0.0
      %819 = vst.msk [vmem:[#allocation2 + $0xa0] sm:$0xff] %vm798, 0.0
      %820 = vst.msk [vmem:[#allocation2 + $0xa8] sm:$0xff] %vm798, 0.0
      %821 = vst.msk [vmem:[#allocation2 + $0xb0] sm:$0xff] %vm798, 0.0
      %822 = vst.msk [vmem:[#allocation2 + $0xb8] sm:$0xff] %vm798, 0.0
      %823 = vst.msk [vmem:[#allocation2 + $0xc0] sm:$0xff] %vm798, 0.0
      %824 = vst.msk [vmem:[#allocation2 + $0xc8] sm:$0xff] %vm798, 0.0
      %825 = vst.msk [vmem:[#allocation2 + $0xd0] sm:$0xff] %vm798, 0.0
      %826 = vst.msk [vmem:[#allocation2 + $0xd8] sm:$0xff] %vm798, 0.0
      %827 = vst.msk [vmem:[#allocation2 + $0xe0] sm:$0xff] %vm798, 0.0
      %828 = vst.msk [vmem:[#allocation2 + $0xe8] sm:$0xff] %vm798, 0.0
      %829 = vst.msk [vmem:[#allocation2 + $0xf0] sm:$0xff] %vm798, 0.0
      %830 = vst.msk [vmem:[#allocation2 + $0xf8] sm:$0xff] %vm798, 0.0
      %831 = vst.msk [vmem:[#allocation2 + $0x100] sm:$0xff] %vm798, 0.0
      %832 = vst.msk [vmem:[#allocation2 + $0x108] sm:$0xff] %vm798, 0.0
      %833 = vst.msk [vmem:[#allocation2 + $0x110] sm:$0xff] %vm798, 0.0
      %834 = vst.msk [vmem:[#allocation2 + $0x118] sm:$0xff] %vm798, 0.0
      %835 = vst.msk [vmem:[#allocation2 + $0x120] sm:$0xff] %vm798, 0.0
      %836 = vst.msk [vmem:[#allocation2 + $0x128] sm:$0xff] %vm798, 0.0
      %837 = vst.msk [vmem:[#allocation2 + $0x130] sm:$0xff] %vm798, 0.0
      %838 = vst.msk [vmem:[#allocation2 + $0x138] sm:$0xff] %vm798, 0.0
      %839 = vst.msk [vmem:[#allocation2 + $0x140] sm:$0xff] %vm798, 0.0
      %840 = vst.msk [vmem:[#allocation2 + $0x148] sm:$0xff] %vm798, 0.0
      %841 = vst.msk [vmem:[#allocation2 + $0x150] sm:$0xff] %vm798, 0.0
      %842 = vst.msk [vmem:[#allocation2 + $0x158] sm:$0xff] %vm798, 0.0
      %843 = vst.msk [vmem:[#allocation2 + $0x160] sm:$0xff] %vm798, 0.0
      %844 = vst.msk [vmem:[#allocation2 + $0x168] sm:$0xff] %vm798, 0.0
      %845 = vst.msk [vmem:[#allocation2 + $0x170] sm:$0xff] %vm798, 0.0
      %846 = vst.msk [vmem:[#allocation2 + $0x178] sm:$0xff] %vm798, 0.0
      %847 = vst.msk [vmem:[#allocation2 + $0x180] sm:$0xff] %vm798, 0.0
      %848 = vst.msk [vmem:[#allocation2 + $0x188] sm:$0xff] %vm798, 0.0
      %849 = vst.msk [vmem:[#allocation2 + $0x190] sm:$0xff] %vm798, 0.0
      %850 = vst.msk [vmem:[#allocation2 + $0x198] sm:$0xff] %vm798, 0.0
      %851 = vst.msk [vmem:[#allocation2 + $0x1a0] sm:$0xff] %vm798, 0.0
      %852 = vst.msk [vmem:[#allocation2 + $0x1a8] sm:$0xff] %vm798, 0.0
      %853 = vst.msk [vmem:[#allocation2 + $0x1b0] sm:$0xff] %vm798, 0.0
      %854 = vst.msk [vmem:[#allocation2 + $0x1b8] sm:$0xff] %vm798, 0.0
      %855 = vst.msk [vmem:[#allocation2 + $0x1c0] sm:$0xff] %vm798, 0.0
      %856 = vst.msk [vmem:[#allocation2 + $0x1c8] sm:$0xff] %vm798, 0.0
      %857 = vst.msk [vmem:[#allocation2 + $0x1d0] sm:$0xff] %vm798, 0.0
      %858 = vst.msk [vmem:[#allocation2 + $0x1d8] sm:$0xff] %vm798, 0.0
      %859 = vst.msk [vmem:[#allocation2 + $0x1e0] sm:$0xff] %vm798, 0.0
      %860 = vst.msk [vmem:[#allocation2 + $0x1e8] sm:$0xff] %vm798, 0.0
      %861 = vst.msk [vmem:[#allocation2 + $0x1f0] sm:$0xff] %vm798, 0.0
      %862 = vst.msk [vmem:[#allocation2 + $0x1f8] sm:$0xff] %vm798, 0.0
      %863 = vst.msk [vmem:[#allocation2 + $0x200] sm:$0xff] %vm798, 0.0
      %864 = vst.msk [vmem:[#allocation2 + $0x208] sm:$0xff] %vm798, 0.0
      %865 = vst.msk [vmem:[#allocation2 + $0x210] sm:$0xff] %vm798, 0.0
      %866 = vst.msk [vmem:[#allocation2 + $0x218] sm:$0xff] %vm798, 0.0
      %867 = vst.msk [vmem:[#allocation2 + $0x220] sm:$0xff] %vm798, 0.0
      %868 = vst.msk [vmem:[#allocation2 + $0x228] sm:$0xff] %vm798, 0.0
      %869 = vst.msk [vmem:[#allocation2 + $0x230] sm:$0xff] %vm798, 0.0
      %870 = vst.msk [vmem:[#allocation2 + $0x238] sm:$0xff] %vm798, 0.0
      %v871 = vld [vmem:[%s692] sm:$0xff]
      %v872 = vld [vmem:[%s692 + $0x8] sm:$0xff]
      %v873 = vld [vmem:[%s692 + $0x10] sm:$0xff]
      %v874 = vld [vmem:[%s692 + $0x18] sm:$0xff]
      %v875 = vld [vmem:[%s692 + $0x20] sm:$0xff]
      %v876 = vld [vmem:[%s692 + $0x28] sm:$0xff]
      %v877 = vld [vmem:[%s692 + $0x30] sm:$0xff]
      %v878 = vld [vmem:[%s692 + $0x38] sm:$0xff]
      %v879 = vld [vmem:[%s692 + $0x40] sm:$0xff]
      %v880 = vld [vmem:[%s692 + $0x48] sm:$0xff]
      %v881 = vld [vmem:[%s692 + $0x50] sm:$0xff]
      %v882 = vld [vmem:[%s692 + $0x58] sm:$0xff]
      %v883 = vld [vmem:[%s692 + $0x60] sm:$0xff]
      %v884 = vld [vmem:[%s692 + $0x68] sm:$0xff]
      %v885 = vld [vmem:[%s692 + $0x70] sm:$0xff]
      %v886 = vld [vmem:[%s692 + $0x78] sm:$0xff]
      %v887 = vld [vmem:[%s692 + $0x80] sm:$0xff]
      %v888 = vld [vmem:[%s692 + $0x88] sm:$0xff]
      %v889 = vld [vmem:[%s692 + $0x90] sm:$0xff]
      %v890 = vld [vmem:[%s692 + $0x98] sm:$0xff]
      %v891 = vld [vmem:[%s692 + $0xa0] sm:$0xff]
      %v892 = vld [vmem:[%s692 + $0xa8] sm:$0xff]
      %v893 = vld [vmem:[%s692 + $0xb0] sm:$0xff]
      %v894 = vld [vmem:[%s692 + $0xb8] sm:$0xff]
      %v895 = vld [vmem:[%s692 + $0xc0] sm:$0xff]
      %v896 = vld [vmem:[%s692 + $0xc8] sm:$0xff]
      %v897 = vld [vmem:[%s692 + $0xd0] sm:$0xff]
      %v898 = vld [vmem:[%s692 + $0xd8] sm:$0xff]
      %v899 = vld [vmem:[%s692 + $0xe0] sm:$0xff]
      %v900 = vld [vmem:[%s692 + $0xe8] sm:$0xff]
      %v901 = vld [vmem:[%s692 + $0xf0] sm:$0xff]
      %v902 = vld [vmem:[%s692 + $0xf8] sm:$0xff]
      %s903 = scalar_lea.vmem [#allocation2], 32
      %904 = vst.msk [vmem:[%s903 + $0x8] sm:$0xff] %vm798, %v871
      %905 = vst.msk [vmem:[%s903 + $0x10] sm:$0xff] %vm798, %v872
      %906 = vst.msk [vmem:[%s903 + $0x28] sm:$0xff] %vm798, %v873
      %907 = vst.msk [vmem:[%s903 + $0x30] sm:$0xff] %vm798, %v874
      %908 = vst.msk [vmem:[%s903 + $0x48] sm:$0xff] %vm798, %v875
      %909 = vst.msk [vmem:[%s903 + $0x50] sm:$0xff] %vm798, %v876
      %910 = vst.msk [vmem:[%s903 + $0x68] sm:$0xff] %vm798, %v877
      %911 = vst.msk [vmem:[%s903 + $0x70] sm:$0xff] %vm798, %v878
      %912 = vst.msk [vmem:[%s903 + $0x88] sm:$0xff] %vm798, %v879
      %913 = vst.msk [vmem:[%s903 + $0x90] sm:$0xff] %vm798, %v880
      %914 = vst.msk [vmem:[%s903 + $0xa8] sm:$0xff] %vm798, %v881
      %915 = vst.msk [vmem:[%s903 + $0xb0] sm:$0xff] %vm798, %v882
      %916 = vst.msk [vmem:[%s903 + $0xc8] sm:$0xff] %vm798, %v883
      %917 = vst.msk [vmem:[%s903 + $0xd0] sm:$0xff] %vm798, %v884
      %918 = vst.msk [vmem:[%s903 + $0xe8] sm:$0xff] %vm798, %v885
      %919 = vst.msk [vmem:[%s903 + $0xf0] sm:$0xff] %vm798, %v886
      %920 = vst.msk [vmem:[%s903 + $0x108] sm:$0xff] %vm798, %v887
      %921 = vst.msk [vmem:[%s903 + $0x110] sm:$0xff] %vm798, %v888
      %922 = vst.msk [vmem:[%s903 + $0x128] sm:$0xff] %vm798, %v889
      %923 = vst.msk [vmem:[%s903 + $0x130] sm:$0xff] %vm798, %v890
      %924 = vst.msk [vmem:[%s903 + $0x148] sm:$0xff] %vm798, %v891
      %925 = vst.msk [vmem:[%s903 + $0x150] sm:$0xff] %vm798, %v892
      %926 = vst.msk [vmem:[%s903 + $0x168] sm:$0xff] %vm798, %v893
      %927 = vst.msk [vmem:[%s903 + $0x170] sm:$0xff] %vm798, %v894
      %928 = vst.msk [vmem:[%s903 + $0x188] sm:$0xff] %vm798, %v895
      %929 = vst.msk [vmem:[%s903 + $0x190] sm:$0xff] %vm798, %v896
      %930 = vst.msk [vmem:[%s903 + $0x1a8] sm:$0xff] %vm798, %v897
      %931 = vst.msk [vmem:[%s903 + $0x1b0] sm:$0xff] %vm798, %v898
      %932 = vst.msk [vmem:[%s903 + $0x1c8] sm:$0xff] %vm798, %v899
      %933 = vst.msk [vmem:[%s903 + $0x1d0] sm:$0xff] %vm798, %v900
      %934 = vst.msk [vmem:[%s903 + $0x1e8] sm:$0xff] %vm798, %v901
      %935 = vst.msk [vmem:[%s903 + $0x1f0] sm:$0xff] %vm798, %v902
      %s936 = scalar_lea.vmem %s707, 112
      %v937 = vld [vmem:[%s936] sm:$0xff]
      %v938 = vld [vmem:[%s936 + $0x8] sm:$0xff]
      %v939 = vstv %s794
      %v940 = vmul.f32 %v937, %v939
      %v941 = vmul.f32 %v938, %v939
      %942 = vst.msk [vmem:[#allocation2 + $0x8] sm:$0xff] %vm798, %v940
      %943 = vst.msk [vmem:[#allocation2 + $0x10] sm:$0xff] %vm798, %v941
      %v944 = vld [vmem:[%s726] sm:$0xff]
      %v945 = vld [vmem:[%s726 + $0x8] sm:$0xff]
      %v946 = vstv %s797
      %v947 = vmul.f32 %v944, %v946
      %v948 = vmul.f32 %v945, %v946
      %s949 = scalar_lea.vmem [#allocation2], 544
      %950 = vst.msk [vmem:[%s949 + $0x8] sm:$0xff] %vm798, %v947
      %951 = vst.msk [vmem:[%s949 + $0x10] sm:$0xff] %vm798, %v948
      %952 = vst.msk [vmem:[#allocation3] sm:$0xff] %vm798, 0.0
      %953 = vst.msk [vmem:[#allocation3 + $0x8] sm:$0xff] %vm798, 0.0
      %954 = vst.msk [vmem:[#allocation3 + $0x10] sm:$0xff] %vm798, 0.0
      %955 = vst.msk [vmem:[#allocation3 + $0x18] sm:$0xff] %vm798, 0.0
      %956 = vst.msk [vmem:[#allocation3 + $0x20] sm:$0xff] %vm798, 0.0
      %957 = vst.msk [vmem:[#allocation3 + $0x28] sm:$0xff] %vm798, 0.0
      %958 = vst.msk [vmem:[#allocation3 + $0x30] sm:$0xff] %vm798, 0.0
      %959 = vst.msk [vmem:[#allocation3 + $0x38] sm:$0xff] %vm798, 0.0
      %960 = vst.msk [vmem:[#allocation3 + $0x40] sm:$0xff] %vm798, 0.0
      %961 = vst.msk [vmem:[#allocation3 + $0x48] sm:$0xff] %vm798, 0.0
      %962 = vst.msk [vmem:[#allocation3 + $0x50] sm:$0xff] %vm798, 0.0
      %963 = vst.msk [vmem:[#allocation3 + $0x58] sm:$0xff] %vm798, 0.0
      %964 = vst.msk [vmem:[#allocation3 + $0x60] sm:$0xff] %vm798, 0.0
      %965 = vst.msk [vmem:[#allocation3 + $0x68] sm:$0xff] %vm798, 0.0
      %966 = vst.msk [vmem:[#allocation3 + $0x70] sm:$0xff] %vm798, 0.0
      %967 = vst.msk [vmem:[#allocation3 + $0x78] sm:$0xff] %vm798, 0.0
      %968 = vst.msk [vmem:[#allocation3 + $0x80] sm:$0xff] %vm798, 0.0
      %969 = vst.msk [vmem:[#allocation3 + $0x88] sm:$0xff] %vm798, 0.0
      %970 = vst.msk [vmem:[#allocation3 + $0x90] sm:$0xff] %vm798, 0.0
      %971 = vst.msk [vmem:[#allocation3 + $0x98] sm:$0xff] %vm798, 0.0
      %972 = vst.msk [vmem:[#allocation3 + $0xa0] sm:$0xff] %vm798, 0.0
      %973 = vst.msk [vmem:[#allocation3 + $0xa8] sm:$0xff] %vm798, 0.0
      %974 = vst.msk [vmem:[#allocation3 + $0xb0] sm:$0xff] %vm798, 0.0
      %975 = vst.msk [vmem:[#allocation3 + $0xb8] sm:$0xff] %vm798, 0.0
      %976 = vst.msk [vmem:[#allocation3 + $0xc0] sm:$0xff] %vm798, 0.0
      %977 = vst.msk [vmem:[#allocation3 + $0xc8] sm:$0xff] %vm798, 0.0
      %978 = vst.msk [vmem:[#allocation3 + $0xd0] sm:$0xff] %vm798, 0.0
      %979 = vst.msk [vmem:[#allocation3 + $0xd8] sm:$0xff] %vm798, 0.0
      %980 = vst.msk [vmem:[#allocation3 + $0xe0] sm:$0xff] %vm798, 0.0
      %981 = vst.msk [vmem:[#allocation3 + $0xe8] sm:$0xff] %vm798, 0.0
      %982 = vst.msk [vmem:[#allocation3 + $0xf0] sm:$0xff] %vm798, 0.0
      %983 = vst.msk [vmem:[#allocation3 + $0xf8] sm:$0xff] %vm798, 0.0
      %984 = vst.msk [vmem:[#allocation3 + $0x100] sm:$0xff] %vm798, 0.0
      %985 = vst.msk [vmem:[#allocation3 + $0x108] sm:$0xff] %vm798, 0.0
      %986 = vst.msk [vmem:[#allocation3 + $0x110] sm:$0xff] %vm798, 0.0
      %987 = vst.msk [vmem:[#allocation3 + $0x118] sm:$0xff] %vm798, 0.0
      %988 = vst.msk [vmem:[#allocation3 + $0x120] sm:$0xff] %vm798, 0.0
      %989 = vst.msk [vmem:[#allocation3 + $0x128] sm:$0xff] %vm798, 0.0
      %990 = vst.msk [vmem:[#allocation3 + $0x130] sm:$0xff] %vm798, 0.0
      %991 = vst.msk [vmem:[#allocation3 + $0x138] sm:$0xff] %vm798, 0.0
      %992 = vst.msk [vmem:[#allocation3 + $0x140] sm:$0xff] %vm798, 0.0
      %993 = vst.msk [vmem:[#allocation3 + $0x148] sm:$0xff] %vm798, 0.0
      %994 = vst.msk [vmem:[#allocation3 + $0x150] sm:$0xff] %vm798, 0.0
      %995 = vst.msk [vmem:[#allocation3 + $0x158] sm:$0xff] %vm798, 0.0
      %996 = vst.msk [vmem:[#allocation3 + $0x160] sm:$0xff] %vm798, 0.0
      %997 = vst.msk [vmem:[#allocation3 + $0x168] sm:$0xff] %vm798, 0.0
      %998 = vst.msk [vmem:[#allocation3 + $0x170] sm:$0xff] %vm798, 0.0
      %999 = vst.msk [vmem:[#allocation3 + $0x178] sm:$0xff] %vm798, 0.0
      %1000 = vst.msk [vmem:[#allocation3 + $0x180] sm:$0xff] %vm798, 0.0
      %1001 = vst.msk [vmem:[#allocation3 + $0x188] sm:$0xff] %vm798, 0.0
      %1002 = vst.msk [vmem:[#allocation3 + $0x190] sm:$0xff] %vm798, 0.0
      %1003 = vst.msk [vmem:[#allocation3 + $0x198] sm:$0xff] %vm798, 0.0
      %1004 = vst.msk [vmem:[#allocation3 + $0x1a0] sm:$0xff] %vm798, 0.0
      %1005 = vst.msk [vmem:[#allocation3 + $0x1a8] sm:$0xff] %vm798, 0.0
      %1006 = vst.msk [vmem:[#allocation3 + $0x1b0] sm:$0xff] %vm798, 0.0
      %1007 = vst.msk [vmem:[#allocation3 + $0x1b8] sm:$0xff] %vm798, 0.0
      %1008 = vst.msk [vmem:[#allocation3 + $0x1c0] sm:$0xff] %vm798, 0.0
      %1009 = vst.msk [vmem:[#allocation3 + $0x1c8] sm:$0xff] %vm798, 0.0
      %1010 = vst.msk [vmem:[#allocation3 + $0x1d0] sm:$0xff] %vm798, 0.0
      %1011 = vst.msk [vmem:[#allocation3 + $0x1d8] sm:$0xff] %vm798, 0.0
      %1012 = vst.msk [vmem:[#allocation3 + $0x1e0] sm:$0xff] %vm798, 0.0
      %1013 = vst.msk [vmem:[#allocation3 + $0x1e8] sm:$0xff] %vm798, 0.0
      %1014 = vst.msk [vmem:[#allocation3 + $0x1f0] sm:$0xff] %vm798, 0.0
      %1015 = vst.msk [vmem:[#allocation3 + $0x1f8] sm:$0xff] %vm798, 0.0
      %1016 = vst.msk [vmem:[#allocation3 + $0x200] sm:$0xff] %vm798, 0.0
      %1017 = vst.msk [vmem:[#allocation3 + $0x208] sm:$0xff] %vm798, 0.0
      %1018 = vst.msk [vmem:[#allocation3 + $0x210] sm:$0xff] %vm798, 0.0
      %1019 = vst.msk [vmem:[#allocation3 + $0x218] sm:$0xff] %vm798, 0.0
      %1020 = vst.msk [vmem:[#allocation3 + $0x220] sm:$0xff] %vm798, 0.0
      %1021 = vst.msk [vmem:[#allocation3 + $0x228] sm:$0xff] %vm798, 0.0
      %1022 = vst.msk [vmem:[#allocation3 + $0x230] sm:$0xff] %vm798, 0.0
      %1023 = vst.msk [vmem:[#allocation3 + $0x238] sm:$0xff] %vm798, 0.0
      %v1024 = vld [vmem:[%s741] sm:$0xff]
      %v1025 = vld [vmem:[%s741 + $0x8] sm:$0xff]
      %v1026 = vld [vmem:[%s741 + $0x10] sm:$0xff]
      %v1027 = vld [vmem:[%s741 + $0x18] sm:$0xff]
      %v1028 = vld [vmem:[%s741 + $0x20] sm:$0xff]
      %v1029 = vld [vmem:[%s741 + $0x28] sm:$0xff]
      %v1030 = vld [vmem:[%s741 + $0x30] sm:$0xff]
      %v1031 = vld [vmem:[%s741 + $0x38] sm:$0xff]
      %v1032 = vld [vmem:[%s741 + $0x40] sm:$0xff]
      %v1033 = vld [vmem:[%s741 + $0x48] sm:$0xff]
      %v1034 = vld [vmem:[%s741 + $0x50] sm:$0xff]
      %v1035 = vld [vmem:[%s741 + $0x58] sm:$0xff]
      %v1036 = vld [vmem:[%s741 + $0x60] sm:$0xff]
      %v1037 = vld [vmem:[%s741 + $0x68] sm:$0xff]
      %v1038 = vld [vmem:[%s741 + $0x70] sm:$0xff]
      %v1039 = vld [vmem:[%s741 + $0x78] sm:$0xff]
      %v1040 = vld [vmem:[%s741 + $0x80] sm:$0xff]
      %v1041 = vld [vmem:[%s741 + $0x88] sm:$0xff]
      %v1042 = vld [vmem:[%s741 + $0x90] sm:$0xff]
      %v1043 = vld [vmem:[%s741 + $0x98] sm:$0xff]
      %v1044 = vld [vmem:[%s741 + $0xa0] sm:$0xff]
      %v1045 = vld [vmem:[%s741 + $0xa8] sm:$0xff]
      %v1046 = vld [vmem:[%s741 + $0xb0] sm:$0xff]
      %v1047 = vld [vmem:[%s741 + $0xb8] sm:$0xff]
      %v1048 = vld [vmem:[%s741 + $0xc0] sm:$0xff]
      %v1049 = vld [vmem:[%s741 + $0xc8] sm:$0xff]
      %v1050 = vld [vmem:[%s741 + $0xd0] sm:$0xff]
      %v1051 = vld [vmem:[%s741 + $0xd8] sm:$0xff]
      %v1052 = vld [vmem:[%s741 + $0xe0] sm:$0xff]
      %v1053 = vld [vmem:[%s741 + $0xe8] sm:$0xff]
      %v1054 = vld [vmem:[%s741 + $0xf0] sm:$0xff]
      %v1055 = vld [vmem:[%s741 + $0xf8] sm:$0xff]
      %s1056 = scalar_lea.vmem [#allocation3], 32
      %1057 = vst.msk [vmem:[%s1056 + $0x8] sm:$0xff] %vm798, %v1024
      %1058 = vst.msk [vmem:[%s1056 + $0x10] sm:$0xff] %vm798, %v1025
      %1059 = vst.msk [vmem:[%s1056 + $0x28] sm:$0xff] %vm798, %v1026
      %1060 = vst.msk [vmem:[%s1056 + $0x30] sm:$0xff] %vm798, %v1027
      %1061 = vst.msk [vmem:[%s1056 + $0x48] sm:$0xff] %vm798, %v1028
      %1062 = vst.msk [vmem:[%s1056 + $0x50] sm:$0xff] %vm798, %v1029
      %1063 = vst.msk [vmem:[%s1056 + $0x68] sm:$0xff] %vm798, %v1030
      %1064 = vst.msk [vmem:[%s1056 + $0x70] sm:$0xff] %vm798, %v1031
      %1065 = vst.msk [vmem:[%s1056 + $0x88] sm:$0xff] %vm798, %v1032
      %1066 = vst.msk [vmem:[%s1056 + $0x90] sm:$0xff] %vm798, %v1033
      %1067 = vst.msk [vmem:[%s1056 + $0xa8] sm:$0xff] %vm798, %v1034
      %1068 = vst.msk [vmem:[%s1056 + $0xb0] sm:$0xff] %vm798, %v1035
      %1069 = vst.msk [vmem:[%s1056 + $0xc8] sm:$0xff] %vm798, %v1036
      %1070 = vst.msk [vmem:[%s1056 + $0xd0] sm:$0xff] %vm798, %v1037
      %1071 = vst.msk [vmem:[%s1056 + $0xe8] sm:$0xff] %vm798, %v1038
      %1072 = vst.msk [vmem:[%s1056 + $0xf0] sm:$0xff] %vm798, %v1039
      %1073 = vst.msk [vmem:[%s1056 + $0x108] sm:$0xff] %vm798, %v1040
      %1074 = vst.msk [vmem:[%s1056 + $0x110] sm:$0xff] %vm798, %v1041
      %1075 = vst.msk [vmem:[%s1056 + $0x128] sm:$0xff] %vm798, %v1042
      %1076 = vst.msk [vmem:[%s1056 + $0x130] sm:$0xff] %vm798, %v1043
      %1077 = vst.msk [vmem:[%s1056 + $0x148] sm:$0xff] %vm798, %v1044
      %1078 = vst.msk [vmem:[%s1056 + $0x150] sm:$0xff] %vm798, %v1045
      %1079 = vst.msk [vmem:[%s1056 + $0x168] sm:$0xff] %vm798, %v1046
      %1080 = vst.msk [vmem:[%s1056 + $0x170] sm:$0xff] %vm798, %v1047
      %1081 = vst.msk [vmem:[%s1056 + $0x188] sm:$0xff] %vm798, %v1048
      %1082 = vst.msk [vmem:[%s1056 + $0x190] sm:$0xff] %vm798, %v1049
      %1083 = vst.msk [vmem:[%s1056 + $0x1a8] sm:$0xff] %vm798, %v1050
      %1084 = vst.msk [vmem:[%s1056 + $0x1b0] sm:$0xff] %vm798, %v1051
      %1085 = vst.msk [vmem:[%s1056 + $0x1c8] sm:$0xff] %vm798, %v1052
      %1086 = vst.msk [vmem:[%s1056 + $0x1d0] sm:$0xff] %vm798, %v1053
      %1087 = vst.msk [vmem:[%s1056 + $0x1e8] sm:$0xff] %vm798, %v1054
      %1088 = vst.msk [vmem:[%s1056 + $0x1f0] sm:$0xff] %vm798, %v1055
      %s1089 = scalar_lea.vmem %s756, 112
      %v1090 = vld [vmem:[%s1089] sm:$0xff]
      %v1091 = vld [vmem:[%s1089 + $0x8] sm:$0xff]
      %v1092 = vmul.f32 %v1090, %v939
      %v1093 = vmul.f32 %v1091, %v939
      %1094 = vst.msk [vmem:[#allocation3 + $0x8] sm:$0xff] %vm798, %v1092
      %1095 = vst.msk [vmem:[#allocation3 + $0x10] sm:$0xff] %vm798, %v1093
      %v1096 = vld [vmem:[%s775] sm:$0xff]
      %v1097 = vld [vmem:[%s775 + $0x8] sm:$0xff]
      %v1098 = vmul.f32 %v1096, %v946
      %v1099 = vmul.f32 %v1097, %v946
      %s1100 = scalar_lea.vmem [#allocation3], 544
      %1101 = vst.msk [vmem:[%s1100 + $0x8] sm:$0xff] %vm798, %v1098
      %1102 = vst.msk [vmem:[%s1100 + $0x10] sm:$0xff] %vm798, %v1099
      %v1103 = vld [vmem:[#allocation2 + $0x7] sm:$0xff]
      %v1104 = vld [vmem:[#allocation2 + $0xf] sm:$0xff]
      %v1105 = vld [vmem:[#allocation2 + $0x27] sm:$0xff]
      %v1106 = vld [vmem:[#allocation2 + $0x2f] sm:$0xff]
      %v1107 = vld [vmem:[#allocation2 + $0x47] sm:$0xff]
      %v1108 = vld [vmem:[#allocation2 + $0x4f] sm:$0xff]
      %v1109 = vld [vmem:[#allocation2 + $0x67] sm:$0xff]
      %v1110 = vld [vmem:[#allocation2 + $0x6f] sm:$0xff]
      %v1111 = vld [vmem:[#allocation2 + $0x87] sm:$0xff]
      %v1112 = vld [vmem:[#allocation2 + $0x8f] sm:$0xff]
      %v1113 = vld [vmem:[#allocation2 + $0xa7] sm:$0xff]
      %v1114 = vld [vmem:[#allocation2 + $0xaf] sm:$0xff]
      %v1115 = vld [vmem:[#allocation2 + $0xc7] sm:$0xff]
      %v1116 = vld [vmem:[#allocation2 + $0xcf] sm:$0xff]
      %v1117 = vld [vmem:[#allocation2 + $0xe7] sm:$0xff]
      %v1118 = vld [vmem:[#allocation2 + $0xef] sm:$0xff]
      %v1119 = vld [vmem:[#allocation2 + $0x107] sm:$0xff]
      %v1120 = vld [vmem:[#allocation2 + $0x10f] sm:$0xff]
      %v1121 = vld [vmem:[#allocation2 + $0x127] sm:$0xff]
      %v1122 = vld [vmem:[#allocation2 + $0x12f] sm:$0xff]
      %v1123 = vld [vmem:[#allocation2 + $0x147] sm:$0xff]
      %v1124 = vld [vmem:[#allocation2 + $0x14f] sm:$0xff]
      %v1125 = vld [vmem:[#allocation2 + $0x167] sm:$0xff]
      %v1126 = vld [vmem:[#allocation2 + $0x16f] sm:$0xff]
      %v1127 = vld [vmem:[#allocation2 + $0x187] sm:$0xff]
      %v1128 = vld [vmem:[#allocation2 + $0x18f] sm:$0xff]
      %v1129 = vld [vmem:[#allocation2 + $0x1a7] sm:$0xff]
      %v1130 = vld [vmem:[#allocation2 + $0x1af] sm:$0xff]
      %v1131 = vld [vmem:[#allocation2 + $0x1c7] sm:$0xff]
      %v1132 = vld [vmem:[#allocation2 + $0x1cf] sm:$0xff]
      %v1133 = vld [vmem:[#allocation2 + $0x1e7] sm:$0xff]
      %v1134 = vld [vmem:[#allocation2 + $0x1ef] sm:$0xff]
      %v1135 = vld [vmem:[%s6] sm:$0x1]
      %v1136 = vperm.slane %v1135, 0
      %v1137 = vmul.f32 %v1103, %v1136
      %v1138 = vmul.f32 %v1104, %v1136
      %v1139 = vmul.f32 %v1105, %v1136
      %v1140 = vmul.f32 %v1106, %v1136
      %v1141 = vmul.f32 %v1107, %v1136
      %v1142 = vmul.f32 %v1108, %v1136
      %v1143 = vmul.f32 %v1109, %v1136
      %v1144 = vmul.f32 %v1110, %v1136
      %v1145 = vmul.f32 %v1111, %v1136
      %v1146 = vmul.f32 %v1112, %v1136
      %v1147 = vmul.f32 %v1113, %v1136
      %v1148 = vmul.f32 %v1114, %v1136
      %v1149 = vmul.f32 %v1115, %v1136
      %v1150 = vmul.f32 %v1116, %v1136
      %v1151 = vmul.f32 %v1117, %v1136
      %v1152 = vmul.f32 %v1118, %v1136
      %v1153 = vmul.f32 %v1119, %v1136
      %v1154 = vmul.f32 %v1120, %v1136
      %v1155 = vmul.f32 %v1121, %v1136
      %v1156 = vmul.f32 %v1122, %v1136
      %v1157 = vmul.f32 %v1123, %v1136
      %v1158 = vmul.f32 %v1124, %v1136
      %v1159 = vmul.f32 %v1125, %v1136
      %v1160 = vmul.f32 %v1126, %v1136
      %v1161 = vmul.f32 %v1127, %v1136
      %v1162 = vmul.f32 %v1128, %v1136
      %v1163 = vmul.f32 %v1129, %v1136
      %v1164 = vmul.f32 %v1130, %v1136
      %v1165 = vmul.f32 %v1131, %v1136
      %v1166 = vmul.f32 %v1132, %v1136
      %v1167 = vmul.f32 %v1133, %v1136
      %v1168 = vmul.f32 %v1134, %v1136
      %v1169 = vadd.f32 %v1137, 0.0
      %v1170 = vadd.f32 %v1138, 0.0
      %v1171 = vadd.f32 %v1139, 0.0
      %v1172 = vadd.f32 %v1140, 0.0
      %v1173 = vadd.f32 %v1141, 0.0
      %v1174 = vadd.f32 %v1142, 0.0
      %v1175 = vadd.f32 %v1143, 0.0
      %v1176 = vadd.f32 %v1144, 0.0
      %v1177 = vadd.f32 %v1145, 0.0
      %v1178 = vadd.f32 %v1146, 0.0
      %v1179 = vadd.f32 %v1147, 0.0
      %v1180 = vadd.f32 %v1148, 0.0
      %v1181 = vadd.f32 %v1149, 0.0
      %v1182 = vadd.f32 %v1150, 0.0
      %v1183 = vadd.f32 %v1151, 0.0
      %v1184 = vadd.f32 %v1152, 0.0
      %v1185 = vadd.f32 %v1153, 0.0
      %v1186 = vadd.f32 %v1154, 0.0
      %v1187 = vadd.f32 %v1155, 0.0
      %v1188 = vadd.f32 %v1156, 0.0
      %v1189 = vadd.f32 %v1157, 0.0
      %v1190 = vadd.f32 %v1158, 0.0
      %v1191 = vadd.f32 %v1159, 0.0
      %v1192 = vadd.f32 %v1160, 0.0
      %v1193 = vadd.f32 %v1161, 0.0
      %v1194 = vadd.f32 %v1162, 0.0
      %v1195 = vadd.f32 %v1163, 0.0
      %v1196 = vadd.f32 %v1164, 0.0
      %v1197 = vadd.f32 %v1165, 0.0
      %v1198 = vadd.f32 %v1166, 0.0
      %v1199 = vadd.f32 %v1167, 0.0
      %v1200 = vadd.f32 %v1168, 0.0
      %v1201 = vld [vmem:[#allocation2 + $0x8] sm:$0xff]
      %v1202 = vld [vmem:[#allocation2 + $0x10] sm:$0xff]
      %v1203 = vld [vmem:[#allocation2 + $0x28] sm:$0xff]
      %v1204 = vld [vmem:[#allocation2 + $0x30] sm:$0xff]
      %v1205 = vld [vmem:[#allocation2 + $0x48] sm:$0xff]
      %v1206 = vld [vmem:[#allocation2 + $0x50] sm:$0xff]
      %v1207 = vld [vmem:[#allocation2 + $0x68] sm:$0xff]
      %v1208 = vld [vmem:[#allocation2 + $0x70] sm:$0xff]
      %v1209 = vld [vmem:[#allocation2 + $0x88] sm:$0xff]
      %v1210 = vld [vmem:[#allocation2 + $0x90] sm:$0xff]
      %v1211 = vld [vmem:[#allocation2 + $0xa8] sm:$0xff]
      %v1212 = vld [vmem:[#allocation2 + $0xb0] sm:$0xff]
      %v1213 = vld [vmem:[#allocation2 + $0xc8] sm:$0xff]
      %v1214 = vld [vmem:[#allocation2 + $0xd0] sm:$0xff]
      %v1215 = vld [vmem:[#allocation2 + $0xe8] sm:$0xff]
      %v1216 = vld [vmem:[#allocation2 + $0xf0] sm:$0xff]
      %v1217 = vld [vmem:[#allocation2 + $0x108] sm:$0xff]
      %v1218 = vld [vmem:[#allocation2 + $0x110] sm:$0xff]
      %v1219 = vld [vmem:[#allocation2 + $0x128] sm:$0xff]
      %v1220 = vld [vmem:[#allocation2 + $0x130] sm:$0xff]
      %v1221 = vld [vmem:[#allocation2 + $0x148] sm:$0xff]
      %v1222 = vld [vmem:[#allocation2 + $0x150] sm:$0xff]
      %v1223 = vld [vmem:[#allocation2 + $0x168] sm:$0xff]
      %v1224 = vld [vmem:[#allocation2 + $0x170] sm:$0xff]
      %v1225 = vld [vmem:[#allocation2 + $0x188] sm:$0xff]
      %v1226 = vld [vmem:[#allocation2 + $0x190] sm:$0xff]
      %v1227 = vld [vmem:[#allocation2 + $0x1a8] sm:$0xff]
      %v1228 = vld [vmem:[#allocation2 + $0x1b0] sm:$0xff]
      %v1229 = vld [vmem:[#allocation2 + $0x1c8] sm:$0xff]
      %v1230 = vld [vmem:[#allocation2 + $0x1d0] sm:$0xff]
      %v1231 = vld [vmem:[#allocation2 + $0x1e8] sm:$0xff]
      %v1232 = vld [vmem:[#allocation2 + $0x1f0] sm:$0xff]
      %v1233 = vld [vmem:[%s6 + $0x1] sm:$0x1]
      %v1234 = vperm.slane %v1233, 0
      %v1235 = vmul.f32 %v1201, %v1234
      %v1236 = vmul.f32 %v1202, %v1234
      %v1237 = vmul.f32 %v1203, %v1234
      %v1238 = vmul.f32 %v1204, %v1234
      %v1239 = vmul.f32 %v1205, %v1234
      %v1240 = vmul.f32 %v1206, %v1234
      %v1241 = vmul.f32 %v1207, %v1234
      %v1242 = vmul.f32 %v1208, %v1234
      %v1243 = vmul.f32 %v1209, %v1234
      %v1244 = vmul.f32 %v1210, %v1234
      %v1245 = vmul.f32 %v1211, %v1234
      %v1246 = vmul.f32 %v1212, %v1234
      %v1247 = vmul.f32 %v1213, %v1234
      %v1248 = vmul.f32 %v1214, %v1234
      %v1249 = vmul.f32 %v1215, %v1234
      %v1250 = vmul.f32 %v1216, %v1234
      %v1251 = vmul.f32 %v1217, %v1234
      %v1252 = vmul.f32 %v1218, %v1234
      %v1253 = vmul.f32 %v1219, %v1234
      %v1254 = vmul.f32 %v1220, %v1234
      %v1255 = vmul.f32 %v1221, %v1234
      %v1256 = vmul.f32 %v1222, %v1234
      %v1257 = vmul.f32 %v1223, %v1234
      %v1258 = vmul.f32 %v1224, %v1234
      %v1259 = vmul.f32 %v1225, %v1234
      %v1260 = vmul.f32 %v1226, %v1234
      %v1261 = vmul.f32 %v1227, %v1234
      %v1262 = vmul.f32 %v1228, %v1234
      %v1263 = vmul.f32 %v1229, %v1234
      %v1264 = vmul.f32 %v1230, %v1234
      %v1265 = vmul.f32 %v1231, %v1234
      %v1266 = vmul.f32 %v1232, %v1234
      %v1267 = vadd.f32 %v1169, %v1235
      %v1268 = vadd.f32 %v1170, %v1236
      %v1269 = vadd.f32 %v1171, %v1237
      %v1270 = vadd.f32 %v1172, %v1238
      %v1271 = vadd.f32 %v1173, %v1239
      %v1272 = vadd.f32 %v1174, %v1240
      %v1273 = vadd.f32 %v1175, %v1241
      %v1274 = vadd.f32 %v1176, %v1242
      %v1275 = vadd.f32 %v1177, %v1243
      %v1276 = vadd.f32 %v1178, %v1244
      %v1277 = vadd.f32 %v1179, %v1245
      %v1278 = vadd.f32 %v1180, %v1246
      %v1279 = vadd.f32 %v1181, %v1247
      %v1280 = vadd.f32 %v1182, %v1248
      %v1281 = vadd.f32 %v1183, %v1249
      %v1282 = vadd.f32 %v1184, %v1250
      %v1283 = vadd.f32 %v1185, %v1251
      %v1284 = vadd.f32 %v1186, %v1252
      %v1285 = vadd.f32 %v1187, %v1253
      %v1286 = vadd.f32 %v1188, %v1254
      %v1287 = vadd.f32 %v1189, %v1255
      %v1288 = vadd.f32 %v1190, %v1256
      %v1289 = vadd.f32 %v1191, %v1257
      %v1290 = vadd.f32 %v1192, %v1258
      %v1291 = vadd.f32 %v1193, %v1259
      %v1292 = vadd.f32 %v1194, %v1260
      %v1293 = vadd.f32 %v1195, %v1261
      %v1294 = vadd.f32 %v1196, %v1262
      %v1295 = vadd.f32 %v1197, %v1263
      %v1296 = vadd.f32 %v1198, %v1264
      %v1297 = vadd.f32 %v1199, %v1265
      %v1298 = vadd.f32 %v1200, %v1266
      %v1299 = vld [vmem:[#allocation2 + $0x9] sm:$0xff]
      %v1300 = vld [vmem:[#allocation2 + $0x11] sm:$0xff]
      %v1301 = vld [vmem:[#allocation2 + $0x29] sm:$0xff]
      %v1302 = vld [vmem:[#allocation2 + $0x31] sm:$0xff]
      %v1303 = vld [vmem:[#allocation2 + $0x49] sm:$0xff]
      %v1304 = vld [vmem:[#allocation2 + $0x51] sm:$0xff]
      %v1305 = vld [vmem:[#allocation2 + $0x69] sm:$0xff]
      %v1306 = vld [vmem:[#allocation2 + $0x71] sm:$0xff]
      %v1307 = vld [vmem:[#allocation2 + $0x89] sm:$0xff]
      %v1308 = vld [vmem:[#allocation2 + $0x91] sm:$0xff]
      %v1309 = vld [vmem:[#allocation2 + $0xa9] sm:$0xff]
      %v1310 = vld [vmem:[#allocation2 + $0xb1] sm:$0xff]
      %v1311 = vld [vmem:[#allocation2 + $0xc9] sm:$0xff]
      %v1312 = vld [vmem:[#allocation2 + $0xd1] sm:$0xff]
      %v1313 = vld [vmem:[#allocation2 + $0xe9] sm:$0xff]
      %v1314 = vld [vmem:[#allocation2 + $0xf1] sm:$0xff]
      %v1315 = vld [vmem:[#allocation2 + $0x109] sm:$0xff]
      %v1316 = vld [vmem:[#allocation2 + $0x111] sm:$0xff]
      %v1317 = vld [vmem:[#allocation2 + $0x129] sm:$0xff]
      %v1318 = vld [vmem:[#allocation2 + $0x131] sm:$0xff]
      %v1319 = vld [vmem:[#allocation2 + $0x149] sm:$0xff]
      %v1320 = vld [vmem:[#allocation2 + $0x151] sm:$0xff]
      %v1321 = vld [vmem:[#allocation2 + $0x169] sm:$0xff]
      %v1322 = vld [vmem:[#allocation2 + $0x171] sm:$0xff]
      %v1323 = vld [vmem:[#allocation2 + $0x189] sm:$0xff]
      %v1324 = vld [vmem:[#allocation2 + $0x191] sm:$0xff]
      %v1325 = vld [vmem:[#allocation2 + $0x1a9] sm:$0xff]
      %v1326 = vld [vmem:[#allocation2 + $0x1b1] sm:$0xff]
      %v1327 = vld [vmem:[#allocation2 + $0x1c9] sm:$0xff]
      %v1328 = vld [vmem:[#allocation2 + $0x1d1] sm:$0xff]
      %v1329 = vld [vmem:[#allocation2 + $0x1e9] sm:$0xff]
      %v1330 = vld [vmem:[#allocation2 + $0x1f1] sm:$0xff]
      %v1331 = vld [vmem:[%s6 + $0x2] sm:$0x1]
      %v1332 = vperm.slane %v1331, 0
      %v1333 = vmul.f32 %v1299, %v1332
      %v1334 = vmul.f32 %v1300, %v1332
      %v1335 = vmul.f32 %v1301, %v1332
      %v1336 = vmul.f32 %v1302, %v1332
      %v1337 = vmul.f32 %v1303, %v1332
      %v1338 = vmul.f32 %v1304, %v1332
      %v1339 = vmul.f32 %v1305, %v1332
      %v1340 = vmul.f32 %v1306, %v1332
      %v1341 = vmul.f32 %v1307, %v1332
      %v1342 = vmul.f32 %v1308, %v1332
      %v1343 = vmul.f32 %v1309, %v1332
      %v1344 = vmul.f32 %v1310, %v1332
      %v1345 = vmul.f32 %v1311, %v1332
      %v1346 = vmul.f32 %v1312, %v1332
      %v1347 = vmul.f32 %v1313, %v1332
      %v1348 = vmul.f32 %v1314, %v1332
      %v1349 = vmul.f32 %v1315, %v1332
      %v1350 = vmul.f32 %v1316, %v1332
      %v1351 = vmul.f32 %v1317, %v1332
      %v1352 = vmul.f32 %v1318, %v1332
      %v1353 = vmul.f32 %v1319, %v1332
      %v1354 = vmul.f32 %v1320, %v1332
      %v1355 = vmul.f32 %v1321, %v1332
      %v1356 = vmul.f32 %v1322, %v1332
      %v1357 = vmul.f32 %v1323, %v1332
      %v1358 = vmul.f32 %v1324, %v1332
      %v1359 = vmul.f32 %v1325, %v1332
      %v1360 = vmul.f32 %v1326, %v1332
      %v1361 = vmul.f32 %v1327, %v1332
      %v1362 = vmul.f32 %v1328, %v1332
      %v1363 = vmul.f32 %v1329, %v1332
      %v1364 = vmul.f32 %v1330, %v1332
      %v1365 = vadd.f32 %v1267, %v1333
      %v1366 = vadd.f32 %v1268, %v1334
      %v1367 = vadd.f32 %v1269, %v1335
      %v1368 = vadd.f32 %v1270, %v1336
      %v1369 = vadd.f32 %v1271, %v1337
      %v1370 = vadd.f32 %v1272, %v1338
      %v1371 = vadd.f32 %v1273, %v1339
      %v1372 = vadd.f32 %v1274, %v1340
      %v1373 = vadd.f32 %v1275, %v1341
      %v1374 = vadd.f32 %v1276, %v1342
      %v1375 = vadd.f32 %v1277, %v1343
      %v1376 = vadd.f32 %v1278, %v1344
      %v1377 = vadd.f32 %v1279, %v1345
      %v1378 = vadd.f32 %v1280, %v1346
      %v1379 = vadd.f32 %v1281, %v1347
      %v1380 = vadd.f32 %v1282, %v1348
      %v1381 = vadd.f32 %v1283, %v1349
      %v1382 = vadd.f32 %v1284, %v1350
      %v1383 = vadd.f32 %v1285, %v1351
      %v1384 = vadd.f32 %v1286, %v1352
      %v1385 = vadd.f32 %v1287, %v1353
      %v1386 = vadd.f32 %v1288, %v1354
      %v1387 = vadd.f32 %v1289, %v1355
      %v1388 = vadd.f32 %v1290, %v1356
      %v1389 = vadd.f32 %v1291, %v1357
      %v1390 = vadd.f32 %v1292, %v1358
      %v1391 = vadd.f32 %v1293, %v1359
      %v1392 = vadd.f32 %v1294, %v1360
      %v1393 = vadd.f32 %v1295, %v1361
      %v1394 = vadd.f32 %v1296, %v1362
      %v1395 = vadd.f32 %v1297, %v1363
      %v1396 = vadd.f32 %v1298, %v1364
      %v1397 = vld [vmem:[%s903 + $0x7] sm:$0xff]
      %v1398 = vld [vmem:[%s903 + $0xf] sm:$0xff]
      %v1399 = vld [vmem:[%s903 + $0x27] sm:$0xff]
      %v1400 = vld [vmem:[%s903 + $0x2f] sm:$0xff]
      %v1401 = vld [vmem:[%s903 + $0x47] sm:$0xff]
      %v1402 = vld [vmem:[%s903 + $0x4f] sm:$0xff]
      %v1403 = vld [vmem:[%s903 + $0x67] sm:$0xff]
      %v1404 = vld [vmem:[%s903 + $0x6f] sm:$0xff]
      %v1405 = vld [vmem:[%s903 + $0x87] sm:$0xff]
      %v1406 = vld [vmem:[%s903 + $0x8f] sm:$0xff]
      %v1407 = vld [vmem:[%s903 + $0xa7] sm:$0xff]
      %v1408 = vld [vmem:[%s903 + $0xaf] sm:$0xff]
      %v1409 = vld [vmem:[%s903 + $0xc7] sm:$0xff]
      %v1410 = vld [vmem:[%s903 + $0xcf] sm:$0xff]
      %v1411 = vld [vmem:[%s903 + $0xe7] sm:$0xff]
      %v1412 = vld [vmem:[%s903 + $0xef] sm:$0xff]
      %v1413 = vld [vmem:[%s903 + $0x107] sm:$0xff]
      %v1414 = vld [vmem:[%s903 + $0x10f] sm:$0xff]
      %v1415 = vld [vmem:[%s903 + $0x127] sm:$0xff]
      %v1416 = vld [vmem:[%s903 + $0x12f] sm:$0xff]
      %v1417 = vld [vmem:[%s903 + $0x147] sm:$0xff]
      %v1418 = vld [vmem:[%s903 + $0x14f] sm:$0xff]
      %v1419 = vld [vmem:[%s903 + $0x167] sm:$0xff]
      %v1420 = vld [vmem:[%s903 + $0x16f] sm:$0xff]
      %v1421 = vld [vmem:[%s903 + $0x187] sm:$0xff]
      %v1422 = vld [vmem:[%s903 + $0x18f] sm:$0xff]
      %v1423 = vld [vmem:[%s903 + $0x1a7] sm:$0xff]
      %v1424 = vld [vmem:[%s903 + $0x1af] sm:$0xff]
      %v1425 = vld [vmem:[%s903 + $0x1c7] sm:$0xff]
      %v1426 = vld [vmem:[%s903 + $0x1cf] sm:$0xff]
      %v1427 = vld [vmem:[%s903 + $0x1e7] sm:$0xff]
      %v1428 = vld [vmem:[%s903 + $0x1ef] sm:$0xff]
      %v1429 = vld [vmem:[%s6 + $0x3] sm:$0x1]
      %v1430 = vperm.slane %v1429, 0
      %v1431 = vmul.f32 %v1397, %v1430
      %v1432 = vmul.f32 %v1398, %v1430
      %v1433 = vmul.f32 %v1399, %v1430
      %v1434 = vmul.f32 %v1400, %v1430
      %v1435 = vmul.f32 %v1401, %v1430
      %v1436 = vmul.f32 %v1402, %v1430
      %v1437 = vmul.f32 %v1403, %v1430
      %v1438 = vmul.f32 %v1404, %v1430
      %v1439 = vmul.f32 %v1405, %v1430
      %v1440 = vmul.f32 %v1406, %v1430
      %v1441 = vmul.f32 %v1407, %v1430
      %v1442 = vmul.f32 %v1408, %v1430
      %v1443 = vmul.f32 %v1409, %v1430
      %v1444 = vmul.f32 %v1410, %v1430
      %v1445 = vmul.f32 %v1411, %v1430
      %v1446 = vmul.f32 %v1412, %v1430
      %v1447 = vmul.f32 %v1413, %v1430
      %v1448 = vmul.f32 %v1414, %v1430
      %v1449 = vmul.f32 %v1415, %v1430
      %v1450 = vmul.f32 %v1416, %v1430
      %v1451 = vmul.f32 %v1417, %v1430
      %v1452 = vmul.f32 %v1418, %v1430
      %v1453 = vmul.f32 %v1419, %v1430
      %v1454 = vmul.f32 %v1420, %v1430
      %v1455 = vmul.f32 %v1421, %v1430
      %v1456 = vmul.f32 %v1422, %v1430
      %v1457 = vmul.f32 %v1423, %v1430
      %v1458 = vmul.f32 %v1424, %v1430
      %v1459 = vmul.f32 %v1425, %v1430
      %v1460 = vmul.f32 %v1426, %v1430
      %v1461 = vmul.f32 %v1427, %v1430
      %v1462 = vmul.f32 %v1428, %v1430
      %v1463 = vadd.f32 %v1365, %v1431
      %v1464 = vadd.f32 %v1366, %v1432
      %v1465 = vadd.f32 %v1367, %v1433
      %v1466 = vadd.f32 %v1368, %v1434
      %v1467 = vadd.f32 %v1369, %v1435
      %v1468 = vadd.f32 %v1370, %v1436
      %v1469 = vadd.f32 %v1371, %v1437
      %v1470 = vadd.f32 %v1372, %v1438
      %v1471 = vadd.f32 %v1373, %v1439
      %v1472 = vadd.f32 %v1374, %v1440
      %v1473 = vadd.f32 %v1375, %v1441
      %v1474 = vadd.f32 %v1376, %v1442
      %v1475 = vadd.f32 %v1377, %v1443
      %v1476 = vadd.f32 %v1378, %v1444
      %v1477 = vadd.f32 %v1379, %v1445
      %v1478 = vadd.f32 %v1380, %v1446
      %v1479 = vadd.f32 %v1381, %v1447
      %v1480 = vadd.f32 %v1382, %v1448
      %v1481 = vadd.f32 %v1383, %v1449
      %v1482 = vadd.f32 %v1384, %v1450
      %v1483 = vadd.f32 %v1385, %v1451
      %v1484 = vadd.f32 %v1386, %v1452
      %v1485 = vadd.f32 %v1387, %v1453
      %v1486 = vadd.f32 %v1388, %v1454
      %v1487 = vadd.f32 %v1389, %v1455
      %v1488 = vadd.f32 %v1390, %v1456
      %v1489 = vadd.f32 %v1391, %v1457
      %v1490 = vadd.f32 %v1392, %v1458
      %v1491 = vadd.f32 %v1393, %v1459
      %v1492 = vadd.f32 %v1394, %v1460
      %v1493 = vadd.f32 %v1395, %v1461
      %v1494 = vadd.f32 %v1396, %v1462
      %v1495 = vld [vmem:[%s903 + $0x8] sm:$0xff]
      %v1496 = vld [vmem:[%s903 + $0x10] sm:$0xff]
      %v1497 = vld [vmem:[%s903 + $0x28] sm:$0xff]
      %v1498 = vld [vmem:[%s903 + $0x30] sm:$0xff]
      %v1499 = vld [vmem:[%s903 + $0x48] sm:$0xff]
      %v1500 = vld [vmem:[%s903 + $0x50] sm:$0xff]
      %v1501 = vld [vmem:[%s903 + $0x68] sm:$0xff]
      %v1502 = vld [vmem:[%s903 + $0x70] sm:$0xff]
      %v1503 = vld [vmem:[%s903 + $0x88] sm:$0xff]
      %v1504 = vld [vmem:[%s903 + $0x90] sm:$0xff]
      %v1505 = vld [vmem:[%s903 + $0xa8] sm:$0xff]
      %v1506 = vld [vmem:[%s903 + $0xb0] sm:$0xff]
      %v1507 = vld [vmem:[%s903 + $0xc8] sm:$0xff]
      %v1508 = vld [vmem:[%s903 + $0xd0] sm:$0xff]
      %v1509 = vld [vmem:[%s903 + $0xe8] sm:$0xff]
      %v1510 = vld [vmem:[%s903 + $0xf0] sm:$0xff]
      %v1511 = vld [vmem:[%s903 + $0x108] sm:$0xff]
      %v1512 = vld [vmem:[%s903 + $0x110] sm:$0xff]
      %v1513 = vld [vmem:[%s903 + $0x128] sm:$0xff]
      %v1514 = vld [vmem:[%s903 + $0x130] sm:$0xff]
      %v1515 = vld [vmem:[%s903 + $0x148] sm:$0xff]
      %v1516 = vld [vmem:[%s903 + $0x150] sm:$0xff]
      %v1517 = vld [vmem:[%s903 + $0x168] sm:$0xff]
      %v1518 = vld [vmem:[%s903 + $0x170] sm:$0xff]
      %v1519 = vld [vmem:[%s903 + $0x188] sm:$0xff]
      %v1520 = vld [vmem:[%s903 + $0x190] sm:$0xff]
      %v1521 = vld [vmem:[%s903 + $0x1a8] sm:$0xff]
      %v1522 = vld [vmem:[%s903 + $0x1b0] sm:$0xff]
      %v1523 = vld [vmem:[%s903 + $0x1c8] sm:$0xff]
      %v1524 = vld [vmem:[%s903 + $0x1d0] sm:$0xff]
      %v1525 = vld [vmem:[%s903 + $0x1e8] sm:$0xff]
      %v1526 = vld [vmem:[%s903 + $0x1f0] sm:$0xff]
      %v1527 = vld [vmem:[%s6 + $0x4] sm:$0x1]
      %v1528 = vperm.slane %v1527, 0
      %v1529 = vmul.f32 %v1495, %v1528
      %v1530 = vmul.f32 %v1496, %v1528
      %v1531 = vmul.f32 %v1497, %v1528
      %v1532 = vmul.f32 %v1498, %v1528
      %v1533 = vmul.f32 %v1499, %v1528
      %v1534 = vmul.f32 %v1500, %v1528
      %v1535 = vmul.f32 %v1501, %v1528
      %v1536 = vmul.f32 %v1502, %v1528
      %v1537 = vmul.f32 %v1503, %v1528
      %v1538 = vmul.f32 %v1504, %v1528
      %v1539 = vmul.f32 %v1505, %v1528
      %v1540 = vmul.f32 %v1506, %v1528
      %v1541 = vmul.f32 %v1507, %v1528
      %v1542 = vmul.f32 %v1508, %v1528
      %v1543 = vmul.f32 %v1509, %v1528
      %v1544 = vmul.f32 %v1510, %v1528
      %v1545 = vmul.f32 %v1511, %v1528
      %v1546 = vmul.f32 %v1512, %v1528
      %v1547 = vmul.f32 %v1513, %v1528
      %v1548 = vmul.f32 %v1514, %v1528
      %v1549 = vmul.f32 %v1515, %v1528
      %v1550 = vmul.f32 %v1516, %v1528
      %v1551 = vmul.f32 %v1517, %v1528
      %v1552 = vmul.f32 %v1518, %v1528
      %v1553 = vmul.f32 %v1519, %v1528
      %v1554 = vmul.f32 %v1520, %v1528
      %v1555 = vmul.f32 %v1521, %v1528
      %v1556 = vmul.f32 %v1522, %v1528
      %v1557 = vmul.f32 %v1523, %v1528
      %v1558 = vmul.f32 %v1524, %v1528
      %v1559 = vmul.f32 %v1525, %v1528
      %v1560 = vmul.f32 %v1526, %v1528
      %v1561 = vadd.f32 %v1463, %v1529
      %v1562 = vadd.f32 %v1464, %v1530
      %v1563 = vadd.f32 %v1465, %v1531
      %v1564 = vadd.f32 %v1466, %v1532
      %v1565 = vadd.f32 %v1467, %v1533
      %v1566 = vadd.f32 %v1468, %v1534
      %v1567 = vadd.f32 %v1469, %v1535
      %v1568 = vadd.f32 %v1470, %v1536
      %v1569 = vadd.f32 %v1471, %v1537
      %v1570 = vadd.f32 %v1472, %v1538
      %v1571 = vadd.f32 %v1473, %v1539
      %v1572 = vadd.f32 %v1474, %v1540
      %v1573 = vadd.f32 %v1475, %v1541
      %v1574 = vadd.f32 %v1476, %v1542
      %v1575 = vadd.f32 %v1477, %v1543
      %v1576 = vadd.f32 %v1478, %v1544
      %v1577 = vadd.f32 %v1479, %v1545
      %v1578 = vadd.f32 %v1480, %v1546
      %v1579 = vadd.f32 %v1481, %v1547
      %v1580 = vadd.f32 %v1482, %v1548
      %v1581 = vadd.f32 %v1483, %v1549
      %v1582 = vadd.f32 %v1484, %v1550
      %v1583 = vadd.f32 %v1485, %v1551
      %v1584 = vadd.f32 %v1486, %v1552
      %v1585 = vadd.f32 %v1487, %v1553
      %v1586 = vadd.f32 %v1488, %v1554
      %v1587 = vadd.f32 %v1489, %v1555
      %v1588 = vadd.f32 %v1490, %v1556
      %v1589 = vadd.f32 %v1491, %v1557
      %v1590 = vadd.f32 %v1492, %v1558
      %v1591 = vadd.f32 %v1493, %v1559
      %v1592 = vadd.f32 %v1494, %v1560
      %v1593 = vld [vmem:[%s903 + $0x9] sm:$0xff]
      %v1594 = vld [vmem:[%s903 + $0x11] sm:$0xff]
      %v1595 = vld [vmem:[%s903 + $0x29] sm:$0xff]
      %v1596 = vld [vmem:[%s903 + $0x31] sm:$0xff]
      %v1597 = vld [vmem:[%s903 + $0x49] sm:$0xff]
      %v1598 = vld [vmem:[%s903 + $0x51] sm:$0xff]
      %v1599 = vld [vmem:[%s903 + $0x69] sm:$0xff]
      %v1600 = vld [vmem:[%s903 + $0x71] sm:$0xff]
      %v1601 = vld [vmem:[%s903 + $0x89] sm:$0xff]
      %v1602 = vld [vmem:[%s903 + $0x91] sm:$0xff]
      %v1603 = vld [vmem:[%s903 + $0xa9] sm:$0xff]
      %v1604 = vld [vmem:[%s903 + $0xb1] sm:$0xff]
      %v1605 = vld [vmem:[%s903 + $0xc9] sm:$0xff]
      %v1606 = vld [vmem:[%s903 + $0xd1] sm:$0xff]
      %v1607 = vld [vmem:[%s903 + $0xe9] sm:$0xff]
      %v1608 = vld [vmem:[%s903 + $0xf1] sm:$0xff]
      %v1609 = vld [vmem:[%s903 + $0x109] sm:$0xff]
      %v1610 = vld [vmem:[%s903 + $0x111] sm:$0xff]
      %v1611 = vld [vmem:[%s903 + $0x129] sm:$0xff]
      %v1612 = vld [vmem:[%s903 + $0x131] sm:$0xff]
      %v1613 = vld [vmem:[%s903 + $0x149] sm:$0xff]
      %v1614 = vld [vmem:[%s903 + $0x151] sm:$0xff]
      %v1615 = vld [vmem:[%s903 + $0x169] sm:$0xff]
      %v1616 = vld [vmem:[%s903 + $0x171] sm:$0xff]
      %v1617 = vld [vmem:[%s903 + $0x189] sm:$0xff]
      %v1618 = vld [vmem:[%s903 + $0x191] sm:$0xff]
      %v1619 = vld [vmem:[%s903 + $0x1a9] sm:$0xff]
      %v1620 = vld [vmem:[%s903 + $0x1b1] sm:$0xff]
      %v1621 = vld [vmem:[%s903 + $0x1c9] sm:$0xff]
      %v1622 = vld [vmem:[%s903 + $0x1d1] sm:$0xff]
      %v1623 = vld [vmem:[%s903 + $0x1e9] sm:$0xff]
      %v1624 = vld [vmem:[%s903 + $0x1f1] sm:$0xff]
      %v1625 = vld [vmem:[%s6 + $0x5] sm:$0x1]
      %v1626 = vperm.slane %v1625, 0
      %v1627 = vmul.f32 %v1593, %v1626
      %v1628 = vmul.f32 %v1594, %v1626
      %v1629 = vmul.f32 %v1595, %v1626
      %v1630 = vmul.f32 %v1596, %v1626
      %v1631 = vmul.f32 %v1597, %v1626
      %v1632 = vmul.f32 %v1598, %v1626
      %v1633 = vmul.f32 %v1599, %v1626
      %v1634 = vmul.f32 %v1600, %v1626
      %v1635 = vmul.f32 %v1601, %v1626
      %v1636 = vmul.f32 %v1602, %v1626
      %v1637 = vmul.f32 %v1603, %v1626
      %v1638 = vmul.f32 %v1604, %v1626
      %v1639 = vmul.f32 %v1605, %v1626
      %v1640 = vmul.f32 %v1606, %v1626
      %v1641 = vmul.f32 %v1607, %v1626
      %v1642 = vmul.f32 %v1608, %v1626
      %v1643 = vmul.f32 %v1609, %v1626
      %v1644 = vmul.f32 %v1610, %v1626
      %v1645 = vmul.f32 %v1611, %v1626
      %v1646 = vmul.f32 %v1612, %v1626
      %v1647 = vmul.f32 %v1613, %v1626
      %v1648 = vmul.f32 %v1614, %v1626
      %v1649 = vmul.f32 %v1615, %v1626
      %v1650 = vmul.f32 %v1616, %v1626
      %v1651 = vmul.f32 %v1617, %v1626
      %v1652 = vmul.f32 %v1618, %v1626
      %v1653 = vmul.f32 %v1619, %v1626
      %v1654 = vmul.f32 %v1620, %v1626
      %v1655 = vmul.f32 %v1621, %v1626
      %v1656 = vmul.f32 %v1622, %v1626
      %v1657 = vmul.f32 %v1623, %v1626
      %v1658 = vmul.f32 %v1624, %v1626
      %v1659 = vadd.f32 %v1561, %v1627
      %v1660 = vadd.f32 %v1562, %v1628
      %v1661 = vadd.f32 %v1563, %v1629
      %v1662 = vadd.f32 %v1564, %v1630
      %v1663 = vadd.f32 %v1565, %v1631
      %v1664 = vadd.f32 %v1566, %v1632
      %v1665 = vadd.f32 %v1567, %v1633
      %v1666 = vadd.f32 %v1568, %v1634
      %v1667 = vadd.f32 %v1569, %v1635
      %v1668 = vadd.f32 %v1570, %v1636
      %v1669 = vadd.f32 %v1571, %v1637
      %v1670 = vadd.f32 %v1572, %v1638
      %v1671 = vadd.f32 %v1573, %v1639
      %v1672 = vadd.f32 %v1574, %v1640
      %v1673 = vadd.f32 %v1575, %v1641
      %v1674 = vadd.f32 %v1576, %v1642
      %v1675 = vadd.f32 %v1577, %v1643
      %v1676 = vadd.f32 %v1578, %v1644
      %v1677 = vadd.f32 %v1579, %v1645
      %v1678 = vadd.f32 %v1580, %v1646
      %v1679 = vadd.f32 %v1581, %v1647
      %v1680 = vadd.f32 %v1582, %v1648
      %v1681 = vadd.f32 %v1583, %v1649
      %v1682 = vadd.f32 %v1584, %v1650
      %v1683 = vadd.f32 %v1585, %v1651
      %v1684 = vadd.f32 %v1586, %v1652
      %v1685 = vadd.f32 %v1587, %v1653
      %v1686 = vadd.f32 %v1588, %v1654
      %v1687 = vadd.f32 %v1589, %v1655
      %v1688 = vadd.f32 %v1590, %v1656
      %v1689 = vadd.f32 %v1591, %v1657
      %v1690 = vadd.f32 %v1592, %v1658
      %s1691 = scalar_lea.vmem [#allocation2], 64
      %v1692 = vld [vmem:[%s1691 + $0x7] sm:$0xff]
      %v1693 = vld [vmem:[%s1691 + $0xf] sm:$0xff]
      %v1694 = vld [vmem:[%s1691 + $0x27] sm:$0xff]
      %v1695 = vld [vmem:[%s1691 + $0x2f] sm:$0xff]
      %v1696 = vld [vmem:[%s1691 + $0x47] sm:$0xff]
      %v1697 = vld [vmem:[%s1691 + $0x4f] sm:$0xff]
      %v1698 = vld [vmem:[%s1691 + $0x67] sm:$0xff]
      %v1699 = vld [vmem:[%s1691 + $0x6f] sm:$0xff]
      %v1700 = vld [vmem:[%s1691 + $0x87] sm:$0xff]
      %v1701 = vld [vmem:[%s1691 + $0x8f] sm:$0xff]
      %v1702 = vld [vmem:[%s1691 + $0xa7] sm:$0xff]
      %v1703 = vld [vmem:[%s1691 + $0xaf] sm:$0xff]
      %v1704 = vld [vmem:[%s1691 + $0xc7] sm:$0xff]
      %v1705 = vld [vmem:[%s1691 + $0xcf] sm:$0xff]
      %v1706 = vld [vmem:[%s1691 + $0xe7] sm:$0xff]
      %v1707 = vld [vmem:[%s1691 + $0xef] sm:$0xff]
      %v1708 = vld [vmem:[%s1691 + $0x107] sm:$0xff]
      %v1709 = vld [vmem:[%s1691 + $0x10f] sm:$0xff]
      %v1710 = vld [vmem:[%s1691 + $0x127] sm:$0xff]
      %v1711 = vld [vmem:[%s1691 + $0x12f] sm:$0xff]
      %v1712 = vld [vmem:[%s1691 + $0x147] sm:$0xff]
      %v1713 = vld [vmem:[%s1691 + $0x14f] sm:$0xff]
      %v1714 = vld [vmem:[%s1691 + $0x167] sm:$0xff]
      %v1715 = vld [vmem:[%s1691 + $0x16f] sm:$0xff]
      %v1716 = vld [vmem:[%s1691 + $0x187] sm:$0xff]
      %v1717 = vld [vmem:[%s1691 + $0x18f] sm:$0xff]
      %v1718 = vld [vmem:[%s1691 + $0x1a7] sm:$0xff]
      %v1719 = vld [vmem:[%s1691 + $0x1af] sm:$0xff]
      %v1720 = vld [vmem:[%s1691 + $0x1c7] sm:$0xff]
      %v1721 = vld [vmem:[%s1691 + $0x1cf] sm:$0xff]
      %v1722 = vld [vmem:[%s1691 + $0x1e7] sm:$0xff]
      %v1723 = vld [vmem:[%s1691 + $0x1ef] sm:$0xff]
      %v1724 = vld [vmem:[%s6 + $0x6] sm:$0x1]
      %v1725 = vperm.slane %v1724, 0
      %v1726 = vmul.f32 %v1692, %v1725
      %v1727 = vmul.f32 %v1693, %v1725
      %v1728 = vmul.f32 %v1694, %v1725
      %v1729 = vmul.f32 %v1695, %v1725
      %v1730 = vmul.f32 %v1696, %v1725
      %v1731 = vmul.f32 %v1697, %v1725
      %v1732 = vmul.f32 %v1698, %v1725
      %v1733 = vmul.f32 %v1699, %v1725
      %v1734 = vmul.f32 %v1700, %v1725
      %v1735 = vmul.f32 %v1701, %v1725
      %v1736 = vmul.f32 %v1702, %v1725
      %v1737 = vmul.f32 %v1703, %v1725
      %v1738 = vmul.f32 %v1704, %v1725
      %v1739 = vmul.f32 %v1705, %v1725
      %v1740 = vmul.f32 %v1706, %v1725
      %v1741 = vmul.f32 %v1707, %v1725
      %v1742 = vmul.f32 %v1708, %v1725
      %v1743 = vmul.f32 %v1709, %v1725
      %v1744 = vmul.f32 %v1710, %v1725
      %v1745 = vmul.f32 %v1711, %v1725
      %v1746 = vmul.f32 %v1712, %v1725
      %v1747 = vmul.f32 %v1713, %v1725
      %v1748 = vmul.f32 %v1714, %v1725
      %v1749 = vmul.f32 %v1715, %v1725
      %v1750 = vmul.f32 %v1716, %v1725
      %v1751 = vmul.f32 %v1717, %v1725
      %v1752 = vmul.f32 %v1718, %v1725
      %v1753 = vmul.f32 %v1719, %v1725
      %v1754 = vmul.f32 %v1720, %v1725
      %v1755 = vmul.f32 %v1721, %v1725
      %v1756 = vmul.f32 %v1722, %v1725
      %v1757 = vmul.f32 %v1723, %v1725
      %v1758 = vadd.f32 %v1659, %v1726
      %v1759 = vadd.f32 %v1660, %v1727
      %v1760 = vadd.f32 %v1661, %v1728
      %v1761 = vadd.f32 %v1662, %v1729
      %v1762 = vadd.f32 %v1663, %v1730
      %v1763 = vadd.f32 %v1664, %v1731
      %v1764 = vadd.f32 %v1665, %v1732
      %v1765 = vadd.f32 %v1666, %v1733
      %v1766 = vadd.f32 %v1667, %v1734
      %v1767 = vadd.f32 %v1668, %v1735
      %v1768 = vadd.f32 %v1669, %v1736
      %v1769 = vadd.f32 %v1670, %v1737
      %v1770 = vadd.f32 %v1671, %v1738
      %v1771 = vadd.f32 %v1672, %v1739
      %v1772 = vadd.f32 %v1673, %v1740
      %v1773 = vadd.f32 %v1674, %v1741
      %v1774 = vadd.f32 %v1675, %v1742
      %v1775 = vadd.f32 %v1676, %v1743
      %v1776 = vadd.f32 %v1677, %v1744
      %v1777 = vadd.f32 %v1678, %v1745
      %v1778 = vadd.f32 %v1679, %v1746
      %v1779 = vadd.f32 %v1680, %v1747
      %v1780 = vadd.f32 %v1681, %v1748
      %v1781 = vadd.f32 %v1682, %v1749
      %v1782 = vadd.f32 %v1683, %v1750
      %v1783 = vadd.f32 %v1684, %v1751
      %v1784 = vadd.f32 %v1685, %v1752
      %v1785 = vadd.f32 %v1686, %v1753
      %v1786 = vadd.f32 %v1687, %v1754
      %v1787 = vadd.f32 %v1688, %v1755
      %v1788 = vadd.f32 %v1689, %v1756
      %v1789 = vadd.f32 %v1690, %v1757
      %v1790 = vld [vmem:[%s1691 + $0x8] sm:$0xff]
      %v1791 = vld [vmem:[%s1691 + $0x10] sm:$0xff]
      %v1792 = vld [vmem:[%s1691 + $0x28] sm:$0xff]
      %v1793 = vld [vmem:[%s1691 + $0x30] sm:$0xff]
      %v1794 = vld [vmem:[%s1691 + $0x48] sm:$0xff]
      %v1795 = vld [vmem:[%s1691 + $0x50] sm:$0xff]
      %v1796 = vld [vmem:[%s1691 + $0x68] sm:$0xff]
      %v1797 = vld [vmem:[%s1691 + $0x70] sm:$0xff]
      %v1798 = vld [vmem:[%s1691 + $0x88] sm:$0xff]
      %v1799 = vld [vmem:[%s1691 + $0x90] sm:$0xff]
      %v1800 = vld [vmem:[%s1691 + $0xa8] sm:$0xff]
      %v1801 = vld [vmem:[%s1691 + $0xb0] sm:$0xff]
      %v1802 = vld [vmem:[%s1691 + $0xc8] sm:$0xff]
      %v1803 = vld [vmem:[%s1691 + $0xd0] sm:$0xff]
      %v1804 = vld [vmem:[%s1691 + $0xe8] sm:$0xff]
      %v1805 = vld [vmem:[%s1691 + $0xf0] sm:$0xff]
      %v1806 = vld [vmem:[%s1691 + $0x108] sm:$0xff]
      %v1807 = vld [vmem:[%s1691 + $0x110] sm:$0xff]
      %v1808 = vld [vmem:[%s1691 + $0x128] sm:$0xff]
      %v1809 = vld [vmem:[%s1691 + $0x130] sm:$0xff]
      %v1810 = vld [vmem:[%s1691 + $0x148] sm:$0xff]
      %v1811 = vld [vmem:[%s1691 + $0x150] sm:$0xff]
      %v1812 = vld [vmem:[%s1691 + $0x168] sm:$0xff]
      %v1813 = vld [vmem:[%s1691 + $0x170] sm:$0xff]
      %v1814 = vld [vmem:[%s1691 + $0x188] sm:$0xff]
      %v1815 = vld [vmem:[%s1691 + $0x190] sm:$0xff]
      %v1816 = vld [vmem:[%s1691 + $0x1a8] sm:$0xff]
      %v1817 = vld [vmem:[%s1691 + $0x1b0] sm:$0xff]
      %v1818 = vld [vmem:[%s1691 + $0x1c8] sm:$0xff]
      %v1819 = vld [vmem:[%s1691 + $0x1d0] sm:$0xff]
      %v1820 = vld [vmem:[%s1691 + $0x1e8] sm:$0xff]
      %v1821 = vld [vmem:[%s1691 + $0x1f0] sm:$0xff]
      %v1822 = vld [vmem:[%s6 + $0x7] sm:$0x1]
      %v1823 = vperm.slane %v1822, 0
      %v1824 = vmul.f32 %v1790, %v1823
      %v1825 = vmul.f32 %v1791, %v1823
      %v1826 = vmul.f32 %v1792, %v1823
      %v1827 = vmul.f32 %v1793, %v1823
      %v1828 = vmul.f32 %v1794, %v1823
      %v1829 = vmul.f32 %v1795, %v1823
      %v1830 = vmul.f32 %v1796, %v1823
      %v1831 = vmul.f32 %v1797, %v1823
      %v1832 = vmul.f32 %v1798, %v1823
      %v1833 = vmul.f32 %v1799, %v1823
      %v1834 = vmul.f32 %v1800, %v1823
      %v1835 = vmul.f32 %v1801, %v1823
      %v1836 = vmul.f32 %v1802, %v1823
      %v1837 = vmul.f32 %v1803, %v1823
      %v1838 = vmul.f32 %v1804, %v1823
      %v1839 = vmul.f32 %v1805, %v1823
      %v1840 = vmul.f32 %v1806, %v1823
      %v1841 = vmul.f32 %v1807, %v1823
      %v1842 = vmul.f32 %v1808, %v1823
      %v1843 = vmul.f32 %v1809, %v1823
      %v1844 = vmul.f32 %v1810, %v1823
      %v1845 = vmul.f32 %v1811, %v1823
      %v1846 = vmul.f32 %v1812, %v1823
      %v1847 = vmul.f32 %v1813, %v1823
      %v1848 = vmul.f32 %v1814, %v1823
      %v1849 = vmul.f32 %v1815, %v1823
      %v1850 = vmul.f32 %v1816, %v1823
      %v1851 = vmul.f32 %v1817, %v1823
      %v1852 = vmul.f32 %v1818, %v1823
      %v1853 = vmul.f32 %v1819, %v1823
      %v1854 = vmul.f32 %v1820, %v1823
      %v1855 = vmul.f32 %v1821, %v1823
      %v1856 = vadd.f32 %v1758, %v1824
      %v1857 = vadd.f32 %v1759, %v1825
      %v1858 = vadd.f32 %v1760, %v1826
      %v1859 = vadd.f32 %v1761, %v1827
      %v1860 = vadd.f32 %v1762, %v1828
      %v1861 = vadd.f32 %v1763, %v1829
      %v1862 = vadd.f32 %v1764, %v1830
      %v1863 = vadd.f32 %v1765, %v1831
      %v1864 = vadd.f32 %v1766, %v1832
      %v1865 = vadd.f32 %v1767, %v1833
      %v1866 = vadd.f32 %v1768, %v1834
      %v1867 = vadd.f32 %v1769, %v1835
      %v1868 = vadd.f32 %v1770, %v1836
      %v1869 = vadd.f32 %v1771, %v1837
      %v1870 = vadd.f32 %v1772, %v1838
      %v1871 = vadd.f32 %v1773, %v1839
      %v1872 = vadd.f32 %v1774, %v1840
      %v1873 = vadd.f32 %v1775, %v1841
      %v1874 = vadd.f32 %v1776, %v1842
      %v1875 = vadd.f32 %v1777, %v1843
      %v1876 = vadd.f32 %v1778, %v1844
      %v1877 = vadd.f32 %v1779, %v1845
      %v1878 = vadd.f32 %v1780, %v1846
      %v1879 = vadd.f32 %v1781, %v1847
      %v1880 = vadd.f32 %v1782, %v1848
      %v1881 = vadd.f32 %v1783, %v1849
      %v1882 = vadd.f32 %v1784, %v1850
      %v1883 = vadd.f32 %v1785, %v1851
      %v1884 = vadd.f32 %v1786, %v1852
      %v1885 = vadd.f32 %v1787, %v1853
      %v1886 = vadd.f32 %v1788, %v1854
      %v1887 = vadd.f32 %v1789, %v1855
      %v1888 = vld [vmem:[%s1691 + $0x9] sm:$0xff]
      %v1889 = vld [vmem:[%s1691 + $0x11] sm:$0xff]
      %v1890 = vld [vmem:[%s1691 + $0x29] sm:$0xff]
      %v1891 = vld [vmem:[%s1691 + $0x31] sm:$0xff]
      %v1892 = vld [vmem:[%s1691 + $0x49] sm:$0xff]
      %v1893 = vld [vmem:[%s1691 + $0x51] sm:$0xff]
      %v1894 = vld [vmem:[%s1691 + $0x69] sm:$0xff]
      %v1895 = vld [vmem:[%s1691 + $0x71] sm:$0xff]
      %v1896 = vld [vmem:[%s1691 + $0x89] sm:$0xff]
      %v1897 = vld [vmem:[%s1691 + $0x91] sm:$0xff]
      %v1898 = vld [vmem:[%s1691 + $0xa9] sm:$0xff]
      %v1899 = vld [vmem:[%s1691 + $0xb1] sm:$0xff]
      %v1900 = vld [vmem:[%s1691 + $0xc9] sm:$0xff]
      %v1901 = vld [vmem:[%s1691 + $0xd1] sm:$0xff]
      %v1902 = vld [vmem:[%s1691 + $0xe9] sm:$0xff]
      %v1903 = vld [vmem:[%s1691 + $0xf1] sm:$0xff]
      %v1904 = vld [vmem:[%s1691 + $0x109] sm:$0xff]
      %v1905 = vld [vmem:[%s1691 + $0x111] sm:$0xff]
      %v1906 = vld [vmem:[%s1691 + $0x129] sm:$0xff]
      %v1907 = vld [vmem:[%s1691 + $0x131] sm:$0xff]
      %v1908 = vld [vmem:[%s1691 + $0x149] sm:$0xff]
      %v1909 = vld [vmem:[%s1691 + $0x151] sm:$0xff]
      %v1910 = vld [vmem:[%s1691 + $0x169] sm:$0xff]
      %v1911 = vld [vmem:[%s1691 + $0x171] sm:$0xff]
      %v1912 = vld [vmem:[%s1691 + $0x189] sm:$0xff]
      %v1913 = vld [vmem:[%s1691 + $0x191] sm:$0xff]
      %v1914 = vld [vmem:[%s1691 + $0x1a9] sm:$0xff]
      %v1915 = vld [vmem:[%s1691 + $0x1b1] sm:$0xff]
      %v1916 = vld [vmem:[%s1691 + $0x1c9] sm:$0xff]
      %v1917 = vld [vmem:[%s1691 + $0x1d1] sm:$0xff]
      %v1918 = vld [vmem:[%s1691 + $0x1e9] sm:$0xff]
      %v1919 = vld [vmem:[%s1691 + $0x1f1] sm:$0xff]
      %v1920 = vld [vmem:[%s6 + $0x8] sm:$0x1]
      %v1921 = vperm.slane %v1920, 0
      %v1922 = vmul.f32 %v1888, %v1921
      %v1923 = vmul.f32 %v1889, %v1921
      %v1924 = vmul.f32 %v1890, %v1921
      %v1925 = vmul.f32 %v1891, %v1921
      %v1926 = vmul.f32 %v1892, %v1921
      %v1927 = vmul.f32 %v1893, %v1921
      %v1928 = vmul.f32 %v1894, %v1921
      %v1929 = vmul.f32 %v1895, %v1921
      %v1930 = vmul.f32 %v1896, %v1921
      %v1931 = vmul.f32 %v1897, %v1921
      %v1932 = vmul.f32 %v1898, %v1921
      %v1933 = vmul.f32 %v1899, %v1921
      %v1934 = vmul.f32 %v1900, %v1921
      %v1935 = vmul.f32 %v1901, %v1921
      %v1936 = vmul.f32 %v1902, %v1921
      %v1937 = vmul.f32 %v1903, %v1921
      %v1938 = vmul.f32 %v1904, %v1921
      %v1939 = vmul.f32 %v1905, %v1921
      %v1940 = vmul.f32 %v1906, %v1921
      %v1941 = vmul.f32 %v1907, %v1921
      %v1942 = vmul.f32 %v1908, %v1921
      %v1943 = vmul.f32 %v1909, %v1921
      %v1944 = vmul.f32 %v1910, %v1921
      %v1945 = vmul.f32 %v1911, %v1921
      %v1946 = vmul.f32 %v1912, %v1921
      %v1947 = vmul.f32 %v1913, %v1921
      %v1948 = vmul.f32 %v1914, %v1921
      %v1949 = vmul.f32 %v1915, %v1921
      %v1950 = vmul.f32 %v1916, %v1921
      %v1951 = vmul.f32 %v1917, %v1921
      %v1952 = vmul.f32 %v1918, %v1921
      %v1953 = vmul.f32 %v1919, %v1921
      %v1954 = vadd.f32 %v1856, %v1922
      %v1955 = vadd.f32 %v1857, %v1923
      %v1956 = vadd.f32 %v1858, %v1924
      %v1957 = vadd.f32 %v1859, %v1925
      %v1958 = vadd.f32 %v1860, %v1926
      %v1959 = vadd.f32 %v1861, %v1927
      %v1960 = vadd.f32 %v1862, %v1928
      %v1961 = vadd.f32 %v1863, %v1929
      %v1962 = vadd.f32 %v1864, %v1930
      %v1963 = vadd.f32 %v1865, %v1931
      %v1964 = vadd.f32 %v1866, %v1932
      %v1965 = vadd.f32 %v1867, %v1933
      %v1966 = vadd.f32 %v1868, %v1934
      %v1967 = vadd.f32 %v1869, %v1935
      %v1968 = vadd.f32 %v1870, %v1936
      %v1969 = vadd.f32 %v1871, %v1937
      %v1970 = vadd.f32 %v1872, %v1938
      %v1971 = vadd.f32 %v1873, %v1939
      %v1972 = vadd.f32 %v1874, %v1940
      %v1973 = vadd.f32 %v1875, %v1941
      %v1974 = vadd.f32 %v1876, %v1942
      %v1975 = vadd.f32 %v1877, %v1943
      %v1976 = vadd.f32 %v1878, %v1944
      %v1977 = vadd.f32 %v1879, %v1945
      %v1978 = vadd.f32 %v1880, %v1946
      %v1979 = vadd.f32 %v1881, %v1947
      %v1980 = vadd.f32 %v1882, %v1948
      %v1981 = vadd.f32 %v1883, %v1949
      %v1982 = vadd.f32 %v1884, %v1950
      %v1983 = vadd.f32 %v1885, %v1951
      %v1984 = vadd.f32 %v1886, %v1952
      %v1985 = vadd.f32 %v1887, %v1953
      %v1986 = vld [vmem:[%s7] sm:$0x1]
      %v1988 = vperm.slane %v1986, 0
      %v1990 = vadd.f32 %v1954, %v1988
      %v1991 = vadd.f32 %v1955, %v1988
      %v1992 = vadd.f32 %v1956, %v1988
      %v1993 = vadd.f32 %v1957, %v1988
      %v1994 = vadd.f32 %v1958, %v1988
      %v1995 = vadd.f32 %v1959, %v1988
      %v1996 = vadd.f32 %v1960, %v1988
      %v1997 = vadd.f32 %v1961, %v1988
      %v1998 = vadd.f32 %v1962, %v1988
      %v1999 = vadd.f32 %v1963, %v1988
      %v2000 = vadd.f32 %v1964, %v1988
      %v2001 = vadd.f32 %v1965, %v1988
      %v2002 = vadd.f32 %v1966, %v1988
      %v2003 = vadd.f32 %v1967, %v1988
      %v2004 = vadd.f32 %v1968, %v1988
      %v2005 = vadd.f32 %v1969, %v1988
      %v2006 = vadd.f32 %v1970, %v1988
      %v2007 = vadd.f32 %v1971, %v1988
      %v2008 = vadd.f32 %v1972, %v1988
      %v2009 = vadd.f32 %v1973, %v1988
      %v2010 = vadd.f32 %v1974, %v1988
      %v2011 = vadd.f32 %v1975, %v1988
      %v2012 = vadd.f32 %v1976, %v1988
      %v2013 = vadd.f32 %v1977, %v1988
      %v2014 = vadd.f32 %v1978, %v1988
      %v2015 = vadd.f32 %v1979, %v1988
      %v2016 = vadd.f32 %v1980, %v1988
      %v2017 = vadd.f32 %v1981, %v1988
      %v2018 = vadd.f32 %v1982, %v1988
      %v2019 = vadd.f32 %v1983, %v1988
      %v2020 = vadd.f32 %v1984, %v1988
      %v2021 = vadd.f32 %v1985, %v1988
      %v2022 = vmax.f32 %v1990, 0.0
      %v2023 = vmax.f32 %v1991, 0.0
      %v2024 = vmax.f32 %v1992, 0.0
      %v2025 = vmax.f32 %v1993, 0.0
      %v2026 = vmax.f32 %v1994, 0.0
      %v2027 = vmax.f32 %v1995, 0.0
      %v2028 = vmax.f32 %v1996, 0.0
      %v2029 = vmax.f32 %v1997, 0.0
      %v2030 = vmax.f32 %v1998, 0.0
      %v2031 = vmax.f32 %v1999, 0.0
      %v2032 = vmax.f32 %v2000, 0.0
      %v2033 = vmax.f32 %v2001, 0.0
      %v2034 = vmax.f32 %v2002, 0.0
      %v2035 = vmax.f32 %v2003, 0.0
      %v2036 = vmax.f32 %v2004, 0.0
      %v2037 = vmax.f32 %v2005, 0.0
      %v2038 = vmax.f32 %v2006, 0.0
      %v2039 = vmax.f32 %v2007, 0.0
      %v2040 = vmax.f32 %v2008, 0.0
      %v2041 = vmax.f32 %v2009, 0.0
      %v2042 = vmax.f32 %v2010, 0.0
      %v2043 = vmax.f32 %v2011, 0.0
      %v2044 = vmax.f32 %v2012, 0.0
      %v2045 = vmax.f32 %v2013, 0.0
      %v2046 = vmax.f32 %v2014, 0.0
      %v2047 = vmax.f32 %v2015, 0.0
      %v2048 = vmax.f32 %v2016, 0.0
      %v2049 = vmax.f32 %v2017, 0.0
      %v2050 = vmax.f32 %v2018, 0.0
      %v2051 = vmax.f32 %v2019, 0.0
      %v2052 = vmax.f32 %v2020, 0.0
      %v2053 = vmax.f32 %v2021, 0.0
      %v2054 = vld [vmem:[#allocation3 + $0x7] sm:$0xff]
      %v2055 = vld [vmem:[#allocation3 + $0xf] sm:$0xff]
      %v2056 = vld [vmem:[#allocation3 + $0x27] sm:$0xff]
      %v2057 = vld [vmem:[#allocation3 + $0x2f] sm:$0xff]
      %v2058 = vld [vmem:[#allocation3 + $0x47] sm:$0xff]
      %v2059 = vld [vmem:[#allocation3 + $0x4f] sm:$0xff]
      %v2060 = vld [vmem:[#allocation3 + $0x67] sm:$0xff]
      %v2061 = vld [vmem:[#allocation3 + $0x6f] sm:$0xff]
      %v2062 = vld [vmem:[#allocation3 + $0x87] sm:$0xff]
      %v2063 = vld [vmem:[#allocation3 + $0x8f] sm:$0xff]
      %v2064 = vld [vmem:[#allocation3 + $0xa7] sm:$0xff]
      %v2065 = vld [vmem:[#allocation3 + $0xaf] sm:$0xff]
      %v2066 = vld [vmem:[#allocation3 + $0xc7] sm:$0xff]
      %v2067 = vld [vmem:[#allocation3 + $0xcf] sm:$0xff]
      %v2068 = vld [vmem:[#allocation3 + $0xe7] sm:$0xff]
      %v2069 = vld [vmem:[#allocation3 + $0xef] sm:$0xff]
      %v2070 = vld [vmem:[#allocation3 + $0x107] sm:$0xff]
      %v2071 = vld [vmem:[#allocation3 + $0x10f] sm:$0xff]
      %v2072 = vld [vmem:[#allocation3 + $0x127] sm:$0xff]
      %v2073 = vld [vmem:[#allocation3 + $0x12f] sm:$0xff]
      %v2074 = vld [vmem:[#allocation3 + $0x147] sm:$0xff]
      %v2075 = vld [vmem:[#allocation3 + $0x14f] sm:$0xff]
      %v2076 = vld [vmem:[#allocation3 + $0x167] sm:$0xff]
      %v2077 = vld [vmem:[#allocation3 + $0x16f] sm:$0xff]
      %v2078 = vld [vmem:[#allocation3 + $0x187] sm:$0xff]
      %v2079 = vld [vmem:[#allocation3 + $0x18f] sm:$0xff]
      %v2080 = vld [vmem:[#allocation3 + $0x1a7] sm:$0xff]
      %v2081 = vld [vmem:[#allocation3 + $0x1af] sm:$0xff]
      %v2082 = vld [vmem:[#allocation3 + $0x1c7] sm:$0xff]
      %v2083 = vld [vmem:[#allocation3 + $0x1cf] sm:$0xff]
      %v2084 = vld [vmem:[#allocation3 + $0x1e7] sm:$0xff]
      %v2085 = vld [vmem:[#allocation3 + $0x1ef] sm:$0xff]
      %v2086 = vld [vmem:[%s9] sm:$0x1]
      %v2087 = vperm.slane %v2086, 0
      %v2088 = vmul.f32 %v2054, %v2087
      %v2089 = vmul.f32 %v2055, %v2087
      %v2090 = vmul.f32 %v2056, %v2087
      %v2091 = vmul.f32 %v2057, %v2087
      %v2092 = vmul.f32 %v2058, %v2087
      %v2093 = vmul.f32 %v2059, %v2087
      %v2094 = vmul.f32 %v2060, %v2087
      %v2095 = vmul.f32 %v2061, %v2087
      %v2096 = vmul.f32 %v2062, %v2087
      %v2097 = vmul.f32 %v2063, %v2087
      %v2098 = vmul.f32 %v2064, %v2087
      %v2099 = vmul.f32 %v2065, %v2087
      %v2100 = vmul.f32 %v2066, %v2087
      %v2101 = vmul.f32 %v2067, %v2087
      %v2102 = vmul.f32 %v2068, %v2087
      %v2103 = vmul.f32 %v2069, %v2087
      %v2104 = vmul.f32 %v2070, %v2087
      %v2105 = vmul.f32 %v2071, %v2087
      %v2106 = vmul.f32 %v2072, %v2087
      %v2107 = vmul.f32 %v2073, %v2087
      %v2108 = vmul.f32 %v2074, %v2087
      %v2109 = vmul.f32 %v2075, %v2087
      %v2110 = vmul.f32 %v2076, %v2087
      %v2111 = vmul.f32 %v2077, %v2087
      %v2112 = vmul.f32 %v2078, %v2087
      %v2113 = vmul.f32 %v2079, %v2087
      %v2114 = vmul.f32 %v2080, %v2087
      %v2115 = vmul.f32 %v2081, %v2087
      %v2116 = vmul.f32 %v2082, %v2087
      %v2117 = vmul.f32 %v2083, %v2087
      %v2118 = vmul.f32 %v2084, %v2087
      %v2119 = vmul.f32 %v2085, %v2087
      %v2120 = vadd.f32 %v2088, 0.0
      %v2121 = vadd.f32 %v2089, 0.0
      %v2122 = vadd.f32 %v2090, 0.0
      %v2123 = vadd.f32 %v2091, 0.0
      %v2124 = vadd.f32 %v2092, 0.0
      %v2125 = vadd.f32 %v2093, 0.0
      %v2126 = vadd.f32 %v2094, 0.0
      %v2127 = vadd.f32 %v2095, 0.0
      %v2128 = vadd.f32 %v2096, 0.0
      %v2129 = vadd.f32 %v2097, 0.0
      %v2130 = vadd.f32 %v2098, 0.0
      %v2131 = vadd.f32 %v2099, 0.0
      %v2132 = vadd.f32 %v2100, 0.0
      %v2133 = vadd.f32 %v2101, 0.0
      %v2134 = vadd.f32 %v2102, 0.0
      %v2135 = vadd.f32 %v2103, 0.0
      %v2136 = vadd.f32 %v2104, 0.0
      %v2137 = vadd.f32 %v2105, 0.0
      %v2138 = vadd.f32 %v2106, 0.0
      %v2139 = vadd.f32 %v2107, 0.0
      %v2140 = vadd.f32 %v2108, 0.0
      %v2141 = vadd.f32 %v2109, 0.0
      %v2142 = vadd.f32 %v2110, 0.0
      %v2143 = vadd.f32 %v2111, 0.0
      %v2144 = vadd.f32 %v2112, 0.0
      %v2145 = vadd.f32 %v2113, 0.0
      %v2146 = vadd.f32 %v2114, 0.0
      %v2147 = vadd.f32 %v2115, 0.0
      %v2148 = vadd.f32 %v2116, 0.0
      %v2149 = vadd.f32 %v2117, 0.0
      %v2150 = vadd.f32 %v2118, 0.0
      %v2151 = vadd.f32 %v2119, 0.0
      %v2152 = vld [vmem:[#allocation3 + $0x8] sm:$0xff]
      %v2153 = vld [vmem:[#allocation3 + $0x10] sm:$0xff]
      %v2154 = vld [vmem:[#allocation3 + $0x28] sm:$0xff]
      %v2155 = vld [vmem:[#allocation3 + $0x30] sm:$0xff]
      %v2156 = vld [vmem:[#allocation3 + $0x48] sm:$0xff]
      %v2157 = vld [vmem:[#allocation3 + $0x50] sm:$0xff]
      %v2158 = vld [vmem:[#allocation3 + $0x68] sm:$0xff]
      %v2159 = vld [vmem:[#allocation3 + $0x70] sm:$0xff]
      %v2160 = vld [vmem:[#allocation3 + $0x88] sm:$0xff]
      %v2161 = vld [vmem:[#allocation3 + $0x90] sm:$0xff]
      %v2162 = vld [vmem:[#allocation3 + $0xa8] sm:$0xff]
      %v2163 = vld [vmem:[#allocation3 + $0xb0] sm:$0xff]
      %v2164 = vld [vmem:[#allocation3 + $0xc8] sm:$0xff]
      %v2165 = vld [vmem:[#allocation3 + $0xd0] sm:$0xff]
      %v2166 = vld [vmem:[#allocation3 + $0xe8] sm:$0xff]
      %v2167 = vld [vmem:[#allocation3 + $0xf0] sm:$0xff]
      %v2168 = vld [vmem:[#allocation3 + $0x108] sm:$0xff]
      %v2169 = vld [vmem:[#allocation3 + $0x110] sm:$0xff]
      %v2170 = vld [vmem:[#allocation3 + $0x128] sm:$0xff]
      %v2171 = vld [vmem:[#allocation3 + $0x130] sm:$0xff]
      %v2172 = vld [vmem:[#allocation3 + $0x148] sm:$0xff]
      %v2173 = vld [vmem:[#allocation3 + $0x150] sm:$0xff]
      %v2174 = vld [vmem:[#allocation3 + $0x168] sm:$0xff]
      %v2175 = vld [vmem:[#allocation3 + $0x170] sm:$0xff]
      %v2176 = vld [vmem:[#allocation3 + $0x188] sm:$0xff]
      %v2177 = vld [vmem:[#allocation3 + $0x190] sm:$0xff]
      %v2178 = vld [vmem:[#allocation3 + $0x1a8] sm:$0xff]
      %v2179 = vld [vmem:[#allocation3 + $0x1b0] sm:$0xff]
      %v2180 = vld [vmem:[#allocation3 + $0x1c8] sm:$0xff]
      %v2181 = vld [vmem:[#allocation3 + $0x1d0] sm:$0xff]
      %v2182 = vld [vmem:[#allocation3 + $0x1e8] sm:$0xff]
      %v2183 = vld [vmem:[#allocation3 + $0x1f0] sm:$0xff]
      %v2184 = vld [vmem:[%s9 + $0x1] sm:$0x1]
      %v2185 = vperm.slane %v2184, 0
      %v2186 = vmul.f32 %v2152, %v2185
      %v2187 = vmul.f32 %v2153, %v2185
      %v2188 = vmul.f32 %v2154, %v2185
      %v2189 = vmul.f32 %v2155, %v2185
      %v2190 = vmul.f32 %v2156, %v2185
      %v2191 = vmul.f32 %v2157, %v2185
      %v2192 = vmul.f32 %v2158, %v2185
      %v2193 = vmul.f32 %v2159, %v2185
      %v2194 = vmul.f32 %v2160, %v2185
      %v2195 = vmul.f32 %v2161, %v2185
      %v2196 = vmul.f32 %v2162, %v2185
      %v2197 = vmul.f32 %v2163, %v2185
      %v2198 = vmul.f32 %v2164, %v2185
      %v2199 = vmul.f32 %v2165, %v2185
      %v2200 = vmul.f32 %v2166, %v2185
      %v2201 = vmul.f32 %v2167, %v2185
      %v2202 = vmul.f32 %v2168, %v2185
      %v2203 = vmul.f32 %v2169, %v2185
      %v2204 = vmul.f32 %v2170, %v2185
      %v2205 = vmul.f32 %v2171, %v2185
      %v2206 = vmul.f32 %v2172, %v2185
      %v2207 = vmul.f32 %v2173, %v2185
      %v2208 = vmul.f32 %v2174, %v2185
      %v2209 = vmul.f32 %v2175, %v2185
      %v2210 = vmul.f32 %v2176, %v2185
      %v2211 = vmul.f32 %v2177, %v2185
      %v2212 = vmul.f32 %v2178, %v2185
      %v2213 = vmul.f32 %v2179, %v2185
      %v2214 = vmul.f32 %v2180, %v2185
      %v2215 = vmul.f32 %v2181, %v2185
      %v2216 = vmul.f32 %v2182, %v2185
      %v2217 = vmul.f32 %v2183, %v2185
      %v2218 = vadd.f32 %v2120, %v2186
      %v2219 = vadd.f32 %v2121, %v2187
      %v2220 = vadd.f32 %v2122, %v2188
      %v2221 = vadd.f32 %v2123, %v2189
      %v2222 = vadd.f32 %v2124, %v2190
      %v2223 = vadd.f32 %v2125, %v2191
      %v2224 = vadd.f32 %v2126, %v2192
      %v2225 = vadd.f32 %v2127, %v2193
      %v2226 = vadd.f32 %v2128, %v2194
      %v2227 = vadd.f32 %v2129, %v2195
      %v2228 = vadd.f32 %v2130, %v2196
      %v2229 = vadd.f32 %v2131, %v2197
      %v2230 = vadd.f32 %v2132, %v2198
      %v2231 = vadd.f32 %v2133, %v2199
      %v2232 = vadd.f32 %v2134, %v2200
      %v2233 = vadd.f32 %v2135, %v2201
      %v2234 = vadd.f32 %v2136, %v2202
      %v2235 = vadd.f32 %v2137, %v2203
      %v2236 = vadd.f32 %v2138, %v2204
      %v2237 = vadd.f32 %v2139, %v2205
      %v2238 = vadd.f32 %v2140, %v2206
      %v2239 = vadd.f32 %v2141, %v2207
      %v2240 = vadd.f32 %v2142, %v2208
      %v2241 = vadd.f32 %v2143, %v2209
      %v2242 = vadd.f32 %v2144, %v2210
      %v2243 = vadd.f32 %v2145, %v2211
      %v2244 = vadd.f32 %v2146, %v2212
      %v2245 = vadd.f32 %v2147, %v2213
      %v2246 = vadd.f32 %v2148, %v2214
      %v2247 = vadd.f32 %v2149, %v2215
      %v2248 = vadd.f32 %v2150, %v2216
      %v2249 = vadd.f32 %v2151, %v2217
      %v2250 = vld [vmem:[#allocation3 + $0x9] sm:$0xff]
      %v2251 = vld [vmem:[#allocation3 + $0x11] sm:$0xff]
      %v2252 = vld [vmem:[#allocation3 + $0x29] sm:$0xff]
      %v2253 = vld [vmem:[#allocation3 + $0x31] sm:$0xff]
      %v2254 = vld [vmem:[#allocation3 + $0x49] sm:$0xff]
      %v2255 = vld [vmem:[#allocation3 + $0x51] sm:$0xff]
      %v2256 = vld [vmem:[#allocation3 + $0x69] sm:$0xff]
      %v2257 = vld [vmem:[#allocation3 + $0x71] sm:$0xff]
      %v2258 = vld [vmem:[#allocation3 + $0x89] sm:$0xff]
      %v2259 = vld [vmem:[#allocation3 + $0x91] sm:$0xff]
      %v2260 = vld [vmem:[#allocation3 + $0xa9] sm:$0xff]
      %v2261 = vld [vmem:[#allocation3 + $0xb1] sm:$0xff]
      %v2262 = vld [vmem:[#allocation3 + $0xc9] sm:$0xff]
      %v2263 = vld [vmem:[#allocation3 + $0xd1] sm:$0xff]
      %v2264 = vld [vmem:[#allocation3 + $0xe9] sm:$0xff]
      %v2265 = vld [vmem:[#allocation3 + $0xf1] sm:$0xff]
      %v2266 = vld [vmem:[#allocation3 + $0x109] sm:$0xff]
      %v2267 = vld [vmem:[#allocation3 + $0x111] sm:$0xff]
      %v2268 = vld [vmem:[#allocation3 + $0x129] sm:$0xff]
      %v2269 = vld [vmem:[#allocation3 + $0x131] sm:$0xff]
      %v2270 = vld [vmem:[#allocation3 + $0x149] sm:$0xff]
      %v2271 = vld [vmem:[#allocation3 + $0x151] sm:$0xff]
      %v2272 = vld [vmem:[#allocation3 + $0x169] sm:$0xff]
      %v2273 = vld [vmem:[#allocation3 + $0x171] sm:$0xff]
      %v2274 = vld [vmem:[#allocation3 + $0x189] sm:$0xff]
      %v2275 = vld [vmem:[#allocation3 + $0x191] sm:$0xff]
      %v2276 = vld [vmem:[#allocation3 + $0x1a9] sm:$0xff]
      %v2277 = vld [vmem:[#allocation3 + $0x1b1] sm:$0xff]
      %v2278 = vld [vmem:[#allocation3 + $0x1c9] sm:$0xff]
      %v2279 = vld [vmem:[#allocation3 + $0x1d1] sm:$0xff]
      %v2280 = vld [vmem:[#allocation3 + $0x1e9] sm:$0xff]
      %v2281 = vld [vmem:[#allocation3 + $0x1f1] sm:$0xff]
      %v2282 = vld [vmem:[%s9 + $0x2] sm:$0x1]
      %v2283 = vperm.slane %v2282, 0
      %v2284 = vmul.f32 %v2250, %v2283
      %v2285 = vmul.f32 %v2251, %v2283
      %v2286 = vmul.f32 %v2252, %v2283
      %v2287 = vmul.f32 %v2253, %v2283
      %v2288 = vmul.f32 %v2254, %v2283
      %v2289 = vmul.f32 %v2255, %v2283
      %v2290 = vmul.f32 %v2256, %v2283
      %v2291 = vmul.f32 %v2257, %v2283
      %v2292 = vmul.f32 %v2258, %v2283
      %v2293 = vmul.f32 %v2259, %v2283
      %v2294 = vmul.f32 %v2260, %v2283
      %v2295 = vmul.f32 %v2261, %v2283
      %v2296 = vmul.f32 %v2262, %v2283
      %v2297 = vmul.f32 %v2263, %v2283
      %v2298 = vmul.f32 %v2264, %v2283
      %v2299 = vmul.f32 %v2265, %v2283
      %v2300 = vmul.f32 %v2266, %v2283
      %v2301 = vmul.f32 %v2267, %v2283
      %v2302 = vmul.f32 %v2268, %v2283
      %v2303 = vmul.f32 %v2269, %v2283
      %v2304 = vmul.f32 %v2270, %v2283
      %v2305 = vmul.f32 %v2271, %v2283
      %v2306 = vmul.f32 %v2272, %v2283
      %v2307 = vmul.f32 %v2273, %v2283
      %v2308 = vmul.f32 %v2274, %v2283
      %v2309 = vmul.f32 %v2275, %v2283
      %v2310 = vmul.f32 %v2276, %v2283
      %v2311 = vmul.f32 %v2277, %v2283
      %v2312 = vmul.f32 %v2278, %v2283
      %v2313 = vmul.f32 %v2279, %v2283
      %v2314 = vmul.f32 %v2280, %v2283
      %v2315 = vmul.f32 %v2281, %v2283
      %v2316 = vadd.f32 %v2218, %v2284
      %v2317 = vadd.f32 %v2219, %v2285
      %v2318 = vadd.f32 %v2220, %v2286
      %v2319 = vadd.f32 %v2221, %v2287
      %v2320 = vadd.f32 %v2222, %v2288
      %v2321 = vadd.f32 %v2223, %v2289
      %v2322 = vadd.f32 %v2224, %v2290
      %v2323 = vadd.f32 %v2225, %v2291
      %v2324 = vadd.f32 %v2226, %v2292
      %v2325 = vadd.f32 %v2227, %v2293
      %v2326 = vadd.f32 %v2228, %v2294
      %v2327 = vadd.f32 %v2229, %v2295
      %v2328 = vadd.f32 %v2230, %v2296
      %v2329 = vadd.f32 %v2231, %v2297
      %v2330 = vadd.f32 %v2232, %v2298
      %v2331 = vadd.f32 %v2233, %v2299
      %v2332 = vadd.f32 %v2234, %v2300
      %v2333 = vadd.f32 %v2235, %v2301
      %v2334 = vadd.f32 %v2236, %v2302
      %v2335 = vadd.f32 %v2237, %v2303
      %v2336 = vadd.f32 %v2238, %v2304
      %v2337 = vadd.f32 %v2239, %v2305
      %v2338 = vadd.f32 %v2240, %v2306
      %v2339 = vadd.f32 %v2241, %v2307
      %v2340 = vadd.f32 %v2242, %v2308
      %v2341 = vadd.f32 %v2243, %v2309
      %v2342 = vadd.f32 %v2244, %v2310
      %v2343 = vadd.f32 %v2245, %v2311
      %v2344 = vadd.f32 %v2246, %v2312
      %v2345 = vadd.f32 %v2247, %v2313
      %v2346 = vadd.f32 %v2248, %v2314
      %v2347 = vadd.f32 %v2249, %v2315
      %v2348 = vld [vmem:[%s1056 + $0x7] sm:$0xff]
      %v2349 = vld [vmem:[%s1056 + $0xf] sm:$0xff]
      %v2350 = vld [vmem:[%s1056 + $0x27] sm:$0xff]
      %v2351 = vld [vmem:[%s1056 + $0x2f] sm:$0xff]
      %v2352 = vld [vmem:[%s1056 + $0x47] sm:$0xff]
      %v2353 = vld [vmem:[%s1056 + $0x4f] sm:$0xff]
      %v2354 = vld [vmem:[%s1056 + $0x67] sm:$0xff]
      %v2355 = vld [vmem:[%s1056 + $0x6f] sm:$0xff]
      %v2356 = vld [vmem:[%s1056 + $0x87] sm:$0xff]
      %v2357 = vld [vmem:[%s1056 + $0x8f] sm:$0xff]
      %v2358 = vld [vmem:[%s1056 + $0xa7] sm:$0xff]
      %v2359 = vld [vmem:[%s1056 + $0xaf] sm:$0xff]
      %v2360 = vld [vmem:[%s1056 + $0xc7] sm:$0xff]
      %v2361 = vld [vmem:[%s1056 + $0xcf] sm:$0xff]
      %v2362 = vld [vmem:[%s1056 + $0xe7] sm:$0xff]
      %v2363 = vld [vmem:[%s1056 + $0xef] sm:$0xff]
      %v2364 = vld [vmem:[%s1056 + $0x107] sm:$0xff]
      %v2365 = vld [vmem:[%s1056 + $0x10f] sm:$0xff]
      %v2366 = vld [vmem:[%s1056 + $0x127] sm:$0xff]
      %v2367 = vld [vmem:[%s1056 + $0x12f] sm:$0xff]
      %v2368 = vld [vmem:[%s1056 + $0x147] sm:$0xff]
      %v2369 = vld [vmem:[%s1056 + $0x14f] sm:$0xff]
      %v2370 = vld [vmem:[%s1056 + $0x167] sm:$0xff]
      %v2371 = vld [vmem:[%s1056 + $0x16f] sm:$0xff]
      %v2372 = vld [vmem:[%s1056 + $0x187] sm:$0xff]
      %v2373 = vld [vmem:[%s1056 + $0x18f] sm:$0xff]
      %v2374 = vld [vmem:[%s1056 + $0x1a7] sm:$0xff]
      %v2375 = vld [vmem:[%s1056 + $0x1af] sm:$0xff]
      %v2376 = vld [vmem:[%s1056 + $0x1c7] sm:$0xff]
      %v2377 = vld [vmem:[%s1056 + $0x1cf] sm:$0xff]
      %v2378 = vld [vmem:[%s1056 + $0x1e7] sm:$0xff]
      %v2379 = vld [vmem:[%s1056 + $0x1ef] sm:$0xff]
      %v2380 = vld [vmem:[%s9 + $0x3] sm:$0x1]
      %v2381 = vperm.slane %v2380, 0
      %v2382 = vmul.f32 %v2348, %v2381
      %v2383 = vmul.f32 %v2349, %v2381
      %v2384 = vmul.f32 %v2350, %v2381
      %v2385 = vmul.f32 %v2351, %v2381
      %v2386 = vmul.f32 %v2352, %v2381
      %v2387 = vmul.f32 %v2353, %v2381
      %v2388 = vmul.f32 %v2354, %v2381
      %v2389 = vmul.f32 %v2355, %v2381
      %v2390 = vmul.f32 %v2356, %v2381
      %v2391 = vmul.f32 %v2357, %v2381
      %v2392 = vmul.f32 %v2358, %v2381
      %v2393 = vmul.f32 %v2359, %v2381
      %v2394 = vmul.f32 %v2360, %v2381
      %v2395 = vmul.f32 %v2361, %v2381
      %v2396 = vmul.f32 %v2362, %v2381
      %v2397 = vmul.f32 %v2363, %v2381
      %v2398 = vmul.f32 %v2364, %v2381
      %v2399 = vmul.f32 %v2365, %v2381
      %v2400 = vmul.f32 %v2366, %v2381
      %v2401 = vmul.f32 %v2367, %v2381
      %v2402 = vmul.f32 %v2368, %v2381
      %v2403 = vmul.f32 %v2369, %v2381
      %v2404 = vmul.f32 %v2370, %v2381
      %v2405 = vmul.f32 %v2371, %v2381
      %v2406 = vmul.f32 %v2372, %v2381
      %v2407 = vmul.f32 %v2373, %v2381
      %v2408 = vmul.f32 %v2374, %v2381
      %v2409 = vmul.f32 %v2375, %v2381
      %v2410 = vmul.f32 %v2376, %v2381
      %v2411 = vmul.f32 %v2377, %v2381
      %v2412 = vmul.f32 %v2378, %v2381
      %v2413 = vmul.f32 %v2379, %v2381
      %v2414 = vadd.f32 %v2316, %v2382
      %v2415 = vadd.f32 %v2317, %v2383
      %v2416 = vadd.f32 %v2318, %v2384
      %v2417 = vadd.f32 %v2319, %v2385
      %v2418 = vadd.f32 %v2320, %v2386
      %v2419 = vadd.f32 %v2321, %v2387
      %v2420 = vadd.f32 %v2322, %v2388
      %v2421 = vadd.f32 %v2323, %v2389
      %v2422 = vadd.f32 %v2324, %v2390
      %v2423 = vadd.f32 %v2325, %v2391
      %v2424 = vadd.f32 %v2326, %v2392
      %v2425 = vadd.f32 %v2327, %v2393
      %v2426 = vadd.f32 %v2328, %v2394
      %v2427 = vadd.f32 %v2329, %v2395
      %v2428 = vadd.f32 %v2330, %v2396
      %v2429 = vadd.f32 %v2331, %v2397
      %v2430 = vadd.f32 %v2332, %v2398
      %v2431 = vadd.f32 %v2333, %v2399
      %v2432 = vadd.f32 %v2334, %v2400
      %v2433 = vadd.f32 %v2335, %v2401
      %v2434 = vadd.f32 %v2336, %v2402
      %v2435 = vadd.f32 %v2337, %v2403
      %v2436 = vadd.f32 %v2338, %v2404
      %v2437 = vadd.f32 %v2339, %v2405
      %v2438 = vadd.f32 %v2340, %v2406
      %v2439 = vadd.f32 %v2341, %v2407
      %v2440 = vadd.f32 %v2342, %v2408
      %v2441 = vadd.f32 %v2343, %v2409
      %v2442 = vadd.f32 %v2344, %v2410
      %v2443 = vadd.f32 %v2345, %v2411
      %v2444 = vadd.f32 %v2346, %v2412
      %v2445 = vadd.f32 %v2347, %v2413
      %v2446 = vld [vmem:[%s1056 + $0x8] sm:$0xff]
      %v2447 = vld [vmem:[%s1056 + $0x10] sm:$0xff]
      %v2448 = vld [vmem:[%s1056 + $0x28] sm:$0xff]
      %v2449 = vld [vmem:[%s1056 + $0x30] sm:$0xff]
      %v2450 = vld [vmem:[%s1056 + $0x48] sm:$0xff]
      %v2451 = vld [vmem:[%s1056 + $0x50] sm:$0xff]
      %v2452 = vld [vmem:[%s1056 + $0x68] sm:$0xff]
      %v2453 = vld [vmem:[%s1056 + $0x70] sm:$0xff]
      %v2454 = vld [vmem:[%s1056 + $0x88] sm:$0xff]
      %v2455 = vld [vmem:[%s1056 + $0x90] sm:$0xff]
      %v2456 = vld [vmem:[%s1056 + $0xa8] sm:$0xff]
      %v2457 = vld [vmem:[%s1056 + $0xb0] sm:$0xff]
      %v2458 = vld [vmem:[%s1056 + $0xc8] sm:$0xff]
      %v2459 = vld [vmem:[%s1056 + $0xd0] sm:$0xff]
      %v2460 = vld [vmem:[%s1056 + $0xe8] sm:$0xff]
      %v2461 = vld [vmem:[%s1056 + $0xf0] sm:$0xff]
      %v2462 = vld [vmem:[%s1056 + $0x108] sm:$0xff]
      %v2463 = vld [vmem:[%s1056 + $0x110] sm:$0xff]
      %v2464 = vld [vmem:[%s1056 + $0x128] sm:$0xff]
      %v2465 = vld [vmem:[%s1056 + $0x130] sm:$0xff]
      %v2466 = vld [vmem:[%s1056 + $0x148] sm:$0xff]
      %v2467 = vld [vmem:[%s1056 + $0x150] sm:$0xff]
      %v2468 = vld [vmem:[%s1056 + $0x168] sm:$0xff]
      %v2469 = vld [vmem:[%s1056 + $0x170] sm:$0xff]
      %v2470 = vld [vmem:[%s1056 + $0x188] sm:$0xff]
      %v2471 = vld [vmem:[%s1056 + $0x190] sm:$0xff]
      %v2472 = vld [vmem:[%s1056 + $0x1a8] sm:$0xff]
      %v2473 = vld [vmem:[%s1056 + $0x1b0] sm:$0xff]
      %v2474 = vld [vmem:[%s1056 + $0x1c8] sm:$0xff]
      %v2475 = vld [vmem:[%s1056 + $0x1d0] sm:$0xff]
      %v2476 = vld [vmem:[%s1056 + $0x1e8] sm:$0xff]
      %v2477 = vld [vmem:[%s1056 + $0x1f0] sm:$0xff]
      %v2478 = vld [vmem:[%s9 + $0x4] sm:$0x1]
      %v2479 = vperm.slane %v2478, 0
      %v2480 = vmul.f32 %v2446, %v2479
      %v2481 = vmul.f32 %v2447, %v2479
      %v2482 = vmul.f32 %v2448, %v2479
      %v2483 = vmul.f32 %v2449, %v2479
      %v2484 = vmul.f32 %v2450, %v2479
      %v2485 = vmul.f32 %v2451, %v2479
      %v2486 = vmul.f32 %v2452, %v2479
      %v2487 = vmul.f32 %v2453, %v2479
      %v2488 = vmul.f32 %v2454, %v2479
      %v2489 = vmul.f32 %v2455, %v2479
      %v2490 = vmul.f32 %v2456, %v2479
      %v2491 = vmul.f32 %v2457, %v2479
      %v2492 = vmul.f32 %v2458, %v2479
      %v2493 = vmul.f32 %v2459, %v2479
      %v2494 = vmul.f32 %v2460, %v2479
      %v2495 = vmul.f32 %v2461, %v2479
      %v2496 = vmul.f32 %v2462, %v2479
      %v2497 = vmul.f32 %v2463, %v2479
      %v2498 = vmul.f32 %v2464, %v2479
      %v2499 = vmul.f32 %v2465, %v2479
      %v2500 = vmul.f32 %v2466, %v2479
      %v2501 = vmul.f32 %v2467, %v2479
      %v2502 = vmul.f32 %v2468, %v2479
      %v2503 = vmul.f32 %v2469, %v2479
      %v2504 = vmul.f32 %v2470, %v2479
      %v2505 = vmul.f32 %v2471, %v2479
      %v2506 = vmul.f32 %v2472, %v2479
      %v2507 = vmul.f32 %v2473, %v2479
      %v2508 = vmul.f32 %v2474, %v2479
      %v2509 = vmul.f32 %v2475, %v2479
      %v2510 = vmul.f32 %v2476, %v2479
      %v2511 = vmul.f32 %v2477, %v2479
      %v2512 = vadd.f32 %v2414, %v2480
      %v2513 = vadd.f32 %v2415, %v2481
      %v2514 = vadd.f32 %v2416, %v2482
      %v2515 = vadd.f32 %v2417, %v2483
      %v2516 = vadd.f32 %v2418, %v2484
      %v2517 = vadd.f32 %v2419, %v2485
      %v2518 = vadd.f32 %v2420, %v2486
      %v2519 = vadd.f32 %v2421, %v2487
      %v2520 = vadd.f32 %v2422, %v2488
      %v2521 = vadd.f32 %v2423, %v2489
      %v2522 = vadd.f32 %v2424, %v2490
      %v2523 = vadd.f32 %v2425, %v2491
      %v2524 = vadd.f32 %v2426, %v2492
      %v2525 = vadd.f32 %v2427, %v2493
      %v2526 = vadd.f32 %v2428, %v2494
      %v2527 = vadd.f32 %v2429, %v2495
      %v2528 = vadd.f32 %v2430, %v2496
      %v2529 = vadd.f32 %v2431, %v2497
      %v2530 = vadd.f32 %v2432, %v2498
      %v2531 = vadd.f32 %v2433, %v2499
      %v2532 = vadd.f32 %v2434, %v2500
      %v2533 = vadd.f32 %v2435, %v2501
      %v2534 = vadd.f32 %v2436, %v2502
      %v2535 = vadd.f32 %v2437, %v2503
      %v2536 = vadd.f32 %v2438, %v2504
      %v2537 = vadd.f32 %v2439, %v2505
      %v2538 = vadd.f32 %v2440, %v2506
      %v2539 = vadd.f32 %v2441, %v2507
      %v2540 = vadd.f32 %v2442, %v2508
      %v2541 = vadd.f32 %v2443, %v2509
      %v2542 = vadd.f32 %v2444, %v2510
      %v2543 = vadd.f32 %v2445, %v2511
      %v2544 = vld [vmem:[%s1056 + $0x9] sm:$0xff]
      %v2545 = vld [vmem:[%s1056 + $0x11] sm:$0xff]
      %v2546 = vld [vmem:[%s1056 + $0x29] sm:$0xff]
      %v2547 = vld [vmem:[%s1056 + $0x31] sm:$0xff]
      %v2548 = vld [vmem:[%s1056 + $0x49] sm:$0xff]
      %v2549 = vld [vmem:[%s1056 + $0x51] sm:$0xff]
      %v2550 = vld [vmem:[%s1056 + $0x69] sm:$0xff]
      %v2551 = vld [vmem:[%s1056 + $0x71] sm:$0xff]
      %v2552 = vld [vmem:[%s1056 + $0x89] sm:$0xff]
      %v2553 = vld [vmem:[%s1056 + $0x91] sm:$0xff]
      %v2554 = vld [vmem:[%s1056 + $0xa9] sm:$0xff]
      %v2555 = vld [vmem:[%s1056 + $0xb1] sm:$0xff]
      %v2556 = vld [vmem:[%s1056 + $0xc9] sm:$0xff]
      %v2557 = vld [vmem:[%s1056 + $0xd1] sm:$0xff]
      %v2558 = vld [vmem:[%s1056 + $0xe9] sm:$0xff]
      %v2559 = vld [vmem:[%s1056 + $0xf1] sm:$0xff]
      %v2560 = vld [vmem:[%s1056 + $0x109] sm:$0xff]
      %v2561 = vld [vmem:[%s1056 + $0x111] sm:$0xff]
      %v2562 = vld [vmem:[%s1056 + $0x129] sm:$0xff]
      %v2563 = vld [vmem:[%s1056 + $0x131] sm:$0xff]
      %v2564 = vld [vmem:[%s1056 + $0x149] sm:$0xff]
      %v2565 = vld [vmem:[%s1056 + $0x151] sm:$0xff]
      %v2566 = vld [vmem:[%s1056 + $0x169] sm:$0xff]
      %v2567 = vld [vmem:[%s1056 + $0x171] sm:$0xff]
      %v2568 = vld [vmem:[%s1056 + $0x189] sm:$0xff]
      %v2569 = vld [vmem:[%s1056 + $0x191] sm:$0xff]
      %v2570 = vld [vmem:[%s1056 + $0x1a9] sm:$0xff]
      %v2571 = vld [vmem:[%s1056 + $0x1b1] sm:$0xff]
      %v2572 = vld [vmem:[%s1056 + $0x1c9] sm:$0xff]
      %v2573 = vld [vmem:[%s1056 + $0x1d1] sm:$0xff]
      %v2574 = vld [vmem:[%s1056 + $0x1e9] sm:$0xff]
      %v2575 = vld [vmem:[%s1056 + $0x1f1] sm:$0xff]
      %v2576 = vld [vmem:[%s9 + $0x5] sm:$0x1]
      %v2577 = vperm.slane %v2576, 0
      %v2578 = vmul.f32 %v2544, %v2577
      %v2579 = vmul.f32 %v2545, %v2577
      %v2580 = vmul.f32 %v2546, %v2577
      %v2581 = vmul.f32 %v2547, %v2577
      %v2582 = vmul.f32 %v2548, %v2577
      %v2583 = vmul.f32 %v2549, %v2577
      %v2584 = vmul.f32 %v2550, %v2577
      %v2585 = vmul.f32 %v2551, %v2577
      %v2586 = vmul.f32 %v2552, %v2577
      %v2587 = vmul.f32 %v2553, %v2577
      %v2588 = vmul.f32 %v2554, %v2577
      %v2589 = vmul.f32 %v2555, %v2577
      %v2590 = vmul.f32 %v2556, %v2577
      %v2591 = vmul.f32 %v2557, %v2577
      %v2592 = vmul.f32 %v2558, %v2577
      %v2593 = vmul.f32 %v2559, %v2577
      %v2594 = vmul.f32 %v2560, %v2577
      %v2595 = vmul.f32 %v2561, %v2577
      %v2596 = vmul.f32 %v2562, %v2577
      %v2597 = vmul.f32 %v2563, %v2577
      %v2598 = vmul.f32 %v2564, %v2577
      %v2599 = vmul.f32 %v2565, %v2577
      %v2600 = vmul.f32 %v2566, %v2577
      %v2601 = vmul.f32 %v2567, %v2577
      %v2602 = vmul.f32 %v2568, %v2577
      %v2603 = vmul.f32 %v2569, %v2577
      %v2604 = vmul.f32 %v2570, %v2577
      %v2605 = vmul.f32 %v2571, %v2577
      %v2606 = vmul.f32 %v2572, %v2577
      %v2607 = vmul.f32 %v2573, %v2577
      %v2608 = vmul.f32 %v2574, %v2577
      %v2609 = vmul.f32 %v2575, %v2577
      %v2610 = vadd.f32 %v2512, %v2578
      %v2611 = vadd.f32 %v2513, %v2579
      %v2612 = vadd.f32 %v2514, %v2580
      %v2613 = vadd.f32 %v2515, %v2581
      %v2614 = vadd.f32 %v2516, %v2582
      %v2615 = vadd.f32 %v2517, %v2583
      %v2616 = vadd.f32 %v2518, %v2584
      %v2617 = vadd.f32 %v2519, %v2585
      %v2618 = vadd.f32 %v2520, %v2586
      %v2619 = vadd.f32 %v2521, %v2587
      %v2620 = vadd.f32 %v2522, %v2588
      %v2621 = vadd.f32 %v2523, %v2589
      %v2622 = vadd.f32 %v2524, %v2590
      %v2623 = vadd.f32 %v2525, %v2591
      %v2624 = vadd.f32 %v2526, %v2592
      %v2625 = vadd.f32 %v2527, %v2593
      %v2626 = vadd.f32 %v2528, %v2594
      %v2627 = vadd.f32 %v2529, %v2595
      %v2628 = vadd.f32 %v2530, %v2596
      %v2629 = vadd.f32 %v2531, %v2597
      %v2630 = vadd.f32 %v2532, %v2598
      %v2631 = vadd.f32 %v2533, %v2599
      %v2632 = vadd.f32 %v2534, %v2600
      %v2633 = vadd.f32 %v2535, %v2601
      %v2634 = vadd.f32 %v2536, %v2602
      %v2635 = vadd.f32 %v2537, %v2603
      %v2636 = vadd.f32 %v2538, %v2604
      %v2637 = vadd.f32 %v2539, %v2605
      %v2638 = vadd.f32 %v2540, %v2606
      %v2639 = vadd.f32 %v2541, %v2607
      %v2640 = vadd.f32 %v2542, %v2608
      %v2641 = vadd.f32 %v2543, %v2609
      %s2642 = scalar_lea.vmem [#allocation3], 64
      %v2643 = vld [vmem:[%s2642 + $0x7] sm:$0xff]
      %v2644 = vld [vmem:[%s2642 + $0xf] sm:$0xff]
      %v2645 = vld [vmem:[%s2642 + $0x27] sm:$0xff]
      %v2646 = vld [vmem:[%s2642 + $0x2f] sm:$0xff]
      %v2647 = vld [vmem:[%s2642 + $0x47] sm:$0xff]
      %v2648 = vld [vmem:[%s2642 + $0x4f] sm:$0xff]
      %v2649 = vld [vmem:[%s2642 + $0x67] sm:$0xff]
      %v2650 = vld [vmem:[%s2642 + $0x6f] sm:$0xff]
      %v2651 = vld [vmem:[%s2642 + $0x87] sm:$0xff]
      %v2652 = vld [vmem:[%s2642 + $0x8f] sm:$0xff]
      %v2653 = vld [vmem:[%s2642 + $0xa7] sm:$0xff]
      %v2654 = vld [vmem:[%s2642 + $0xaf] sm:$0xff]
      %v2655 = vld [vmem:[%s2642 + $0xc7] sm:$0xff]
      %v2656 = vld [vmem:[%s2642 + $0xcf] sm:$0xff]
      %v2657 = vld [vmem:[%s2642 + $0xe7] sm:$0xff]
      %v2658 = vld [vmem:[%s2642 + $0xef] sm:$0xff]
      %v2659 = vld [vmem:[%s2642 + $0x107] sm:$0xff]
      %v2660 = vld [vmem:[%s2642 + $0x10f] sm:$0xff]
      %v2661 = vld [vmem:[%s2642 + $0x127] sm:$0xff]
      %v2662 = vld [vmem:[%s2642 + $0x12f] sm:$0xff]
      %v2663 = vld [vmem:[%s2642 + $0x147] sm:$0xff]
      %v2664 = vld [vmem:[%s2642 + $0x14f] sm:$0xff]
      %v2665 = vld [vmem:[%s2642 + $0x167] sm:$0xff]
      %v2666 = vld [vmem:[%s2642 + $0x16f] sm:$0xff]
      %v2667 = vld [vmem:[%s2642 + $0x187] sm:$0xff]
      %v2668 = vld [vmem:[%s2642 + $0x18f] sm:$0xff]
      %v2669 = vld [vmem:[%s2642 + $0x1a7] sm:$0xff]
      %v2670 = vld [vmem:[%s2642 + $0x1af] sm:$0xff]
      %v2671 = vld [vmem:[%s2642 + $0x1c7] sm:$0xff]
      %v2672 = vld [vmem:[%s2642 + $0x1cf] sm:$0xff]
      %v2673 = vld [vmem:[%s2642 + $0x1e7] sm:$0xff]
      %v2674 = vld [vmem:[%s2642 + $0x1ef] sm:$0xff]
      %v2675 = vld [vmem:[%s9 + $0x6] sm:$0x1]
      %v2676 = vperm.slane %v2675, 0
      %v2677 = vmul.f32 %v2643, %v2676
      %v2678 = vmul.f32 %v2644, %v2676
      %v2679 = vmul.f32 %v2645, %v2676
      %v2680 = vmul.f32 %v2646, %v2676
      %v2681 = vmul.f32 %v2647, %v2676
      %v2682 = vmul.f32 %v2648, %v2676
      %v2683 = vmul.f32 %v2649, %v2676
      %v2684 = vmul.f32 %v2650, %v2676
      %v2685 = vmul.f32 %v2651, %v2676
      %v2686 = vmul.f32 %v2652, %v2676
      %v2687 = vmul.f32 %v2653, %v2676
      %v2688 = vmul.f32 %v2654, %v2676
      %v2689 = vmul.f32 %v2655, %v2676
      %v2690 = vmul.f32 %v2656, %v2676
      %v2691 = vmul.f32 %v2657, %v2676
      %v2692 = vmul.f32 %v2658, %v2676
      %v2693 = vmul.f32 %v2659, %v2676
      %v2694 = vmul.f32 %v2660, %v2676
      %v2695 = vmul.f32 %v2661, %v2676
      %v2696 = vmul.f32 %v2662, %v2676
      %v2697 = vmul.f32 %v2663, %v2676
      %v2698 = vmul.f32 %v2664, %v2676
      %v2699 = vmul.f32 %v2665, %v2676
      %v2700 = vmul.f32 %v2666, %v2676
      %v2701 = vmul.f32 %v2667, %v2676
      %v2702 = vmul.f32 %v2668, %v2676
      %v2703 = vmul.f32 %v2669, %v2676
      %v2704 = vmul.f32 %v2670, %v2676
      %v2705 = vmul.f32 %v2671, %v2676
      %v2706 = vmul.f32 %v2672, %v2676
      %v2707 = vmul.f32 %v2673, %v2676
      %v2708 = vmul.f32 %v2674, %v2676
      %v2709 = vadd.f32 %v2610, %v2677
      %v2710 = vadd.f32 %v2611, %v2678
      %v2711 = vadd.f32 %v2612, %v2679
      %v2712 = vadd.f32 %v2613, %v2680
      %v2713 = vadd.f32 %v2614, %v2681
      %v2714 = vadd.f32 %v2615, %v2682
      %v2715 = vadd.f32 %v2616, %v2683
      %v2716 = vadd.f32 %v2617, %v2684
      %v2717 = vadd.f32 %v2618, %v2685
      %v2718 = vadd.f32 %v2619, %v2686
      %v2719 = vadd.f32 %v2620, %v2687
      %v2720 = vadd.f32 %v2621, %v2688
      %v2721 = vadd.f32 %v2622, %v2689
      %v2722 = vadd.f32 %v2623, %v2690
      %v2723 = vadd.f32 %v2624, %v2691
      %v2724 = vadd.f32 %v2625, %v2692
      %v2725 = vadd.f32 %v2626, %v2693
      %v2726 = vadd.f32 %v2627, %v2694
      %v2727 = vadd.f32 %v2628, %v2695
      %v2728 = vadd.f32 %v2629, %v2696
      %v2729 = vadd.f32 %v2630, %v2697
      %v2730 = vadd.f32 %v2631, %v2698
      %v2731 = vadd.f32 %v2632, %v2699
      %v2732 = vadd.f32 %v2633, %v2700
      %v2733 = vadd.f32 %v2634, %v2701
      %v2734 = vadd.f32 %v2635, %v2702
      %v2735 = vadd.f32 %v2636, %v2703
      %v2736 = vadd.f32 %v2637, %v2704
      %v2737 = vadd.f32 %v2638, %v2705
      %v2738 = vadd.f32 %v2639, %v2706
      %v2739 = vadd.f32 %v2640, %v2707
      %v2740 = vadd.f32 %v2641, %v2708
      %v2741 = vld [vmem:[%s2642 + $0x8] sm:$0xff]
      %v2742 = vld [vmem:[%s2642 + $0x10] sm:$0xff]
      %v2743 = vld [vmem:[%s2642 + $0x28] sm:$0xff]
      %v2744 = vld [vmem:[%s2642 + $0x30] sm:$0xff]
      %v2745 = vld [vmem:[%s2642 + $0x48] sm:$0xff]
      %v2746 = vld [vmem:[%s2642 + $0x50] sm:$0xff]
      %v2747 = vld [vmem:[%s2642 + $0x68] sm:$0xff]
      %v2748 = vld [vmem:[%s2642 + $0x70] sm:$0xff]
      %v2749 = vld [vmem:[%s2642 + $0x88] sm:$0xff]
      %v2750 = vld [vmem:[%s2642 + $0x90] sm:$0xff]
      %v2751 = vld [vmem:[%s2642 + $0xa8] sm:$0xff]
      %v2752 = vld [vmem:[%s2642 + $0xb0] sm:$0xff]
      %v2753 = vld [vmem:[%s2642 + $0xc8] sm:$0xff]
      %v2754 = vld [vmem:[%s2642 + $0xd0] sm:$0xff]
      %v2755 = vld [vmem:[%s2642 + $0xe8] sm:$0xff]
      %v2756 = vld [vmem:[%s2642 + $0xf0] sm:$0xff]
      %v2757 = vld [vmem:[%s2642 + $0x108] sm:$0xff]
      %v2758 = vld [vmem:[%s2642 + $0x110] sm:$0xff]
      %v2759 = vld [vmem:[%s2642 + $0x128] sm:$0xff]
      %v2760 = vld [vmem:[%s2642 + $0x130] sm:$0xff]
      %v2761 = vld [vmem:[%s2642 + $0x148] sm:$0xff]
      %v2762 = vld [vmem:[%s2642 + $0x150] sm:$0xff]
      %v2763 = vld [vmem:[%s2642 + $0x168] sm:$0xff]
      %v2764 = vld [vmem:[%s2642 + $0x170] sm:$0xff]
      %v2765 = vld [vmem:[%s2642 + $0x188] sm:$0xff]
      %v2766 = vld [vmem:[%s2642 + $0x190] sm:$0xff]
      %v2767 = vld [vmem:[%s2642 + $0x1a8] sm:$0xff]
      %v2768 = vld [vmem:[%s2642 + $0x1b0] sm:$0xff]
      %v2769 = vld [vmem:[%s2642 + $0x1c8] sm:$0xff]
      %v2770 = vld [vmem:[%s2642 + $0x1d0] sm:$0xff]
      %v2771 = vld [vmem:[%s2642 + $0x1e8] sm:$0xff]
      %v2772 = vld [vmem:[%s2642 + $0x1f0] sm:$0xff]
      %v2773 = vld [vmem:[%s9 + $0x7] sm:$0x1]
      %v2774 = vperm.slane %v2773, 0
      %v2775 = vmul.f32 %v2741, %v2774
      %v2776 = vmul.f32 %v2742, %v2774
      %v2777 = vmul.f32 %v2743, %v2774
      %v2778 = vmul.f32 %v2744, %v2774
      %v2779 = vmul.f32 %v2745, %v2774
      %v2780 = vmul.f32 %v2746, %v2774
      %v2781 = vmul.f32 %v2747, %v2774
      %v2782 = vmul.f32 %v2748, %v2774
      %v2783 = vmul.f32 %v2749, %v2774
      %v2784 = vmul.f32 %v2750, %v2774
      %v2785 = vmul.f32 %v2751, %v2774
      %v2786 = vmul.f32 %v2752, %v2774
      %v2787 = vmul.f32 %v2753, %v2774
      %v2788 = vmul.f32 %v2754, %v2774
      %v2789 = vmul.f32 %v2755, %v2774
      %v2790 = vmul.f32 %v2756, %v2774
      %v2791 = vmul.f32 %v2757, %v2774
      %v2792 = vmul.f32 %v2758, %v2774
      %v2793 = vmul.f32 %v2759, %v2774
      %v2794 = vmul.f32 %v2760, %v2774
      %v2795 = vmul.f32 %v2761, %v2774
      %v2796 = vmul.f32 %v2762, %v2774
      %v2797 = vmul.f32 %v2763, %v2774
      %v2798 = vmul.f32 %v2764, %v2774
      %v2799 = vmul.f32 %v2765, %v2774
      %v2800 = vmul.f32 %v2766, %v2774
      %v2801 = vmul.f32 %v2767, %v2774
      %v2802 = vmul.f32 %v2768, %v2774
      %v2803 = vmul.f32 %v2769, %v2774
      %v2804 = vmul.f32 %v2770, %v2774
      %v2805 = vmul.f32 %v2771, %v2774
      %v2806 = vmul.f32 %v2772, %v2774
      %v2807 = vadd.f32 %v2709, %v2775
      %v2808 = vadd.f32 %v2710, %v2776
      %v2809 = vadd.f32 %v2711, %v2777
      %v2810 = vadd.f32 %v2712, %v2778
      %v2811 = vadd.f32 %v2713, %v2779
      %v2812 = vadd.f32 %v2714, %v2780
      %v2813 = vadd.f32 %v2715, %v2781
      %v2814 = vadd.f32 %v2716, %v2782
      %v2815 = vadd.f32 %v2717, %v2783
      %v2816 = vadd.f32 %v2718, %v2784
      %v2817 = vadd.f32 %v2719, %v2785
      %v2818 = vadd.f32 %v2720, %v2786
      %v2819 = vadd.f32 %v2721, %v2787
      %v2820 = vadd.f32 %v2722, %v2788
      %v2821 = vadd.f32 %v2723, %v2789
      %v2822 = vadd.f32 %v2724, %v2790
      %v2823 = vadd.f32 %v2725, %v2791
      %v2824 = vadd.f32 %v2726, %v2792
      %v2825 = vadd.f32 %v2727, %v2793
      %v2826 = vadd.f32 %v2728, %v2794
      %v2827 = vadd.f32 %v2729, %v2795
      %v2828 = vadd.f32 %v2730, %v2796
      %v2829 = vadd.f32 %v2731, %v2797
      %v2830 = vadd.f32 %v2732, %v2798
      %v2831 = vadd.f32 %v2733, %v2799
      %v2832 = vadd.f32 %v2734, %v2800
      %v2833 = vadd.f32 %v2735, %v2801
      %v2834 = vadd.f32 %v2736, %v2802
      %v2835 = vadd.f32 %v2737, %v2803
      %v2836 = vadd.f32 %v2738, %v2804
      %v2837 = vadd.f32 %v2739, %v2805
      %v2838 = vadd.f32 %v2740, %v2806
      %v2839 = vld [vmem:[%s2642 + $0x9] sm:$0xff]
      %v2840 = vld [vmem:[%s2642 + $0x11] sm:$0xff]
      %v2841 = vld [vmem:[%s2642 + $0x29] sm:$0xff]
      %v2842 = vld [vmem:[%s2642 + $0x31] sm:$0xff]
      %v2843 = vld [vmem:[%s2642 + $0x49] sm:$0xff]
      %v2844 = vld [vmem:[%s2642 + $0x51] sm:$0xff]
      %v2845 = vld [vmem:[%s2642 + $0x69] sm:$0xff]
      %v2846 = vld [vmem:[%s2642 + $0x71] sm:$0xff]
      %v2847 = vld [vmem:[%s2642 + $0x89] sm:$0xff]
      %v2848 = vld [vmem:[%s2642 + $0x91] sm:$0xff]
      %v2849 = vld [vmem:[%s2642 + $0xa9] sm:$0xff]
      %v2850 = vld [vmem:[%s2642 + $0xb1] sm:$0xff]
      %v2851 = vld [vmem:[%s2642 + $0xc9] sm:$0xff]
      %v2852 = vld [vmem:[%s2642 + $0xd1] sm:$0xff]
      %v2853 = vld [vmem:[%s2642 + $0xe9] sm:$0xff]
      %v2854 = vld [vmem:[%s2642 + $0xf1] sm:$0xff]
      %v2855 = vld [vmem:[%s2642 + $0x109] sm:$0xff]
      %v2856 = vld [vmem:[%s2642 + $0x111] sm:$0xff]
      %v2857 = vld [vmem:[%s2642 + $0x129] sm:$0xff]
      %v2858 = vld [vmem:[%s2642 + $0x131] sm:$0xff]
      %v2859 = vld [vmem:[%s2642 + $0x149] sm:$0xff]
      %v2860 = vld [vmem:[%s2642 + $0x151] sm:$0xff]
      %v2861 = vld [vmem:[%s2642 + $0x169] sm:$0xff]
      %v2862 = vld [vmem:[%s2642 + $0x171] sm:$0xff]
      %v2863 = vld [vmem:[%s2642 + $0x189] sm:$0xff]
      %v2864 = vld [vmem:[%s2642 + $0x191] sm:$0xff]
      %v2865 = vld [vmem:[%s2642 + $0x1a9] sm:$0xff]
      %v2866 = vld [vmem:[%s2642 + $0x1b1] sm:$0xff]
      %v2867 = vld [vmem:[%s2642 + $0x1c9] sm:$0xff]
      %v2868 = vld [vmem:[%s2642 + $0x1d1] sm:$0xff]
      %v2869 = vld [vmem:[%s2642 + $0x1e9] sm:$0xff]
      %v2870 = vld [vmem:[%s2642 + $0x1f1] sm:$0xff]
      %v2871 = vld [vmem:[%s9 + $0x8] sm:$0x1]
      %v2872 = vperm.slane %v2871, 0
      %v2873 = vmul.f32 %v2839, %v2872
      %v2874 = vmul.f32 %v2840, %v2872
      %v2875 = vmul.f32 %v2841, %v2872
      %v2876 = vmul.f32 %v2842, %v2872
      %v2877 = vmul.f32 %v2843, %v2872
      %v2878 = vmul.f32 %v2844, %v2872
      %v2879 = vmul.f32 %v2845, %v2872
      %v2880 = vmul.f32 %v2846, %v2872
      %v2881 = vmul.f32 %v2847, %v2872
      %v2882 = vmul.f32 %v2848, %v2872
      %v2883 = vmul.f32 %v2849, %v2872
      %v2884 = vmul.f32 %v2850, %v2872
      %v2885 = vmul.f32 %v2851, %v2872
      %v2886 = vmul.f32 %v2852, %v2872
      %v2887 = vmul.f32 %v2853, %v2872
      %v2888 = vmul.f32 %v2854, %v2872
      %v2889 = vmul.f32 %v2855, %v2872
      %v2890 = vmul.f32 %v2856, %v2872
      %v2891 = vmul.f32 %v2857, %v2872
      %v2892 = vmul.f32 %v2858, %v2872
      %v2893 = vmul.f32 %v2859, %v2872
      %v2894 = vmul.f32 %v2860, %v2872
      %v2895 = vmul.f32 %v2861, %v2872
      %v2896 = vmul.f32 %v2862, %v2872
      %v2897 = vmul.f32 %v2863, %v2872
      %v2898 = vmul.f32 %v2864, %v2872
      %v2899 = vmul.f32 %v2865, %v2872
      %v2900 = vmul.f32 %v2866, %v2872
      %v2901 = vmul.f32 %v2867, %v2872
      %v2902 = vmul.f32 %v2868, %v2872
      %v2903 = vmul.f32 %v2869, %v2872
      %v2904 = vmul.f32 %v2870, %v2872
      %v2905 = vadd.f32 %v2807, %v2873
      %v2906 = vadd.f32 %v2808, %v2874
      %v2907 = vadd.f32 %v2809, %v2875
      %v2908 = vadd.f32 %v2810, %v2876
      %v2909 = vadd.f32 %v2811, %v2877
      %v2910 = vadd.f32 %v2812, %v2878
      %v2911 = vadd.f32 %v2813, %v2879
      %v2912 = vadd.f32 %v2814, %v2880
      %v2913 = vadd.f32 %v2815, %v2881
      %v2914 = vadd.f32 %v2816, %v2882
      %v2915 = vadd.f32 %v2817, %v2883
      %v2916 = vadd.f32 %v2818, %v2884
      %v2917 = vadd.f32 %v2819, %v2885
      %v2918 = vadd.f32 %v2820, %v2886
      %v2919 = vadd.f32 %v2821, %v2887
      %v2920 = vadd.f32 %v2822, %v2888
      %v2921 = vadd.f32 %v2823, %v2889
      %v2922 = vadd.f32 %v2824, %v2890
      %v2923 = vadd.f32 %v2825, %v2891
      %v2924 = vadd.f32 %v2826, %v2892
      %v2925 = vadd.f32 %v2827, %v2893
      %v2926 = vadd.f32 %v2828, %v2894
      %v2927 = vadd.f32 %v2829, %v2895
      %v2928 = vadd.f32 %v2830, %v2896
      %v2929 = vadd.f32 %v2831, %v2897
      %v2930 = vadd.f32 %v2832, %v2898
      %v2931 = vadd.f32 %v2833, %v2899
      %v2932 = vadd.f32 %v2834, %v2900
      %v2933 = vadd.f32 %v2835, %v2901
      %v2934 = vadd.f32 %v2836, %v2902
      %v2935 = vadd.f32 %v2837, %v2903
      %v2936 = vadd.f32 %v2838, %v2904
      %v2937 = vld [vmem:[%s10] sm:$0x1]
      %v2939 = vperm.slane %v2937, 0
      %v2941 = vadd.f32 %v2905, %v2939
      %v2942 = vadd.f32 %v2906, %v2939
      %v2943 = vadd.f32 %v2907, %v2939
      %v2944 = vadd.f32 %v2908, %v2939
      %v2945 = vadd.f32 %v2909, %v2939
      %v2946 = vadd.f32 %v2910, %v2939
      %v2947 = vadd.f32 %v2911, %v2939
      %v2948 = vadd.f32 %v2912, %v2939
      %v2949 = vadd.f32 %v2913, %v2939
      %v2950 = vadd.f32 %v2914, %v2939
      %v2951 = vadd.f32 %v2915, %v2939
      %v2952 = vadd.f32 %v2916, %v2939
      %v2953 = vadd.f32 %v2917, %v2939
      %v2954 = vadd.f32 %v2918, %v2939
      %v2955 = vadd.f32 %v2919, %v2939
      %v2956 = vadd.f32 %v2920, %v2939
      %v2957 = vadd.f32 %v2921, %v2939
      %v2958 = vadd.f32 %v2922, %v2939
      %v2959 = vadd.f32 %v2923, %v2939
      %v2960 = vadd.f32 %v2924, %v2939
      %v2961 = vadd.f32 %v2925, %v2939
      %v2962 = vadd.f32 %v2926, %v2939
      %v2963 = vadd.f32 %v2927, %v2939
      %v2964 = vadd.f32 %v2928, %v2939
      %v2965 = vadd.f32 %v2929, %v2939
      %v2966 = vadd.f32 %v2930, %v2939
      %v2967 = vadd.f32 %v2931, %v2939
      %v2968 = vadd.f32 %v2932, %v2939
      %v2969 = vadd.f32 %v2933, %v2939
      %v2970 = vadd.f32 %v2934, %v2939
      %v2971 = vadd.f32 %v2935, %v2939
      %v2972 = vadd.f32 %v2936, %v2939
      %v2973 = vmax.f32 %v2941, 0.0
      %v2974 = vmax.f32 %v2942, 0.0
      %v2975 = vmax.f32 %v2943, 0.0
      %v2976 = vmax.f32 %v2944, 0.0
      %v2977 = vmax.f32 %v2945, 0.0
      %v2978 = vmax.f32 %v2946, 0.0
      %v2979 = vmax.f32 %v2947, 0.0
      %v2980 = vmax.f32 %v2948, 0.0
      %v2981 = vmax.f32 %v2949, 0.0
      %v2982 = vmax.f32 %v2950, 0.0
      %v2983 = vmax.f32 %v2951, 0.0
      %v2984 = vmax.f32 %v2952, 0.0
      %v2985 = vmax.f32 %v2953, 0.0
      %v2986 = vmax.f32 %v2954, 0.0
      %v2987 = vmax.f32 %v2955, 0.0
      %v2988 = vmax.f32 %v2956, 0.0
      %v2989 = vmax.f32 %v2957, 0.0
      %v2990 = vmax.f32 %v2958, 0.0
      %v2991 = vmax.f32 %v2959, 0.0
      %v2992 = vmax.f32 %v2960, 0.0
      %v2993 = vmax.f32 %v2961, 0.0
      %v2994 = vmax.f32 %v2962, 0.0
      %v2995 = vmax.f32 %v2963, 0.0
      %v2996 = vmax.f32 %v2964, 0.0
      %v2997 = vmax.f32 %v2965, 0.0
      %v2998 = vmax.f32 %v2966, 0.0
      %v2999 = vmax.f32 %v2967, 0.0
      %v3000 = vmax.f32 %v2968, 0.0
      %v3001 = vmax.f32 %v2969, 0.0
      %v3002 = vmax.f32 %v2970, 0.0
      %v3003 = vmax.f32 %v2971, 0.0
      %v3004 = vmax.f32 %v2972, 0.0
      %v3005 = vld [vmem:[%s8] sm:$0xf]
      %v3006 = vld [vmem:[%s11] sm:$0xf]
      %v3008 = vsel %vm798, %v2973, 0
      %v3011 = vsel %vm798, %v2974, 0
      %v3014 = vsel %vm798, %v2975, 0
      %v3017 = vsel %vm798, %v2976, 0
      %v3020 = vsel %vm798, %v2977, 0
      %v3023 = vsel %vm798, %v2978, 0
      %v3026 = vsel %vm798, %v2979, 0
      %v3029 = vsel %vm798, %v2980, 0
      %v3032 = vsel %vm798, %v2981, 0
      %v3035 = vsel %vm798, %v2982, 0
      %v3038 = vsel %vm798, %v2983, 0
      %v3041 = vsel %vm798, %v2984, 0
      %v3044 = vsel %vm798, %v2985, 0
      %v3047 = vsel %vm798, %v2986, 0
      %v3050 = vsel %vm798, %v2987, 0
      %v3053 = vsel %vm798, %v2988, 0
      %v3056 = vsel %vm798, %v2989, 0
      %v3059 = vsel %vm798, %v2990, 0
      %v3062 = vsel %vm798, %v2991, 0
      %v3065 = vsel %vm798, %v2992, 0
      %v3068 = vsel %vm798, %v2993, 0
      %v3071 = vsel %vm798, %v2994, 0
      %v3074 = vsel %vm798, %v2995, 0
      %v3077 = vsel %vm798, %v2996, 0
      %v3080 = vsel %vm798, %v2997, 0
      %v3083 = vsel %vm798, %v2998, 0
      %v3086 = vsel %vm798, %v2999, 0
      %v3089 = vsel %vm798, %v3000, 0
      %v3092 = vsel %vm798, %v3001, 0
      %v3095 = vsel %vm798, %v3002, 0
      %v3098 = vsel %vm798, %v3003, 0
      %v3101 = vsel %vm798, %v3004, 0
      %vm3103 = vcmask 1043456
      %v3105 = vsel %vm3103, %v3006, 0
      %3107 = vmatpush.msra.mxu0 0.0
      %3108 = vmatpush.msra.mxu0 0.0
      %3109 = vmatpush.msra.mxu0 0.0
      %3110 = vmatpush.msra.mxu0 0.0
      %3111 = vmatpush.msra.mxu0 0.0
      %3112 = vmatpush.msra.mxu0 0.0
      %3113 = vmatpush.msra.mxu0 0.0
      %3114 = vmatpush.msra.mxu0 0.0
      %3115 = vmatpush.msra.mxu0 0.0
      %3116 = vmatpush.msra.mxu0 0.0
      %3117 = vmatpush.msra.mxu0 0.0
      %3118 = vmatpush.msra.mxu0 0.0
      %3119 = vmatpush.msra.mxu0 0.0
      %3120 = vmatpush.msra.mxu0 0.0
      %3121 = vmatpush.msra.mxu0 0.0
      %3122 = vmatpush.msra.mxu0 %v3105
      %3123 = vmatmul.f32.gmra.mxu0 %v3008
      %v3124 = vpop.f32.mrf.mxu0
      %v3125 = vadd.f32 0.0, %v3124
      %3126 = vmatmul.f32.gmra.mxu0 %v3011
      %v3127 = vpop.f32.mrf.mxu0
      %v3128 = vadd.f32 0.0, %v3127
      %3129 = vmatmul.f32.gmra.mxu0 %v3014
      %v3130 = vpop.f32.mrf.mxu0
      %v3131 = vadd.f32 0.0, %v3130
      %3132 = vmatmul.f32.gmra.mxu0 %v3017
      %v3133 = vpop.f32.mrf.mxu0
      %v3134 = vadd.f32 0.0, %v3133
      %3135 = vmatmul.f32.gmra.mxu0 %v3020
      %v3136 = vpop.f32.mrf.mxu0
      %v3137 = vadd.f32 0.0, %v3136
      %3138 = vmatmul.f32.gmra.mxu0 %v3023
      %v3139 = vpop.f32.mrf.mxu0
      %v3140 = vadd.f32 0.0, %v3139
      %3141 = vmatmul.f32.gmra.mxu0 %v3026
      %v3142 = vpop.f32.mrf.mxu0
      %v3143 = vadd.f32 0.0, %v3142
      %3144 = vmatmul.f32.gmra.mxu0 %v3029
      %v3145 = vpop.f32.mrf.mxu0
      %v3146 = vadd.f32 0.0, %v3145
      %3147 = vmatmul.f32.gmra.mxu0 %v3032
      %v3148 = vpop.f32.mrf.mxu0
      %v3149 = vadd.f32 0.0, %v3148
      %3150 = vmatmul.f32.gmra.mxu0 %v3035
      %v3151 = vpop.f32.mrf.mxu0
      %v3152 = vadd.f32 0.0, %v3151
      %3153 = vmatmul.f32.gmra.mxu0 %v3038
      %v3154 = vpop.f32.mrf.mxu0
      %v3155 = vadd.f32 0.0, %v3154
      %3156 = vmatmul.f32.gmra.mxu0 %v3041
      %v3157 = vpop.f32.mrf.mxu0
      %v3158 = vadd.f32 0.0, %v3157
      %3159 = vmatmul.f32.gmra.mxu0 %v3044
      %v3160 = vpop.f32.mrf.mxu0
      %v3161 = vadd.f32 0.0, %v3160
      %3162 = vmatmul.f32.gmra.mxu0 %v3047
      %v3163 = vpop.f32.mrf.mxu0
      %v3164 = vadd.f32 0.0, %v3163
      %3165 = vmatmul.f32.gmra.mxu0 %v3050
      %v3166 = vpop.f32.mrf.mxu0
      %v3167 = vadd.f32 0.0, %v3166
      %3168 = vmatmul.f32.gmra.mxu0 %v3053
      %v3169 = vpop.f32.mrf.mxu0
      %v3170 = vadd.f32 0.0, %v3169
      %3171 = vmatmul.f32.gmra.mxu0 %v3056
      %v3172 = vpop.f32.mrf.mxu0
      %v3173 = vadd.f32 0.0, %v3172
      %3174 = vmatmul.f32.gmra.mxu0 %v3059
      %v3175 = vpop.f32.mrf.mxu0
      %v3176 = vadd.f32 0.0, %v3175
      %3177 = vmatmul.f32.gmra.mxu0 %v3062
      %v3178 = vpop.f32.mrf.mxu0
      %v3179 = vadd.f32 0.0, %v3178
      %3180 = vmatmul.f32.gmra.mxu0 %v3065
      %v3181 = vpop.f32.mrf.mxu0
      %v3182 = vadd.f32 0.0, %v3181
      %3183 = vmatmul.f32.gmra.mxu0 %v3068
      %v3184 = vpop.f32.mrf.mxu0
      %v3185 = vadd.f32 0.0, %v3184
      %3186 = vmatmul.f32.gmra.mxu0 %v3071
      %v3187 = vpop.f32.mrf.mxu0
      %v3188 = vadd.f32 0.0, %v3187
      %3189 = vmatmul.f32.gmra.mxu0 %v3074
      %v3190 = vpop.f32.mrf.mxu0
      %v3191 = vadd.f32 0.0, %v3190
      %3192 = vmatmul.f32.gmra.mxu0 %v3077
      %v3193 = vpop.f32.mrf.mxu0
      %v3194 = vadd.f32 0.0, %v3193
      %3195 = vmatmul.f32.gmra.mxu0 %v3080
      %v3196 = vpop.f32.mrf.mxu0
      %v3197 = vadd.f32 0.0, %v3196
      %3198 = vmatmul.f32.gmra.mxu0 %v3083
      %v3199 = vpop.f32.mrf.mxu0
      %v3200 = vadd.f32 0.0, %v3199
      %3201 = vmatmul.f32.gmra.mxu0 %v3086
      %v3202 = vpop.f32.mrf.mxu0
      %v3203 = vadd.f32 0.0, %v3202
      %3204 = vmatmul.f32.gmra.mxu0 %v3089
      %v3205 = vpop.f32.mrf.mxu0
      %v3206 = vadd.f32 0.0, %v3205
      %3207 = vmatmul.f32.gmra.mxu0 %v3092
      %v3208 = vpop.f32.mrf.mxu0
      %v3209 = vadd.f32 0.0, %v3208
      %3210 = vmatmul.f32.gmra.mxu0 %v3095
      %v3211 = vpop.f32.mrf.mxu0
      %v3212 = vadd.f32 0.0, %v3211
      %3213 = vmatmul.f32.gmra.mxu0 %v3098
      %v3214 = vpop.f32.mrf.mxu0
      %v3215 = vadd.f32 0.0, %v3214
      %3216 = vmatmul.f32.gmra.mxu0 %v3101
      %v3217 = vpop.f32.mrf.mxu0
      %v3218 = vadd.f32 0.0, %v3217
      %3219 = vdwg.mxu0
      %v3221 = vsel %vm798, %v2022, 0
      %v3224 = vsel %vm798, %v2023, 0
      %v3227 = vsel %vm798, %v2024, 0
      %v3230 = vsel %vm798, %v2025, 0
      %v3233 = vsel %vm798, %v2026, 0
      %v3236 = vsel %vm798, %v2027, 0
      %v3239 = vsel %vm798, %v2028, 0
      %v3242 = vsel %vm798, %v2029, 0
      %v3245 = vsel %vm798, %v2030, 0
      %v3248 = vsel %vm798, %v2031, 0
      %v3251 = vsel %vm798, %v2032, 0
      %v3254 = vsel %vm798, %v2033, 0
      %v3257 = vsel %vm798, %v2034, 0
      %v3260 = vsel %vm798, %v2035, 0
      %v3263 = vsel %vm798, %v2036, 0
      %v3266 = vsel %vm798, %v2037, 0
      %v3269 = vsel %vm798, %v2038, 0
      %v3272 = vsel %vm798, %v2039, 0
      %v3275 = vsel %vm798, %v2040, 0
      %v3278 = vsel %vm798, %v2041, 0
      %v3281 = vsel %vm798, %v2042, 0
      %v3284 = vsel %vm798, %v2043, 0
      %v3287 = vsel %vm798, %v2044, 0
      %v3290 = vsel %vm798, %v2045, 0
      %v3293 = vsel %vm798, %v2046, 0
      %v3296 = vsel %vm798, %v2047, 0
      %v3299 = vsel %vm798, %v2048, 0
      %v3302 = vsel %vm798, %v2049, 0
      %v3305 = vsel %vm798, %v2050, 0
      %v3308 = vsel %vm798, %v2051, 0
      %v3311 = vsel %vm798, %v2052, 0
      %v3314 = vsel %vm798, %v2053, 0
      %v3317 = vsel %vm3103, %v3005, 0
      %3319 = vmatpush.msra.mxu0 0.0
      %3320 = vmatpush.msra.mxu0 0.0
      %3321 = vmatpush.msra.mxu0 0.0
      %3322 = vmatpush.msra.mxu0 0.0
      %3323 = vmatpush.msra.mxu0 0.0
      %3324 = vmatpush.msra.mxu0 0.0
      %3325 = vmatpush.msra.mxu0 0.0
      %3326 = vmatpush.msra.mxu0 0.0
      %3327 = vmatpush.msra.mxu0 0.0
      %3328 = vmatpush.msra.mxu0 0.0
      %3329 = vmatpush.msra.mxu0 0.0
      %3330 = vmatpush.msra.mxu0 0.0
      %3331 = vmatpush.msra.mxu0 0.0
      %3332 = vmatpush.msra.mxu0 0.0
      %3333 = vmatpush.msra.mxu0 0.0
      %3334 = vmatpush.msra.mxu0 %v3317
      %3335 = vmatmul.f32.gmra.mxu0 %v3221
      %v3336 = vpop.f32.mrf.mxu0
      %v3337 = vadd.f32 %v3125, %v3336
      %3338 = vmatmul.f32.gmra.mxu0 %v3224
      %v3339 = vpop.f32.mrf.mxu0
      %v3340 = vadd.f32 %v3128, %v3339
      %3341 = vmatmul.f32.gmra.mxu0 %v3227
      %v3342 = vpop.f32.mrf.mxu0
      %v3343 = vadd.f32 %v3131, %v3342
      %3344 = vmatmul.f32.gmra.mxu0 %v3230
      %v3345 = vpop.f32.mrf.mxu0
      %v3346 = vadd.f32 %v3134, %v3345
      %3347 = vmatmul.f32.gmra.mxu0 %v3233
      %v3348 = vpop.f32.mrf.mxu0
      %v3349 = vadd.f32 %v3137, %v3348
      %3350 = vmatmul.f32.gmra.mxu0 %v3236
      %v3351 = vpop.f32.mrf.mxu0
      %v3352 = vadd.f32 %v3140, %v3351
      %3353 = vmatmul.f32.gmra.mxu0 %v3239
      %v3354 = vpop.f32.mrf.mxu0
      %v3355 = vadd.f32 %v3143, %v3354
      %3356 = vmatmul.f32.gmra.mxu0 %v3242
      %v3357 = vpop.f32.mrf.mxu0
      %v3358 = vadd.f32 %v3146, %v3357
      %3359 = vmatmul.f32.gmra.mxu0 %v3245
      %v3360 = vpop.f32.mrf.mxu0
      %v3361 = vadd.f32 %v3149, %v3360
      %3362 = vmatmul.f32.gmra.mxu0 %v3248
      %v3363 = vpop.f32.mrf.mxu0
      %v3364 = vadd.f32 %v3152, %v3363
      %3365 = vmatmul.f32.gmra.mxu0 %v3251
      %v3366 = vpop.f32.mrf.mxu0
      %v3367 = vadd.f32 %v3155, %v3366
      %3368 = vmatmul.f32.gmra.mxu0 %v3254
      %v3369 = vpop.f32.mrf.mxu0
      %v3370 = vadd.f32 %v3158, %v3369
      %3371 = vmatmul.f32.gmra.mxu0 %v3257
      %v3372 = vpop.f32.mrf.mxu0
      %v3373 = vadd.f32 %v3161, %v3372
      %3374 = vmatmul.f32.gmra.mxu0 %v3260
      %v3375 = vpop.f32.mrf.mxu0
      %v3376 = vadd.f32 %v3164, %v3375
      %3377 = vmatmul.f32.gmra.mxu0 %v3263
      %v3378 = vpop.f32.mrf.mxu0
      %v3379 = vadd.f32 %v3167, %v3378
      %3380 = vmatmul.f32.gmra.mxu0 %v3266
      %v3381 = vpop.f32.mrf.mxu0
      %v3382 = vadd.f32 %v3170, %v3381
      %3383 = vmatmul.f32.gmra.mxu0 %v3269
      %v3384 = vpop.f32.mrf.mxu0
      %v3385 = vadd.f32 %v3173, %v3384
      %3386 = vmatmul.f32.gmra.mxu0 %v3272
      %v3387 = vpop.f32.mrf.mxu0
      %v3388 = vadd.f32 %v3176, %v3387
      %3389 = vmatmul.f32.gmra.mxu0 %v3275
      %v3390 = vpop.f32.mrf.mxu0
      %v3391 = vadd.f32 %v3179, %v3390
      %3392 = vmatmul.f32.gmra.mxu0 %v3278
      %v3393 = vpop.f32.mrf.mxu0
      %v3394 = vadd.f32 %v3182, %v3393
      %3395 = vmatmul.f32.gmra.mxu0 %v3281
      %v3396 = vpop.f32.mrf.mxu0
      %v3397 = vadd.f32 %v3185, %v3396
      %3398 = vmatmul.f32.gmra.mxu0 %v3284
      %v3399 = vpop.f32.mrf.mxu0
      %v3400 = vadd.f32 %v3188, %v3399
      %3401 = vmatmul.f32.gmra.mxu0 %v3287
      %v3402 = vpop.f32.mrf.mxu0
      %v3403 = vadd.f32 %v3191, %v3402
      %3404 = vmatmul.f32.gmra.mxu0 %v3290
      %v3405 = vpop.f32.mrf.mxu0
      %v3406 = vadd.f32 %v3194, %v3405
      %3407 = vmatmul.f32.gmra.mxu0 %v3293
      %v3408 = vpop.f32.mrf.mxu0
      %v3409 = vadd.f32 %v3197, %v3408
      %3410 = vmatmul.f32.gmra.mxu0 %v3296
      %v3411 = vpop.f32.mrf.mxu0
      %v3412 = vadd.f32 %v3200, %v3411
      %3413 = vmatmul.f32.gmra.mxu0 %v3299
      %v3414 = vpop.f32.mrf.mxu0
      %v3415 = vadd.f32 %v3203, %v3414
      %3416 = vmatmul.f32.gmra.mxu0 %v3302
      %v3417 = vpop.f32.mrf.mxu0
      %v3418 = vadd.f32 %v3206, %v3417
      %3419 = vmatmul.f32.gmra.mxu0 %v3305
      %v3420 = vpop.f32.mrf.mxu0
      %v3421 = vadd.f32 %v3209, %v3420
      %3422 = vmatmul.f32.gmra.mxu0 %v3308
      %v3423 = vpop.f32.mrf.mxu0
      %v3424 = vadd.f32 %v3212, %v3423
      %3425 = vmatmul.f32.gmra.mxu0 %v3311
      %v3426 = vpop.f32.mrf.mxu0
      %v3427 = vadd.f32 %v3215, %v3426
      %3428 = vmatmul.f32.gmra.mxu0 %v3314
      %v3429 = vpop.f32.mrf.mxu0
      %v3430 = vadd.f32 %v3218, %v3429
      %3431 = vdwg.mxu0
      %v3432 = vld [vmem:[%s12] sm:$0x1]
      %v3434 = vperm.slane %v3432, 0
      %v3436 = vadd.f32 %v3337, %v3434
      %v3437 = vadd.f32 %v3340, %v3434
      %v3438 = vadd.f32 %v3343, %v3434
      %v3439 = vadd.f32 %v3346, %v3434
      %v3440 = vadd.f32 %v3349, %v3434
      %v3441 = vadd.f32 %v3352, %v3434
      %v3442 = vadd.f32 %v3355, %v3434
      %v3443 = vadd.f32 %v3358, %v3434
      %v3444 = vadd.f32 %v3361, %v3434
      %v3445 = vadd.f32 %v3364, %v3434
      %v3446 = vadd.f32 %v3367, %v3434
      %v3447 = vadd.f32 %v3370, %v3434
      %v3448 = vadd.f32 %v3373, %v3434
      %v3449 = vadd.f32 %v3376, %v3434
      %v3450 = vadd.f32 %v3379, %v3434
      %v3451 = vadd.f32 %v3382, %v3434
      %v3452 = vadd.f32 %v3385, %v3434
      %v3453 = vadd.f32 %v3388, %v3434
      %v3454 = vadd.f32 %v3391, %v3434
      %v3455 = vadd.f32 %v3394, %v3434
      %v3456 = vadd.f32 %v3397, %v3434
      %v3457 = vadd.f32 %v3400, %v3434
      %v3458 = vadd.f32 %v3403, %v3434
      %v3459 = vadd.f32 %v3406, %v3434
      %v3460 = vadd.f32 %v3409, %v3434
      %v3461 = vadd.f32 %v3412, %v3434
      %v3462 = vadd.f32 %v3415, %v3434
      %v3463 = vadd.f32 %v3418, %v3434
      %v3464 = vadd.f32 %v3421, %v3434
      %v3465 = vadd.f32 %v3424, %v3434
      %v3466 = vadd.f32 %v3427, %v3434
      %v3467 = vadd.f32 %v3430, %v3434
      %v3468 = vmax.f32 %v3436, 0.0
      %v3469 = vmax.f32 %v3437, 0.0
      %v3470 = vmax.f32 %v3438, 0.0
      %v3471 = vmax.f32 %v3439, 0.0
      %v3472 = vmax.f32 %v3440, 0.0
      %v3473 = vmax.f32 %v3441, 0.0
      %v3474 = vmax.f32 %v3442, 0.0
      %v3475 = vmax.f32 %v3443, 0.0
      %v3476 = vmax.f32 %v3444, 0.0
      %v3477 = vmax.f32 %v3445, 0.0
      %v3478 = vmax.f32 %v3446, 0.0
      %v3479 = vmax.f32 %v3447, 0.0
      %v3480 = vmax.f32 %v3448, 0.0
      %v3481 = vmax.f32 %v3449, 0.0
      %v3482 = vmax.f32 %v3450, 0.0
      %v3483 = vmax.f32 %v3451, 0.0
      %v3484 = vmax.f32 %v3452, 0.0
      %v3485 = vmax.f32 %v3453, 0.0
      %v3486 = vmax.f32 %v3454, 0.0
      %v3487 = vmax.f32 %v3455, 0.0
      %v3488 = vmax.f32 %v3456, 0.0
      %v3489 = vmax.f32 %v3457, 0.0
      %v3490 = vmax.f32 %v3458, 0.0
      %v3491 = vmax.f32 %v3459, 0.0
      %v3492 = vmax.f32 %v3460, 0.0
      %v3493 = vmax.f32 %v3461, 0.0
      %v3494 = vmax.f32 %v3462, 0.0
      %v3495 = vmax.f32 %v3463, 0.0
      %v3496 = vmax.f32 %v3464, 0.0
      %v3497 = vmax.f32 %v3465, 0.0
      %v3498 = vmax.f32 %v3466, 0.0
      %v3499 = vmax.f32 %v3467, 0.0
      %3500 = vst.msk [vmem:[%s790] sm:$0xff] %vm798, %v3468
      %3501 = vst.msk [vmem:[%s790 + $0x8] sm:$0xff] %vm798, %v3469
      %3502 = vst.msk [vmem:[%s790 + $0x10] sm:$0xff] %vm798, %v3470
      %3503 = vst.msk [vmem:[%s790 + $0x18] sm:$0xff] %vm798, %v3471
      %3504 = vst.msk [vmem:[%s790 + $0x20] sm:$0xff] %vm798, %v3472
      %3505 = vst.msk [vmem:[%s790 + $0x28] sm:$0xff] %vm798, %v3473
      %3506 = vst.msk [vmem:[%s790 + $0x30] sm:$0xff] %vm798, %v3474
      %3507 = vst.msk [vmem:[%s790 + $0x38] sm:$0xff] %vm798, %v3475
      %3508 = vst.msk [vmem:[%s790 + $0x40] sm:$0xff] %vm798, %v3476
      %3509 = vst.msk [vmem:[%s790 + $0x48] sm:$0xff] %vm798, %v3477
      %3510 = vst.msk [vmem:[%s790 + $0x50] sm:$0xff] %vm798, %v3478
      %3511 = vst.msk [vmem:[%s790 + $0x58] sm:$0xff] %vm798, %v3479
      %3512 = vst.msk [vmem:[%s790 + $0x60] sm:$0xff] %vm798, %v3480
      %3513 = vst.msk [vmem:[%s790 + $0x68] sm:$0xff] %vm798, %v3481
      %3514 = vst.msk [vmem:[%s790 + $0x70] sm:$0xff] %vm798, %v3482
      %3515 = vst.msk [vmem:[%s790 + $0x78] sm:$0xff] %vm798, %v3483
      %3516 = vst.msk [vmem:[%s790 + $0x80] sm:$0xff] %vm798, %v3484
      %3517 = vst.msk [vmem:[%s790 + $0x88] sm:$0xff] %vm798, %v3485
      %3518 = vst.msk [vmem:[%s790 + $0x90] sm:$0xff] %vm798, %v3486
      %3519 = vst.msk [vmem:[%s790 + $0x98] sm:$0xff] %vm798, %v3487
      %3520 = vst.msk [vmem:[%s790 + $0xa0] sm:$0xff] %vm798, %v3488
      %3521 = vst.msk [vmem:[%s790 + $0xa8] sm:$0xff] %vm798, %v3489
      %3522 = vst.msk [vmem:[%s790 + $0xb0] sm:$0xff] %vm798, %v3490
      %3523 = vst.msk [vmem:[%s790 + $0xb8] sm:$0xff] %vm798, %v3491
      %3524 = vst.msk [vmem:[%s790 + $0xc0] sm:$0xff] %vm798, %v3492
      %3525 = vst.msk [vmem:[%s790 + $0xc8] sm:$0xff] %vm798, %v3493
      %3526 = vst.msk [vmem:[%s790 + $0xd0] sm:$0xff] %vm798, %v3494
      %3527 = vst.msk [vmem:[%s790 + $0xd8] sm:$0xff] %vm798, %v3495
      %3528 = vst.msk [vmem:[%s790 + $0xe0] sm:$0xff] %vm798, %v3496
      %3529 = vst.msk [vmem:[%s790 + $0xe8] sm:$0xff] %vm798, %v3497
      %3530 = vst.msk [vmem:[%s790 + $0xf0] sm:$0xff] %vm798, %v3498
      %3531 = vst.msk [vmem:[%s790 + $0xf8] sm:$0xff] %vm798, %v3499
      %s3532 = smul.u32 16, %s29
      %p3533 = scmp.lt.s32.totalorder %s28, 1
      %s3534 = scalar_select %p3533, %s28, 1
      %p3535 = scmp.lt.s32.totalorder %s3532, 15
      %s3536 = scalar_select %p3535, %s3532, 15
      %s3537 = smul.addr %s3536, 2
      %s3538 = smul.addr %s3534, 32
      %s3539 = sadd.s32 %s3537, %s3538
      %s3540 = smul.addr %s3539, 8
      %s3541 = scalar_lea.vmem %s13, %s3540
      // Predicated region
      $region73: #{upblock_mobile_forward.3} parent=71 // pred_check
        %p3542 = pneg %p403
      $region74: #{upblock_mobile_forward.3} parent=71 // pred_check_branch
        %3544 = sbr.rel (%p3542) target = $region76
      $region75: #{upblock_mobile_forward.3} parent=71 // pred_region
        %s3545 = smul.u32 16, %s29
      $region76: #{upblock_mobile_forward.3} parent=71 // pred_fallthru
        _
    $region72: #{upblock_mobile_forward.3} parent=5 // pred_fallthru
      _
    %p3546 = scmp.le.s32.totalorder 2, %s19
    // Predicated region
    $region77: #{upblock_mobile_forward.3} parent=5 // pred_check
      %p3547 = pneg %p3546
    $region78: #{upblock_mobile_forward.3} parent=5 // pred_check_branch
      %3549 = sbr.rel (%p3547) target = $region80
    $region79: #{upblock_mobile_forward.3} parent=5 // pred_region
      %s3550 = ssub.s32 %s19, 2
      // Predicated region
      $region81: #{upblock_mobile_forward.3} parent=79 // pred_check
        %p3551 = pneg %p409
      $region82: #{upblock_mobile_forward.3} parent=79 // pred_check_branch
        %3553 = sbr.rel (%p3551) target = $region84
      $region83: #{upblock_mobile_forward.3} parent=79 // pred_region
        %s3554 = smul.u32 16, %s31
        %p3555 = scmp.lt.s32.totalorder %s30, 1
        %s3556 = scalar_select %p3555, %s30, 1
        %p3557 = scmp.lt.s32.totalorder %s3554, 15
        %s3558 = scalar_select %p3557, %s3554, 15
        %s3559 = smul.addr %s3558, 2
        %s3560 = smul.addr %s3556, 32
        %s3561 = sadd.s32 %s3559, %s3560
        %s3562 = smul.addr %s3561, 8
        %s3563 = scalar_lea.vmem %s13, %s3562
      $region84: #{upblock_mobile_forward.3} parent=79 // pred_fallthru
        _
    $region80: #{upblock_mobile_forward.3} parent=5 // pred_fallthru
      _
  $region6: #{upblock_mobile_forward.3} parent=0 // loop_footer
    %s23 = sadd.s32 1, %s19
  $region7: #{upblock_mobile_forward.3} parent=0 // loop_footer_branch
    %18 = sbr.rel target = $region3
  $region8: #{upblock_mobile_forward.3} parent=0 // loop_exit
    _

</llo_original>
